<compile_context>
chip_gen: v5e
topology: v5e:2x2
jax: 0.10.0
libtpu: 0.0.40
codegen_flags: <defaults>
</compile_context>

<pallas_src>
import functools

import numpy as np
import jax
import jax.numpy as jnp
from jax import lax
from jax.experimental import pallas as pl
from jax.experimental.pallas import tpu as pltpu


PACK = 16                         # original rows per lane-dense super-row (16*F % 128 == 0)
_VMEM_LIMIT = 48 * 1024 * 1024    # explicit scoped-VMEM budget (fits v7x's 64 MiB physical)


def rope_kernel(coord_ref, feat_ref, sel_ref, out_ref):
    t = feat_ref[...]                                   # (TM, W) f32
    w = t.shape[-1]
    # Angles via one exact selector matmul: each selector column has a single
    # nonzero (= lane_freq * rotate_half_sign), so the dot is a per-element
    # coord*freq product.  HIGHEST keeps the f32 product f32-accurate on MXU
    # (tiny ~MFLOP matmul, fully hidden under the HBM stream).
    ang = jnp.dot(coord_ref[...], sel_ref[...],
                  preferred_element_type=jnp.float32,
                  precision=lax.Precision.HIGHEST)      # (TM, W)
    cos_v = jnp.cos(ang)        # cos is even -> unaffected by the sign fold
    sin_v = jnp.sin(ang)        # sin is odd  -> carries rotate_half's minus sign
    # rotate_half: even lane j takes t[j+1], odd lane j takes t[j-1]
    # (the -1 on even lanes is already folded into `ang`, hence into sin_v).
    # Static lane shifts lower to cheap lane rotates; the wrap-around lanes are
    # exactly the ones discarded by the parity select (needs F even, asserted
    # in the wrapper, so packing 16 rows preserves lane parity).
    left = jnp.roll(t, -1, axis=1)                      # t[j+1]
    right = jnp.roll(t, 1, axis=1)                      # t[j-1]
    lane = lax.broadcasted_iota(jnp.int32, (1, w), 1)
    is_even = (lane & 1) == 0                           # (1, W), broadcast inside where
    rot = jnp.where(is_even, left, right)
    # TODO(synk): angles repeat per lane pair (r=2) -> trig could run at half
    # width (TM, W//2) + an XLU interleave if a bundle dump confirms VALU-bound.
    out_ref[...] = t * cos_v + rot * sin_v


@functools.lru_cache(maxsize=None)
def make_rope_constants(dim, theta=10000.0, pack=PACK):
    """(4*pack, pack*3*dim) selector with freq scale and rotate_half sign baked in."""
    F = 3 * dim
    # self.freq = 1 / theta ** (arange(0, dim, 2)[:dim//2] / dim)
    freq_half = 1.0 / theta ** (np.arange(0, dim, 2)[: dim // 2].astype(np.float32) / dim)
    lane_freq = np.tile(np.repeat(freq_half, 2), 3)                  # (F,)
    sign = np.where(np.arange(F) % 2 == 0, -1.0, 1.0)                # even lanes: fold rotate_half '-'
    lane_scale = (lane_freq * sign).astype(np.float32)
    lane_col = np.repeat(np.array([3, 2, 1], np.int64), dim)         # x -> col3, y -> col2, z -> col1
    sel = np.zeros((4 * pack, pack * F), np.float32)
    j = np.arange(F)
    for r in range(pack):
        sel[4 * r + lane_col, F * r + j] = lane_scale
    return jnp.asarray(sel)


def _choose_block_m(M, requested):
    """Super-row tile: multiple of 8, capped so the 1-D grid has >= 2 steps when
    possible (keeps both TensorCores busy on v7x megacore)."""
    if M <= 8:
        return max(int(M), 1)               # block == full array dim, no ragged edge
    half = ((M + 1) // 2 + 7) // 8 * 8      # ~ceil(M/2) rounded up to a multiple of 8
    return int(max(8, min(requested, half)))


def _host_is_batch_grouped(batch_ids):
    """Concrete (host) check; under jit values are not inspectable, so return
    False and take the always-correct stable-sort path (jitted callers that
    know the spconv layout is batch-grouped pass assume_batch_grouped=True)."""
    try:
        b = np.asarray(batch_ids)
    except Exception:
        return False
    return b.shape[0] <= 1 or bool(np.all(b[:-1] <= b[1:]))


def vision_rotary_embedding_fast(features, indices, dim, theta=10000.0,
                                 block_m=512, assume_batch_grouped=None):
    """Returns the rotated features of the sparse tensor (indices unchanged)."""
    N, F = features.shape
    assert dim % 6 == 0 and F == 3 * dim
    assert F % 2 == 0  # lane parity (rotate_half pairing) must survive the row packing
    sel = make_rope_constants(int(dim), float(theta))

    # ---- pack PACK rows per lane-dense super-row (row-major reshape) ----------
    Np = pl.cdiv(N, PACK) * PACK
    M = Np // PACK
    W = PACK * F
    feats = features
    coords = indices.astype(jnp.float32)       # integer coords < 2^24 are exact in f32
    if Np != N:
        # TODO(synk): run the (<PACK-row) remainder through a tiny second call
        # instead of this pad copy; only hit when N % 16 != 0.
        feats = jnp.pad(feats, ((0, Np - N), (0, 0)))
        coords = jnp.pad(coords, ((0, Np - N), (0, 0)))
    feats_packed = feats.reshape(M, W)
    coords_packed = coords.reshape(M, PACK * 4)

    bm = _choose_block_m(M, block_m)
    grid = (pl.cdiv(M, bm),)                    # ragged last tile handled by Pallas masking
    rotated = pl.pallas_call(
        rope_kernel,
        out_shape=jax.ShapeDtypeStruct((M, W), jnp.float32),
        grid_spec=pltpu.PrefetchScalarGridSpec(
            num_scalar_prefetch=0,
            grid=grid,
            in_specs=[
                pl.BlockSpec((bm, PACK * 4), lambda i: (i, 0)),   # packed coords
                pl.BlockSpec((bm, W), lambda i: (i, 0)),          # packed features
                pl.BlockSpec((4 * PACK, W), lambda i: (0, 0)),    # freq+sign selector
            ],
            out_specs=pl.BlockSpec((bm, W), lambda i: (i, 0)),
        ),
        compiler_params=pltpu.CompilerParams(
            dimension_semantics=("parallel",),
            vmem_limit_bytes=_VMEM_LIMIT),
    )(coords_packed, feats_packed, sel)

    out = rotated.reshape(Np, F)[:N]

    # torch loop `for b: fs.append(t[batch==b]); cat(fs)` == stable sort by batch
    # id.  Skip the extra HBM gather pass when rows are already batch-grouped
    # (the usual spconv layout); otherwise fall back to a plain-JAX gather.
    batch_ids = indices[:, 0]
    grouped = assume_batch_grouped
    if grouped is None:
        grouped = _host_is_batch_grouped(batch_ids)
    if grouped:
        return out
    order = jnp.argsort(batch_ids, stable=True)
    return out[order]


def reference_forward(features, indices, dim, theta=10000.0):
    N, F = features.shape
    freq = 1.0 / theta ** (jnp.arange(0, dim, 2)[: dim // 2].astype(jnp.float32) / dim)
    angs = []
    for axis in range(3):
        s = indices[:, 3 - axis].astype(jnp.float32)          # (N,)
        ang = s[:, None] * freq[None, :]                      # (N, dim//2)
        ang = jnp.repeat(ang, 2, axis=-1)                     # (N, dim)
        angs.append(ang)
    ang = jnp.concatenate(angs, axis=-1)                      # (N, F)
    cos_v, sin_v = jnp.cos(ang), jnp.sin(ang)
    x = features.reshape(N, F // 2, 2)
    rot = jnp.stack([-x[..., 1], x[..., 0]], axis=-1).reshape(N, F)
    out = features * cos_v + rot * sin_v
    order = jnp.argsort(indices[:, 0], stable=True)
    return out[order]


if __name__ == "__main__":
    dim = 24               # constructor arg (dim % 6 == 0); feature width = 3*dim
    F = 3 * dim            # 72
    batch_size = 2
    n_per_batch = 8
    N = batch_size * n_per_batch   # 16 active voxels

    key = jax.random.PRNGKey(0)
    k_feat, k_idx = jax.random.split(key)
    features = jax.random.normal(k_feat, (N, F), dtype=jnp.float32)
    coords = jax.random.randint(k_idx, (N, 3), 0, 16, dtype=jnp.int32)   # z, y, x
    batch_ids = jnp.repeat(jnp.arange(batch_size, dtype=jnp.int32), n_per_batch)
    indices = jnp.concatenate([batch_ids[:, None], coords], axis=1)      # (N, 4)

    out = vision_rotary_embedding_fast(features, indices, dim)
    out = jax.block_until_ready(out)

    ref = reference_forward(features, indices, dim)
    assert out.shape == (N, F)
    err = float(jnp.max(jnp.abs(out - ref)))
    assert err < 1e-4, f"mismatch vs reference: {err}"

    print("KERNEL_OK")
</pallas_src>

<mosaic_0001>
module attributes {stable_mosaic.version = 11 : i64} {
  func.func @rope_kernel(%arg0: i32, %arg1: memref<1x64xf32, #tpu.memory_space<vmem>>, %arg2: memref<1x1152xf32, #tpu.memory_space<vmem>>, %arg3: memref<64x1152xf32, #tpu.memory_space<vmem>>, %arg4: memref<1x1152xf32, #tpu.memory_space<vmem>>) attributes {dimension_semantics = [#tpu.dimension_semantics<parallel>], iteration_bounds = array<i64: 1>, scalar_prefetch = 0 : i64, scratch_operands = 0 : i64, tpu.core_type = #tpu.core_type<tc>, window_params = [{transform_indices = @transform_0, window_bounds = array<i64: 1, 64>}, {transform_indices = @transform_1, window_bounds = array<i64: 1, 1152>}, {pipeline_mode = #tpu.pipeline_mode<synchronous>, transform_indices = @transform_2, window_bounds = array<i64: 64, 1152>}, {transform_indices = @transform_3, window_bounds = array<i64: 1, 1152>}]} {
    %c0 = arith.constant 0 : index
    %c0_0 = arith.constant 0 : index
    %0 = vector.load %arg2[%c0, %c0_0] : memref<1x1152xf32, #tpu.memory_space<vmem>>, vector<1x1152xf32>
    %c0_1 = arith.constant 0 : index
    %c0_2 = arith.constant 0 : index
    %1 = vector.load %arg1[%c0_1, %c0_2] : memref<1x64xf32, #tpu.memory_space<vmem>>, vector<1x64xf32>
    %c0_3 = arith.constant 0 : index
    %c0_4 = arith.constant 0 : index
    %2 = vector.load %arg3[%c0_3, %c0_4] : memref<64x1152xf32, #tpu.memory_space<vmem>>, vector<64x1152xf32>
    %cst = arith.constant dense<0.000000e+00> : vector<1x1152xf32>
    %3 = tpu.matmul %1, %2, %cst {dimension_numbers = #tpu.dot_dimension_numbers<[1], [0], [0], [1], [0, 0, 1, 1], [], []>, precision = #tpu.contract_precision<fp32>} : vector<1x64xf32>, vector<64x1152xf32>, vector<1x1152xf32> -> vector<1x1152xf32>
    %4 = math.cos %3 : vector<1x1152xf32>
    %5 = math.sin %3 : vector<1x1152xf32>
    %6 = vector.extract_strided_slice %0 {offsets = [0, 1], sizes = [1, 1151], strides = [1, 1]} : vector<1x1152xf32> to vector<1x1151xf32>
    %7 = vector.extract_strided_slice %0 {offsets = [0, 0], sizes = [1, 1], strides = [1, 1]} : vector<1x1152xf32> to vector<1x1xf32>
    %8 = tpu.concatenate %6, %7 in 1 : vector<1x1151xf32>, vector<1x1xf32> -> vector<1x1152xf32>
    %9 = vector.extract_strided_slice %0 {offsets = [0, 1151], sizes = [1, 1], strides = [1, 1]} : vector<1x1152xf32> to vector<1x1xf32>
    %10 = vector.extract_strided_slice %0 {offsets = [0, 0], sizes = [1, 1151], strides = [1, 1]} : vector<1x1152xf32> to vector<1x1151xf32>
    %11 = tpu.concatenate %9, %10 in 1 : vector<1x1xf32>, vector<1x1151xf32> -> vector<1x1152xf32>
    %12 = tpu.iota {dimensions = array<i32: 1>} : vector<1x1152xi32>
    %c1_i32 = arith.constant 1 : i32
    %13 = vector.broadcast %c1_i32 : i32 to vector<1x1152xi32>
    %14 = arith.andi %12, %13 : vector<1x1152xi32>
    %c0_i32 = arith.constant 0 : i32
    %15 = vector.broadcast %c0_i32 : i32 to vector<1x1152xi32>
    %16 = arith.cmpi eq, %14, %15 : vector<1x1152xi32>
    %17 = arith.select %16, %8, %11 : vector<1x1152xi1>, vector<1x1152xf32>
    %18 = arith.mulf %0, %4 : vector<1x1152xf32>
    %19 = arith.mulf %17, %5 : vector<1x1152xf32>
    %20 = arith.addf %18, %19 : vector<1x1152xf32>
    %c0_5 = arith.constant 0 : index
    %c0_6 = arith.constant 0 : index
    %21 = vector.load %arg4[%c0_5, %c0_6] : memref<1x1152xf32, #tpu.memory_space<vmem>>, vector<1x1152xf32>
    tpu.vector_store %arg4[%c0_5, %c0_6], %20 {strides = array<i32>} : memref<1x1152xf32, #tpu.memory_space<vmem>>, vector<1x1152xf32>,
    return
  }
  func.func @transform_0(%arg0: i32) -> (i32, i32) {
    %c0_i32 = arith.constant 0 : i32
    %c0_i32_0 = arith.constant 0 : i32
    return %arg0, %c0_i32 : i32, i32
  }
  func.func @transform_1(%arg0: i32) -> (i32, i32) {
    %c0_i32 = arith.constant 0 : i32
    %c0_i32_0 = arith.constant 0 : i32
    return %arg0, %c0_i32 : i32, i32
  }
  func.func @transform_2(%arg0: i32) -> (i32, i32) {
    %c0_i32 = arith.constant 0 : i32
    %c0_i32_0 = arith.constant 0 : i32
    %c0_i32_1 = arith.constant 0 : i32
    return %c0_i32, %c0_i32_0 : i32, i32
  }
  func.func @transform_3(%arg0: i32) -> (i32, i32) {
    %c0_i32 = arith.constant 0 : i32
    %c0_i32_0 = arith.constant 0 : i32
    return %arg0, %c0_i32 : i32, i32
  }
}

</mosaic_0001>

<llo_original>
// kernel: tpu_custom_call.1
$region0: #{tpu_custom_call.1}
  #allocation0 [shape = 'u32[]', space=smem, size = 0x4, offset = 0x4, fixed_abs, tag = 'smem constant byte address 0x4 - core index']
  #allocation1 [shape = 'u32[72,128]{1,0:T(1,128)}', space=vmem, size = 0x9000, scoped, tag = 'internal scratch']
  %s0 = inlined_call_operand.hbm [shape: f32[1,64], index: 0, kind: input, shape index: {}]
  %s1 = inlined_call_operand.hbm [shape: f32[1,1152], index: 1, kind: input, shape index: {}]
  %s2 = inlined_call_operand.hbm [shape: f32[64,1152], index: 2, kind: input, shape index: {}]
  %s3 = inlined_call_operand.hbm [shape: f32[1,1152], index: 3, kind: output, shape index: {}]
  %s4 = sld [smem:[#allocation0]]
  $region34: #{tpu_custom_call.1} parent=0
    _
  %s6 = ssub.s32 1, %s4
  %s7 = scalar_select 0, %s6, %s4
  $region1: #{tpu_custom_call.1} parent=0
    #allocation2 [shape = 'u8[512]{0}', space=vmem, size = 0x400, scoped, tag = 'input window, operand 0, single buffered']
    #allocation3 [shape = 's32[1]{0}', space=sflag, size = 0x4, scoped, tag = 'scoped memory for tpu_custom_call.1']
    #allocation4 [shape = 's32[1]{0}', space=sflag, size = 0x4, scoped, tag = 'scoped memory for tpu_custom_call.1']
    #allocation5 [shape = 'u8[4608]{0}', space=vmem, size = 0x1400, scoped, tag = 'input window, operand 1, single buffered']
    #allocation6 [shape = 's32[1]{0}', space=sflag, size = 0x4, scoped, tag = 'scoped memory for tpu_custom_call.1']
    #allocation7 [shape = 'u8[294912]{0}', space=vmem, size = 0x48000, scoped, tag = 'input window, operand 2, single buffered']
    #allocation8 [shape = 'u8[4608]{0}', space=vmem, size = 0x1400, scoped, tag = 'output window, operand 0, single buffered']
    %8 = vsyncpa [#allocation3], 0
    %9 = vsyncpa [#allocation6], 0
    %10 = vsyncpa [#allocation4], 0
    // Predicated region
    $region2: #{tpu_custom_call.1} parent=1 // pred_check
      _
    $region3: #{tpu_custom_call.1} parent=1 // pred_check_branch
      %12 = sbr.rel (0) target = $region5
    $region4: #{tpu_custom_call.1} parent=1 // pred_region
      %14 = vsyncadd [#allocation3], 0
      %s16 = sshll.u32 %s0, 4
      %s17 = int_to_ptr.hbm [resolvable:$true] %s16
      %s18 = sshll.u32 [#allocation2], 4
      %s19 = int_to_ptr.vmem [resolvable:$true] %s18
      %21 = dma.hbm_to_vmem [thread:$0]  %s17, 16, %s19, [#allocation3]
    $region5: #{tpu_custom_call.1} parent=1 // pred_fallthru
      _
    // Predicated region
    $region6: #{tpu_custom_call.1} parent=1 // pred_check
      _
    $region7: #{tpu_custom_call.1} parent=1 // pred_check_branch
      %23 = sbr.rel (0) target = $region9
    $region8: #{tpu_custom_call.1} parent=1 // pred_region
      %25 = vsyncadd [#allocation6], 0
      %s27 = sshll.u32 %s1, 4
      %s28 = int_to_ptr.hbm [resolvable:$true] %s27
      %s29 = sshll.u32 [#allocation5], 4
      %s30 = int_to_ptr.vmem [resolvable:$true] %s29
      %32 = dma.hbm_to_vmem [thread:$0]  %s28, 144, %s30, [#allocation6]
    $region9: #{tpu_custom_call.1} parent=1 // pred_fallthru
      _
    // Predicated region
    $region10: #{tpu_custom_call.1} parent=1 // pred_check
      _
    $region11: #{tpu_custom_call.1} parent=1 // pred_check_branch
      %34 = sbr.rel (0) target = $region13
    $region12: #{tpu_custom_call.1} parent=1 // pred_region
      %36 = vsyncadd [#allocation6], 0
      %s37 = sshll.u32 %s2, 4
      %s38 = int_to_ptr.hbm [resolvable:$true] %s37
      %s39 = sshll.u32 [#allocation7], 4
      %s40 = int_to_ptr.vmem [resolvable:$true] %s39
      %45 = dma.hbm_to_vmem [thread:$0]  %s38, 9216, %s40, [#allocation6], 1152, 1152, 72
    $region13: #{tpu_custom_call.1} parent=1 // pred_fallthru
      _
    // Predicated region
    $region14: #{tpu_custom_call.1} parent=1 // pred_check
      _
    $region15: #{tpu_custom_call.1} parent=1 // pred_check_branch
      %47 = sbr.rel (0) target = $region17
    $region16: #{tpu_custom_call.1} parent=1 // pred_region
      %49 = dma.done [#allocation3], 16
    $region17: #{tpu_custom_call.1} parent=1 // pred_fallthru
      _
    // Predicated region
    $region18: #{tpu_custom_call.1} parent=1 // pred_check
      _
    $region19: #{tpu_custom_call.1} parent=1 // pred_check_branch
      %51 = sbr.rel (0) target = $region21
    $region20: #{tpu_custom_call.1} parent=1 // pred_region
      %53 = dma.done [#allocation6], 144
    $region21: #{tpu_custom_call.1} parent=1 // pred_fallthru
      _
    // Predicated region
    $region22: #{tpu_custom_call.1} parent=1 // pred_check
      _
    $region23: #{tpu_custom_call.1} parent=1 // pred_check_branch
      %55 = sbr.rel (0) target = $region25
    $region24: #{tpu_custom_call.1} parent=1 // pred_region
      %57 = dma.done [#allocation6], 9216
    $region25: #{tpu_custom_call.1} parent=1 // pred_fallthru
      _
    %v58 = vld [vmem:[#allocation5] sm:$0xff]
    %v59 = vld [vmem:[#allocation5 + $0x8] sm:$0x1]
    %v60 = vld [vmem:[#allocation2] sm:$0x1]
    %v61 = vld [vmem:[#allocation7] sm:$0xff]
    %v62 = vld [vmem:[#allocation7 + $0x8] sm:$0xff]
    %v63 = vld [vmem:[#allocation7 + $0x10] sm:$0xff]
    %v64 = vld [vmem:[#allocation7 + $0x18] sm:$0xff]
    %v65 = vld [vmem:[#allocation7 + $0x20] sm:$0xff]
    %v66 = vld [vmem:[#allocation7 + $0x28] sm:$0xff]
    %v67 = vld [vmem:[#allocation7 + $0x30] sm:$0xff]
    %v68 = vld [vmem:[#allocation7 + $0x38] sm:$0xff]
    %v69 = vld [vmem:[#allocation7 + $0x40] sm:$0xff]
    %v70 = vld [vmem:[#allocation7 + $0x48] sm:$0xff]
    %v71 = vld [vmem:[#allocation7 + $0x50] sm:$0xff]
    %v72 = vld [vmem:[#allocation7 + $0x58] sm:$0xff]
    %v73 = vld [vmem:[#allocation7 + $0x60] sm:$0xff]
    %v74 = vld [vmem:[#allocation7 + $0x68] sm:$0xff]
    %v75 = vld [vmem:[#allocation7 + $0x70] sm:$0xff]
    %v76 = vld [vmem:[#allocation7 + $0x78] sm:$0xff]
    %v77 = vld [vmem:[#allocation7 + $0x80] sm:$0xff]
    %v78 = vld [vmem:[#allocation7 + $0x88] sm:$0xff]
    %v79 = vld [vmem:[#allocation7 + $0x90] sm:$0xff]
    %v80 = vld [vmem:[#allocation7 + $0x98] sm:$0xff]
    %v81 = vld [vmem:[#allocation7 + $0xa0] sm:$0xff]
    %v82 = vld [vmem:[#allocation7 + $0xa8] sm:$0xff]
    %v83 = vld [vmem:[#allocation7 + $0xb0] sm:$0xff]
    %v84 = vld [vmem:[#allocation7 + $0xb8] sm:$0xff]
    %v85 = vld [vmem:[#allocation7 + $0xc0] sm:$0xff]
    %v86 = vld [vmem:[#allocation7 + $0xc8] sm:$0xff]
    %v87 = vld [vmem:[#allocation7 + $0xd0] sm:$0xff]
    %v88 = vld [vmem:[#allocation7 + $0xd8] sm:$0xff]
    %v89 = vld [vmem:[#allocation7 + $0xe0] sm:$0xff]
    %v90 = vld [vmem:[#allocation7 + $0xe8] sm:$0xff]
    %v91 = vld [vmem:[#allocation7 + $0xf0] sm:$0xff]
    %v92 = vld [vmem:[#allocation7 + $0xf8] sm:$0xff]
    %v93 = vld [vmem:[#allocation7 + $0x100] sm:$0xff]
    %v94 = vld [vmem:[#allocation7 + $0x108] sm:$0xff]
    %v95 = vld [vmem:[#allocation7 + $0x110] sm:$0xff]
    %v96 = vld [vmem:[#allocation7 + $0x118] sm:$0xff]
    %v97 = vld [vmem:[#allocation7 + $0x120] sm:$0xff]
    %v98 = vld [vmem:[#allocation7 + $0x128] sm:$0xff]
    %v99 = vld [vmem:[#allocation7 + $0x130] sm:$0xff]
    %v100 = vld [vmem:[#allocation7 + $0x138] sm:$0xff]
    %v101 = vld [vmem:[#allocation7 + $0x140] sm:$0xff]
    %v102 = vld [vmem:[#allocation7 + $0x148] sm:$0xff]
    %v103 = vld [vmem:[#allocation7 + $0x150] sm:$0xff]
    %v104 = vld [vmem:[#allocation7 + $0x158] sm:$0xff]
    %v105 = vld [vmem:[#allocation7 + $0x160] sm:$0xff]
    %v106 = vld [vmem:[#allocation7 + $0x168] sm:$0xff]
    %v107 = vld [vmem:[#allocation7 + $0x170] sm:$0xff]
    %v108 = vld [vmem:[#allocation7 + $0x178] sm:$0xff]
    %v109 = vld [vmem:[#allocation7 + $0x180] sm:$0xff]
    %v110 = vld [vmem:[#allocation7 + $0x188] sm:$0xff]
    %v111 = vld [vmem:[#allocation7 + $0x190] sm:$0xff]
    %v112 = vld [vmem:[#allocation7 + $0x198] sm:$0xff]
    %v113 = vld [vmem:[#allocation7 + $0x1a0] sm:$0xff]
    %v114 = vld [vmem:[#allocation7 + $0x1a8] sm:$0xff]
    %v115 = vld [vmem:[#allocation7 + $0x1b0] sm:$0xff]
    %v116 = vld [vmem:[#allocation7 + $0x1b8] sm:$0xff]
    %v117 = vld [vmem:[#allocation7 + $0x1c0] sm:$0xff]
    %v118 = vld [vmem:[#allocation7 + $0x1c8] sm:$0xff]
    %v119 = vld [vmem:[#allocation7 + $0x1d0] sm:$0xff]
    %v120 = vld [vmem:[#allocation7 + $0x1d8] sm:$0xff]
    %v121 = vld [vmem:[#allocation7 + $0x1e0] sm:$0xff]
    %v122 = vld [vmem:[#allocation7 + $0x1e8] sm:$0xff]
    %v123 = vld [vmem:[#allocation7 + $0x1f0] sm:$0xff]
    %v124 = vld [vmem:[#allocation7 + $0x1f8] sm:$0xff]
    %v125 = vld [vmem:[#allocation7 + $0x200] sm:$0xff]
    %v126 = vld [vmem:[#allocation7 + $0x208] sm:$0xff]
    %v127 = vld [vmem:[#allocation7 + $0x210] sm:$0xff]
    %v128 = vld [vmem:[#allocation7 + $0x218] sm:$0xff]
    %v129 = vld [vmem:[#allocation7 + $0x220] sm:$0xff]
    %v130 = vld [vmem:[#allocation7 + $0x228] sm:$0xff]
    %v131 = vld [vmem:[#allocation7 + $0x230] sm:$0xff]
    %v132 = vld [vmem:[#allocation7 + $0x238] sm:$0xff]
    %vm133 = vcmask 523264
    %v135 = vsel %vm133, %v60, 0
    %137 = vmatpush.msra.mxu0 0.0
    %138 = vmatpush.msra.mxu0 0.0
    %139 = vmatpush.msra.mxu0 0.0
    %140 = vmatpush.msra.mxu0 0.0
    %141 = vmatpush.msra.mxu0 0.0
    %142 = vmatpush.msra.mxu0 0.0
    %143 = vmatpush.msra.mxu0 0.0
    %144 = vmatpush.msra.mxu0 0.0
    %v145 = vand.u32 %v124, 4294901760
    %146 = vmatpush.msra.mxu0 %v145
    %v147 = vand.u32 %v115, 4294901760
    %148 = vmatpush.msra.mxu0 %v147
    %v149 = vand.u32 %v106, 4294901760
    %150 = vmatpush.msra.mxu0 %v149
    %v151 = vand.u32 %v97, 4294901760
    %152 = vmatpush.msra.mxu0 %v151
    %v153 = vand.u32 %v88, 4294901760
    %154 = vmatpush.msra.mxu0 %v153
    %v155 = vand.u32 %v79, 4294901760
    %156 = vmatpush.msra.mxu0 %v155
    %v157 = vand.u32 %v70, 4294901760
    %158 = vmatpush.msra.mxu0 %v157
    %v159 = vand.u32 %v61, 4294901760
    %160 = vmatpush.msra.mxu0 %v159
    %v161 = vand.u32 %v135, 4294901760
    %v162 = vsub.f32 %v135, %v161
    %v163 = vand.u32 %v162, 4294901760
    %v164 = vsub.f32 %v162, %v163
    %v165 = vand.u32 %v164, 4294901760
    %166 = vmatmul.f32.gmra.mxu0 %v165
    %v167 = vpop.f32.mrf.mxu0
    %v168 = vadd.f32 0.0, %v167
    %169 = vdwg.mxu0
    %170 = vmatpush.msra.mxu0 0.0
    %171 = vmatpush.msra.mxu0 0.0
    %172 = vmatpush.msra.mxu0 0.0
    %173 = vmatpush.msra.mxu0 0.0
    %174 = vmatpush.msra.mxu0 0.0
    %175 = vmatpush.msra.mxu0 0.0
    %176 = vmatpush.msra.mxu0 0.0
    %177 = vmatpush.msra.mxu0 0.0
    %v178 = vand.u32 %v124, 4294901760
    %v179 = vsub.f32 %v124, %v178
    %v180 = vand.u32 %v179, 4294901760
    %v181 = vsub.f32 %v179, %v180
    %v182 = vand.u32 %v181, 4294901760
    %183 = vmatpush.msra.mxu0 %v182
    %v184 = vand.u32 %v115, 4294901760
    %v185 = vsub.f32 %v115, %v184
    %v186 = vand.u32 %v185, 4294901760
    %v187 = vsub.f32 %v185, %v186
    %v188 = vand.u32 %v187, 4294901760
    %189 = vmatpush.msra.mxu0 %v188
    %v190 = vand.u32 %v106, 4294901760
    %v191 = vsub.f32 %v106, %v190
    %v192 = vand.u32 %v191, 4294901760
    %v193 = vsub.f32 %v191, %v192
    %v194 = vand.u32 %v193, 4294901760
    %195 = vmatpush.msra.mxu0 %v194
    %v196 = vand.u32 %v97, 4294901760
    %v197 = vsub.f32 %v97, %v196
    %v198 = vand.u32 %v197, 4294901760
    %v199 = vsub.f32 %v197, %v198
    %v200 = vand.u32 %v199, 4294901760
    %201 = vmatpush.msra.mxu0 %v200
    %v202 = vand.u32 %v88, 4294901760
    %v203 = vsub.f32 %v88, %v202
    %v204 = vand.u32 %v203, 4294901760
    %v205 = vsub.f32 %v203, %v204
    %v206 = vand.u32 %v205, 4294901760
    %207 = vmatpush.msra.mxu0 %v206
    %v208 = vand.u32 %v79, 4294901760
    %v209 = vsub.f32 %v79, %v208
    %v210 = vand.u32 %v209, 4294901760
    %v211 = vsub.f32 %v209, %v210
    %v212 = vand.u32 %v211, 4294901760
    %213 = vmatpush.msra.mxu0 %v212
    %v214 = vand.u32 %v70, 4294901760
    %v215 = vsub.f32 %v70, %v214
    %v216 = vand.u32 %v215, 4294901760
    %v217 = vsub.f32 %v215, %v216
    %v218 = vand.u32 %v217, 4294901760
    %219 = vmatpush.msra.mxu0 %v218
    %v220 = vand.u32 %v61, 4294901760
    %v221 = vsub.f32 %v61, %v220
    %v222 = vand.u32 %v221, 4294901760
    %v223 = vsub.f32 %v221, %v222
    %v224 = vand.u32 %v223, 4294901760
    %225 = vmatpush.msra.mxu0 %v224
    %v226 = vand.u32 %v135, 4294901760
    %227 = vmatmul.f32.gmra.mxu0 %v226
    %v228 = vpop.f32.mrf.mxu0
    %v229 = vadd.f32 %v168, %v228
    %230 = vdwg.mxu0
    %231 = vmatpush.msra.mxu0 0.0
    %232 = vmatpush.msra.mxu0 0.0
    %233 = vmatpush.msra.mxu0 0.0
    %234 = vmatpush.msra.mxu0 0.0
    %235 = vmatpush.msra.mxu0 0.0
    %236 = vmatpush.msra.mxu0 0.0
    %237 = vmatpush.msra.mxu0 0.0
    %238 = vmatpush.msra.mxu0 0.0
    %v239 = vand.u32 %v124, 4294901760
    %v240 = vsub.f32 %v124, %v239
    %241 = vmatpush.msra.mxu0 %v240
    %v242 = vand.u32 %v115, 4294901760
    %v243 = vsub.f32 %v115, %v242
    %244 = vmatpush.msra.mxu0 %v243
    %v245 = vand.u32 %v106, 4294901760
    %v246 = vsub.f32 %v106, %v245
    %247 = vmatpush.msra.mxu0 %v246
    %v248 = vand.u32 %v97, 4294901760
    %v249 = vsub.f32 %v97, %v248
    %250 = vmatpush.msra.mxu0 %v249
    %v251 = vand.u32 %v88, 4294901760
    %v252 = vsub.f32 %v88, %v251
    %253 = vmatpush.msra.mxu0 %v252
    %v254 = vand.u32 %v79, 4294901760
    %v255 = vsub.f32 %v79, %v254
    %256 = vmatpush.msra.mxu0 %v255
    %v257 = vand.u32 %v70, 4294901760
    %v258 = vsub.f32 %v70, %v257
    %259 = vmatpush.msra.mxu0 %v258
    %v260 = vand.u32 %v61, 4294901760
    %v261 = vsub.f32 %v61, %v260
    %262 = vmatpush.msra.mxu0 %v261
    %v263 = vand.u32 %v135, 4294901760
    %v264 = vsub.f32 %v135, %v263
    %265 = vmatmul.f32.gmra.mxu0 %v264
    %v266 = vpop.f32.mrf.mxu0
    %v267 = vadd.f32 %v229, %v266
    %268 = vdwg.mxu0
    %269 = vmatpush.msra.mxu0 0.0
    %270 = vmatpush.msra.mxu0 0.0
    %271 = vmatpush.msra.mxu0 0.0
    %272 = vmatpush.msra.mxu0 0.0
    %273 = vmatpush.msra.mxu0 0.0
    %274 = vmatpush.msra.mxu0 0.0
    %275 = vmatpush.msra.mxu0 0.0
    %276 = vmatpush.msra.mxu0 0.0
    %v277 = vand.u32 %v124, 4294901760
    %278 = vmatpush.msra.mxu0 %v277
    %v279 = vand.u32 %v115, 4294901760
    %280 = vmatpush.msra.mxu0 %v279
    %v281 = vand.u32 %v106, 4294901760
    %282 = vmatpush.msra.mxu0 %v281
    %v283 = vand.u32 %v97, 4294901760
    %284 = vmatpush.msra.mxu0 %v283
    %v285 = vand.u32 %v88, 4294901760
    %286 = vmatpush.msra.mxu0 %v285
    %v287 = vand.u32 %v79, 4294901760
    %288 = vmatpush.msra.mxu0 %v287
    %v289 = vand.u32 %v70, 4294901760
    %290 = vmatpush.msra.mxu0 %v289
    %v291 = vand.u32 %v61, 4294901760
    %292 = vmatpush.msra.mxu0 %v291
    %v293 = vand.u32 %v135, 4294901760
    %v294 = vsub.f32 %v135, %v293
    %v295 = vand.u32 %v294, 4294901760
    %296 = vmatmul.f32.gmra.mxu0 %v295
    %v297 = vpop.f32.mrf.mxu0
    %v298 = vadd.f32 %v267, %v297
    %299 = vdwg.mxu0
    %300 = vmatpush.msra.mxu0 0.0
    %301 = vmatpush.msra.mxu0 0.0
    %302 = vmatpush.msra.mxu0 0.0
    %303 = vmatpush.msra.mxu0 0.0
    %304 = vmatpush.msra.mxu0 0.0
    %305 = vmatpush.msra.mxu0 0.0
    %306 = vmatpush.msra.mxu0 0.0
    %307 = vmatpush.msra.mxu0 0.0
    %v308 = vand.u32 %v124, 4294901760
    %v309 = vsub.f32 %v124, %v308
    %v310 = vand.u32 %v309, 4294901760
    %311 = vmatpush.msra.mxu0 %v310
    %v312 = vand.u32 %v115, 4294901760
    %v313 = vsub.f32 %v115, %v312
    %v314 = vand.u32 %v313, 4294901760
    %315 = vmatpush.msra.mxu0 %v314
    %v316 = vand.u32 %v106, 4294901760
    %v317 = vsub.f32 %v106, %v316
    %v318 = vand.u32 %v317, 4294901760
    %319 = vmatpush.msra.mxu0 %v318
    %v320 = vand.u32 %v97, 4294901760
    %v321 = vsub.f32 %v97, %v320
    %v322 = vand.u32 %v321, 4294901760
    %323 = vmatpush.msra.mxu0 %v322
    %v324 = vand.u32 %v88, 4294901760
    %v325 = vsub.f32 %v88, %v324
    %v326 = vand.u32 %v325, 4294901760
    %327 = vmatpush.msra.mxu0 %v326
    %v328 = vand.u32 %v79, 4294901760
    %v329 = vsub.f32 %v79, %v328
    %v330 = vand.u32 %v329, 4294901760
    %331 = vmatpush.msra.mxu0 %v330
    %v332 = vand.u32 %v70, 4294901760
    %v333 = vsub.f32 %v70, %v332
    %v334 = vand.u32 %v333, 4294901760
    %335 = vmatpush.msra.mxu0 %v334
    %v336 = vand.u32 %v61, 4294901760
    %v337 = vsub.f32 %v61, %v336
    %v338 = vand.u32 %v337, 4294901760
    %339 = vmatpush.msra.mxu0 %v338
    %v340 = vand.u32 %v135, 4294901760
    %341 = vmatmul.f32.gmra.mxu0 %v340
    %v342 = vpop.f32.mrf.mxu0
    %v343 = vadd.f32 %v298, %v342
    %344 = vdwg.mxu0
    %345 = vmatpush.msra.mxu0 0.0
    %346 = vmatpush.msra.mxu0 0.0
    %347 = vmatpush.msra.mxu0 0.0
    %348 = vmatpush.msra.mxu0 0.0
    %349 = vmatpush.msra.mxu0 0.0
    %350 = vmatpush.msra.mxu0 0.0
    %351 = vmatpush.msra.mxu0 0.0
    %352 = vmatpush.msra.mxu0 0.0
    %v353 = vand.u32 %v124, 4294901760
    %354 = vmatpush.msra.mxu0 %v353
    %v355 = vand.u32 %v115, 4294901760
    %356 = vmatpush.msra.mxu0 %v355
    %v357 = vand.u32 %v106, 4294901760
    %358 = vmatpush.msra.mxu0 %v357
    %v359 = vand.u32 %v97, 4294901760
    %360 = vmatpush.msra.mxu0 %v359
    %v361 = vand.u32 %v88, 4294901760
    %362 = vmatpush.msra.mxu0 %v361
    %v363 = vand.u32 %v79, 4294901760
    %364 = vmatpush.msra.mxu0 %v363
    %v365 = vand.u32 %v70, 4294901760
    %366 = vmatpush.msra.mxu0 %v365
    %v367 = vand.u32 %v61, 4294901760
    %368 = vmatpush.msra.mxu0 %v367
    %v369 = vand.u32 %v135, 4294901760
    %370 = vmatmul.f32.gmra.mxu0 %v369
    %v371 = vpop.f32.mrf.mxu0
    %v372 = vadd.f32 %v343, %v371
    %373 = vdwg.mxu0
    %374 = vmatpush.msra.mxu0 0.0
    %375 = vmatpush.msra.mxu0 0.0
    %376 = vmatpush.msra.mxu0 0.0
    %377 = vmatpush.msra.mxu0 0.0
    %378 = vmatpush.msra.mxu0 0.0
    %379 = vmatpush.msra.mxu0 0.0
    %380 = vmatpush.msra.mxu0 0.0
    %381 = vmatpush.msra.mxu0 0.0
    %v382 = vand.u32 %v125, 4294901760
    %383 = vmatpush.msra.mxu0 %v382
    %v384 = vand.u32 %v116, 4294901760
    %385 = vmatpush.msra.mxu0 %v384
    %v386 = vand.u32 %v107, 4294901760
    %387 = vmatpush.msra.mxu0 %v386
    %v388 = vand.u32 %v98, 4294901760
    %389 = vmatpush.msra.mxu0 %v388
    %v390 = vand.u32 %v89, 4294901760
    %391 = vmatpush.msra.mxu0 %v390
    %v392 = vand.u32 %v80, 4294901760
    %393 = vmatpush.msra.mxu0 %v392
    %v394 = vand.u32 %v71, 4294901760
    %395 = vmatpush.msra.mxu0 %v394
    %v396 = vand.u32 %v62, 4294901760
    %397 = vmatpush.msra.mxu0 %v396
    %v398 = vand.u32 %v135, 4294901760
    %v399 = vsub.f32 %v135, %v398
    %v400 = vand.u32 %v399, 4294901760
    %v401 = vsub.f32 %v399, %v400
    %v402 = vand.u32 %v401, 4294901760
    %403 = vmatmul.f32.gmra.mxu0 %v402
    %v404 = vpop.f32.mrf.mxu0
    %v405 = vadd.f32 0.0, %v404
    %406 = vdwg.mxu0
    %407 = vmatpush.msra.mxu0 0.0
    %408 = vmatpush.msra.mxu0 0.0
    %409 = vmatpush.msra.mxu0 0.0
    %410 = vmatpush.msra.mxu0 0.0
    %411 = vmatpush.msra.mxu0 0.0
    %412 = vmatpush.msra.mxu0 0.0
    %413 = vmatpush.msra.mxu0 0.0
    %414 = vmatpush.msra.mxu0 0.0
    %v415 = vand.u32 %v125, 4294901760
    %v416 = vsub.f32 %v125, %v415
    %v417 = vand.u32 %v416, 4294901760
    %v418 = vsub.f32 %v416, %v417
    %v419 = vand.u32 %v418, 4294901760
    %420 = vmatpush.msra.mxu0 %v419
    %v421 = vand.u32 %v116, 4294901760
    %v422 = vsub.f32 %v116, %v421
    %v423 = vand.u32 %v422, 4294901760
    %v424 = vsub.f32 %v422, %v423
    %v425 = vand.u32 %v424, 4294901760
    %426 = vmatpush.msra.mxu0 %v425
    %v427 = vand.u32 %v107, 4294901760
    %v428 = vsub.f32 %v107, %v427
    %v429 = vand.u32 %v428, 4294901760
    %v430 = vsub.f32 %v428, %v429
    %v431 = vand.u32 %v430, 4294901760
    %432 = vmatpush.msra.mxu0 %v431
    %v433 = vand.u32 %v98, 4294901760
    %v434 = vsub.f32 %v98, %v433
    %v435 = vand.u32 %v434, 4294901760
    %v436 = vsub.f32 %v434, %v435
    %v437 = vand.u32 %v436, 4294901760
    %438 = vmatpush.msra.mxu0 %v437
    %v439 = vand.u32 %v89, 4294901760
    %v440 = vsub.f32 %v89, %v439
    %v441 = vand.u32 %v440, 4294901760
    %v442 = vsub.f32 %v440, %v441
    %v443 = vand.u32 %v442, 4294901760
    %444 = vmatpush.msra.mxu0 %v443
    %v445 = vand.u32 %v80, 4294901760
    %v446 = vsub.f32 %v80, %v445
    %v447 = vand.u32 %v446, 4294901760
    %v448 = vsub.f32 %v446, %v447
    %v449 = vand.u32 %v448, 4294901760
    %450 = vmatpush.msra.mxu0 %v449
    %v451 = vand.u32 %v71, 4294901760
    %v452 = vsub.f32 %v71, %v451
    %v453 = vand.u32 %v452, 4294901760
    %v454 = vsub.f32 %v452, %v453
    %v455 = vand.u32 %v454, 4294901760
    %456 = vmatpush.msra.mxu0 %v455
    %v457 = vand.u32 %v62, 4294901760
    %v458 = vsub.f32 %v62, %v457
    %v459 = vand.u32 %v458, 4294901760
    %v460 = vsub.f32 %v458, %v459
    %v461 = vand.u32 %v460, 4294901760
    %462 = vmatpush.msra.mxu0 %v461
    %v463 = vand.u32 %v135, 4294901760
    %464 = vmatmul.f32.gmra.mxu0 %v463
    %v465 = vpop.f32.mrf.mxu0
    %v466 = vadd.f32 %v405, %v465
    %467 = vdwg.mxu0
    %468 = vmatpush.msra.mxu0 0.0
    %469 = vmatpush.msra.mxu0 0.0
    %470 = vmatpush.msra.mxu0 0.0
    %471 = vmatpush.msra.mxu0 0.0
    %472 = vmatpush.msra.mxu0 0.0
    %473 = vmatpush.msra.mxu0 0.0
    %474 = vmatpush.msra.mxu0 0.0
    %475 = vmatpush.msra.mxu0 0.0
    %v476 = vand.u32 %v125, 4294901760
    %v477 = vsub.f32 %v125, %v476
    %478 = vmatpush.msra.mxu0 %v477
    %v479 = vand.u32 %v116, 4294901760
    %v480 = vsub.f32 %v116, %v479
    %481 = vmatpush.msra.mxu0 %v480
    %v482 = vand.u32 %v107, 4294901760
    %v483 = vsub.f32 %v107, %v482
    %484 = vmatpush.msra.mxu0 %v483
    %v485 = vand.u32 %v98, 4294901760
    %v486 = vsub.f32 %v98, %v485
    %487 = vmatpush.msra.mxu0 %v486
    %v488 = vand.u32 %v89, 4294901760
    %v489 = vsub.f32 %v89, %v488
    %490 = vmatpush.msra.mxu0 %v489
    %v491 = vand.u32 %v80, 4294901760
    %v492 = vsub.f32 %v80, %v491
    %493 = vmatpush.msra.mxu0 %v492
    %v494 = vand.u32 %v71, 4294901760
    %v495 = vsub.f32 %v71, %v494
    %496 = vmatpush.msra.mxu0 %v495
    %v497 = vand.u32 %v62, 4294901760
    %v498 = vsub.f32 %v62, %v497
    %499 = vmatpush.msra.mxu0 %v498
    %v500 = vand.u32 %v135, 4294901760
    %v501 = vsub.f32 %v135, %v500
    %502 = vmatmul.f32.gmra.mxu0 %v501
    %v503 = vpop.f32.mrf.mxu0
    %v504 = vadd.f32 %v466, %v503
    %505 = vdwg.mxu0
    %506 = vmatpush.msra.mxu0 0.0
    %507 = vmatpush.msra.mxu0 0.0
    %508 = vmatpush.msra.mxu0 0.0
    %509 = vmatpush.msra.mxu0 0.0
    %510 = vmatpush.msra.mxu0 0.0
    %511 = vmatpush.msra.mxu0 0.0
    %512 = vmatpush.msra.mxu0 0.0
    %513 = vmatpush.msra.mxu0 0.0
    %v514 = vand.u32 %v125, 4294901760
    %515 = vmatpush.msra.mxu0 %v514
    %v516 = vand.u32 %v116, 4294901760
    %517 = vmatpush.msra.mxu0 %v516
    %v518 = vand.u32 %v107, 4294901760
    %519 = vmatpush.msra.mxu0 %v518
    %v520 = vand.u32 %v98, 4294901760
    %521 = vmatpush.msra.mxu0 %v520
    %v522 = vand.u32 %v89, 4294901760
    %523 = vmatpush.msra.mxu0 %v522
    %v524 = vand.u32 %v80, 4294901760
    %525 = vmatpush.msra.mxu0 %v524
    %v526 = vand.u32 %v71, 4294901760
    %527 = vmatpush.msra.mxu0 %v526
    %v528 = vand.u32 %v62, 4294901760
    %529 = vmatpush.msra.mxu0 %v528
    %v530 = vand.u32 %v135, 4294901760
    %v531 = vsub.f32 %v135, %v530
    %v532 = vand.u32 %v531, 4294901760
    %533 = vmatmul.f32.gmra.mxu0 %v532
    %v534 = vpop.f32.mrf.mxu0
    %v535 = vadd.f32 %v504, %v534
    %536 = vdwg.mxu0
    %537 = vmatpush.msra.mxu0 0.0
    %538 = vmatpush.msra.mxu0 0.0
    %539 = vmatpush.msra.mxu0 0.0
    %540 = vmatpush.msra.mxu0 0.0
    %541 = vmatpush.msra.mxu0 0.0
    %542 = vmatpush.msra.mxu0 0.0
    %543 = vmatpush.msra.mxu0 0.0
    %544 = vmatpush.msra.mxu0 0.0
    %v545 = vand.u32 %v125, 4294901760
    %v546 = vsub.f32 %v125, %v545
    %v547 = vand.u32 %v546, 4294901760
    %548 = vmatpush.msra.mxu0 %v547
    %v549 = vand.u32 %v116, 4294901760
    %v550 = vsub.f32 %v116, %v549
    %v551 = vand.u32 %v550, 4294901760
    %552 = vmatpush.msra.mxu0 %v551
    %v553 = vand.u32 %v107, 4294901760
    %v554 = vsub.f32 %v107, %v553
    %v555 = vand.u32 %v554, 4294901760
    %556 = vmatpush.msra.mxu0 %v555
    %v557 = vand.u32 %v98, 4294901760
    %v558 = vsub.f32 %v98, %v557
    %v559 = vand.u32 %v558, 4294901760
    %560 = vmatpush.msra.mxu0 %v559
    %v561 = vand.u32 %v89, 4294901760
    %v562 = vsub.f32 %v89, %v561
    %v563 = vand.u32 %v562, 4294901760
    %564 = vmatpush.msra.mxu0 %v563
    %v565 = vand.u32 %v80, 4294901760
    %v566 = vsub.f32 %v80, %v565
    %v567 = vand.u32 %v566, 4294901760
    %568 = vmatpush.msra.mxu0 %v567
    %v569 = vand.u32 %v71, 4294901760
    %v570 = vsub.f32 %v71, %v569
    %v571 = vand.u32 %v570, 4294901760
    %572 = vmatpush.msra.mxu0 %v571
    %v573 = vand.u32 %v62, 4294901760
    %v574 = vsub.f32 %v62, %v573
    %v575 = vand.u32 %v574, 4294901760
    %576 = vmatpush.msra.mxu0 %v575
    %v577 = vand.u32 %v135, 4294901760
    %578 = vmatmul.f32.gmra.mxu0 %v577
    %v579 = vpop.f32.mrf.mxu0
    %v580 = vadd.f32 %v535, %v579
    %581 = vdwg.mxu0
    %582 = vmatpush.msra.mxu0 0.0
    %583 = vmatpush.msra.mxu0 0.0
    %584 = vmatpush.msra.mxu0 0.0
    %585 = vmatpush.msra.mxu0 0.0
    %586 = vmatpush.msra.mxu0 0.0
    %587 = vmatpush.msra.mxu0 0.0
    %588 = vmatpush.msra.mxu0 0.0
    %589 = vmatpush.msra.mxu0 0.0
    %v590 = vand.u32 %v125, 4294901760
    %591 = vmatpush.msra.mxu0 %v590
    %v592 = vand.u32 %v116, 4294901760
    %593 = vmatpush.msra.mxu0 %v592
    %v594 = vand.u32 %v107, 4294901760
    %595 = vmatpush.msra.mxu0 %v594
    %v596 = vand.u32 %v98, 4294901760
    %597 = vmatpush.msra.mxu0 %v596
    %v598 = vand.u32 %v89, 4294901760
    %599 = vmatpush.msra.mxu0 %v598
    %v600 = vand.u32 %v80, 4294901760
    %601 = vmatpush.msra.mxu0 %v600
    %v602 = vand.u32 %v71, 4294901760
    %603 = vmatpush.msra.mxu0 %v602
    %v604 = vand.u32 %v62, 4294901760
    %605 = vmatpush.msra.mxu0 %v604
    %v606 = vand.u32 %v135, 4294901760
    %607 = vmatmul.f32.gmra.mxu0 %v606
    %v608 = vpop.f32.mrf.mxu0
    %v609 = vadd.f32 %v580, %v608
    %610 = vdwg.mxu0
    %611 = vmatpush.msra.mxu0 0.0
    %612 = vmatpush.msra.mxu0 0.0
    %613 = vmatpush.msra.mxu0 0.0
    %614 = vmatpush.msra.mxu0 0.0
    %615 = vmatpush.msra.mxu0 0.0
    %616 = vmatpush.msra.mxu0 0.0
    %617 = vmatpush.msra.mxu0 0.0
    %618 = vmatpush.msra.mxu0 0.0
    %v619 = vand.u32 %v126, 4294901760
    %620 = vmatpush.msra.mxu0 %v619
    %v621 = vand.u32 %v117, 4294901760
    %622 = vmatpush.msra.mxu0 %v621
    %v623 = vand.u32 %v108, 4294901760
    %624 = vmatpush.msra.mxu0 %v623
    %v625 = vand.u32 %v99, 4294901760
    %626 = vmatpush.msra.mxu0 %v625
    %v627 = vand.u32 %v90, 4294901760
    %628 = vmatpush.msra.mxu0 %v627
    %v629 = vand.u32 %v81, 4294901760
    %630 = vmatpush.msra.mxu0 %v629
    %v631 = vand.u32 %v72, 4294901760
    %632 = vmatpush.msra.mxu0 %v631
    %v633 = vand.u32 %v63, 4294901760
    %634 = vmatpush.msra.mxu0 %v633
    %v635 = vand.u32 %v135, 4294901760
    %v636 = vsub.f32 %v135, %v635
    %v637 = vand.u32 %v636, 4294901760
    %v638 = vsub.f32 %v636, %v637
    %v639 = vand.u32 %v638, 4294901760
    %640 = vmatmul.f32.gmra.mxu0 %v639
    %v641 = vpop.f32.mrf.mxu0
    %v642 = vadd.f32 0.0, %v641
    %643 = vdwg.mxu0
    %644 = vmatpush.msra.mxu0 0.0
    %645 = vmatpush.msra.mxu0 0.0
    %646 = vmatpush.msra.mxu0 0.0
    %647 = vmatpush.msra.mxu0 0.0
    %648 = vmatpush.msra.mxu0 0.0
    %649 = vmatpush.msra.mxu0 0.0
    %650 = vmatpush.msra.mxu0 0.0
    %651 = vmatpush.msra.mxu0 0.0
    %v652 = vand.u32 %v126, 4294901760
    %v653 = vsub.f32 %v126, %v652
    %v654 = vand.u32 %v653, 4294901760
    %v655 = vsub.f32 %v653, %v654
    %v656 = vand.u32 %v655, 4294901760
    %657 = vmatpush.msra.mxu0 %v656
    %v658 = vand.u32 %v117, 4294901760
    %v659 = vsub.f32 %v117, %v658
    %v660 = vand.u32 %v659, 4294901760
    %v661 = vsub.f32 %v659, %v660
    %v662 = vand.u32 %v661, 4294901760
    %663 = vmatpush.msra.mxu0 %v662
    %v664 = vand.u32 %v108, 4294901760
    %v665 = vsub.f32 %v108, %v664
    %v666 = vand.u32 %v665, 4294901760
    %v667 = vsub.f32 %v665, %v666
    %v668 = vand.u32 %v667, 4294901760
    %669 = vmatpush.msra.mxu0 %v668
    %v670 = vand.u32 %v99, 4294901760
    %v671 = vsub.f32 %v99, %v670
    %v672 = vand.u32 %v671, 4294901760
    %v673 = vsub.f32 %v671, %v672
    %v674 = vand.u32 %v673, 4294901760
    %675 = vmatpush.msra.mxu0 %v674
    %v676 = vand.u32 %v90, 4294901760
    %v677 = vsub.f32 %v90, %v676
    %v678 = vand.u32 %v677, 4294901760
    %v679 = vsub.f32 %v677, %v678
    %v680 = vand.u32 %v679, 4294901760
    %681 = vmatpush.msra.mxu0 %v680
    %v682 = vand.u32 %v81, 4294901760
    %v683 = vsub.f32 %v81, %v682
    %v684 = vand.u32 %v683, 4294901760
    %v685 = vsub.f32 %v683, %v684
    %v686 = vand.u32 %v685, 4294901760
    %687 = vmatpush.msra.mxu0 %v686
    %v688 = vand.u32 %v72, 4294901760
    %v689 = vsub.f32 %v72, %v688
    %v690 = vand.u32 %v689, 4294901760
    %v691 = vsub.f32 %v689, %v690
    %v692 = vand.u32 %v691, 4294901760
    %693 = vmatpush.msra.mxu0 %v692
    %v694 = vand.u32 %v63, 4294901760
    %v695 = vsub.f32 %v63, %v694
    %v696 = vand.u32 %v695, 4294901760
    %v697 = vsub.f32 %v695, %v696
    %v698 = vand.u32 %v697, 4294901760
    %699 = vmatpush.msra.mxu0 %v698
    %v700 = vand.u32 %v135, 4294901760
    %701 = vmatmul.f32.gmra.mxu0 %v700
    %v702 = vpop.f32.mrf.mxu0
    %v703 = vadd.f32 %v642, %v702
    %704 = vdwg.mxu0
    %705 = vmatpush.msra.mxu0 0.0
    %706 = vmatpush.msra.mxu0 0.0
    %707 = vmatpush.msra.mxu0 0.0
    %708 = vmatpush.msra.mxu0 0.0
    %709 = vmatpush.msra.mxu0 0.0
    %710 = vmatpush.msra.mxu0 0.0
    %711 = vmatpush.msra.mxu0 0.0
    %712 = vmatpush.msra.mxu0 0.0
    %v713 = vand.u32 %v126, 4294901760
    %v714 = vsub.f32 %v126, %v713
    %715 = vmatpush.msra.mxu0 %v714
    %v716 = vand.u32 %v117, 4294901760
    %v717 = vsub.f32 %v117, %v716
    %718 = vmatpush.msra.mxu0 %v717
    %v719 = vand.u32 %v108, 4294901760
    %v720 = vsub.f32 %v108, %v719
    %721 = vmatpush.msra.mxu0 %v720
    %v722 = vand.u32 %v99, 4294901760
    %v723 = vsub.f32 %v99, %v722
    %724 = vmatpush.msra.mxu0 %v723
    %v725 = vand.u32 %v90, 4294901760
    %v726 = vsub.f32 %v90, %v725
    %727 = vmatpush.msra.mxu0 %v726
    %v728 = vand.u32 %v81, 4294901760
    %v729 = vsub.f32 %v81, %v728
    %730 = vmatpush.msra.mxu0 %v729
    %v731 = vand.u32 %v72, 4294901760
    %v732 = vsub.f32 %v72, %v731
    %733 = vmatpush.msra.mxu0 %v732
    %v734 = vand.u32 %v63, 4294901760
    %v735 = vsub.f32 %v63, %v734
    %736 = vmatpush.msra.mxu0 %v735
    %v737 = vand.u32 %v135, 4294901760
    %v738 = vsub.f32 %v135, %v737
    %739 = vmatmul.f32.gmra.mxu0 %v738
    %v740 = vpop.f32.mrf.mxu0
    %v741 = vadd.f32 %v703, %v740
    %742 = vdwg.mxu0
    %743 = vmatpush.msra.mxu0 0.0
    %744 = vmatpush.msra.mxu0 0.0
    %745 = vmatpush.msra.mxu0 0.0
    %746 = vmatpush.msra.mxu0 0.0
    %747 = vmatpush.msra.mxu0 0.0
    %748 = vmatpush.msra.mxu0 0.0
    %749 = vmatpush.msra.mxu0 0.0
    %750 = vmatpush.msra.mxu0 0.0
    %v751 = vand.u32 %v126, 4294901760
    %752 = vmatpush.msra.mxu0 %v751
    %v753 = vand.u32 %v117, 4294901760
    %754 = vmatpush.msra.mxu0 %v753
    %v755 = vand.u32 %v108, 4294901760
    %756 = vmatpush.msra.mxu0 %v755
    %v757 = vand.u32 %v99, 4294901760
    %758 = vmatpush.msra.mxu0 %v757
    %v759 = vand.u32 %v90, 4294901760
    %760 = vmatpush.msra.mxu0 %v759
    %v761 = vand.u32 %v81, 4294901760
    %762 = vmatpush.msra.mxu0 %v761
    %v763 = vand.u32 %v72, 4294901760
    %764 = vmatpush.msra.mxu0 %v763
    %v765 = vand.u32 %v63, 4294901760
    %766 = vmatpush.msra.mxu0 %v765
    %v767 = vand.u32 %v135, 4294901760
    %v768 = vsub.f32 %v135, %v767
    %v769 = vand.u32 %v768, 4294901760
    %770 = vmatmul.f32.gmra.mxu0 %v769
    %v771 = vpop.f32.mrf.mxu0
    %v772 = vadd.f32 %v741, %v771
    %773 = vdwg.mxu0
    %774 = vmatpush.msra.mxu0 0.0
    %775 = vmatpush.msra.mxu0 0.0
    %776 = vmatpush.msra.mxu0 0.0
    %777 = vmatpush.msra.mxu0 0.0
    %778 = vmatpush.msra.mxu0 0.0
    %779 = vmatpush.msra.mxu0 0.0
    %780 = vmatpush.msra.mxu0 0.0
    %781 = vmatpush.msra.mxu0 0.0
    %v782 = vand.u32 %v126, 4294901760
    %v783 = vsub.f32 %v126, %v782
    %v784 = vand.u32 %v783, 4294901760
    %785 = vmatpush.msra.mxu0 %v784
    %v786 = vand.u32 %v117, 4294901760
    %v787 = vsub.f32 %v117, %v786
    %v788 = vand.u32 %v787, 4294901760
    %789 = vmatpush.msra.mxu0 %v788
    %v790 = vand.u32 %v108, 4294901760
    %v791 = vsub.f32 %v108, %v790
    %v792 = vand.u32 %v791, 4294901760
    %793 = vmatpush.msra.mxu0 %v792
    %v794 = vand.u32 %v99, 4294901760
    %v795 = vsub.f32 %v99, %v794
    %v796 = vand.u32 %v795, 4294901760
    %797 = vmatpush.msra.mxu0 %v796
    %v798 = vand.u32 %v90, 4294901760
    %v799 = vsub.f32 %v90, %v798
    %v800 = vand.u32 %v799, 4294901760
    %801 = vmatpush.msra.mxu0 %v800
    %v802 = vand.u32 %v81, 4294901760
    %v803 = vsub.f32 %v81, %v802
    %v804 = vand.u32 %v803, 4294901760
    %805 = vmatpush.msra.mxu0 %v804
    %v806 = vand.u32 %v72, 4294901760
    %v807 = vsub.f32 %v72, %v806
    %v808 = vand.u32 %v807, 4294901760
    %809 = vmatpush.msra.mxu0 %v808
    %v810 = vand.u32 %v63, 4294901760
    %v811 = vsub.f32 %v63, %v810
    %v812 = vand.u32 %v811, 4294901760
    %813 = vmatpush.msra.mxu0 %v812
    %v814 = vand.u32 %v135, 4294901760
    %815 = vmatmul.f32.gmra.mxu0 %v814
    %v816 = vpop.f32.mrf.mxu0
    %v817 = vadd.f32 %v772, %v816
    %818 = vdwg.mxu0
    %819 = vmatpush.msra.mxu0 0.0
    %820 = vmatpush.msra.mxu0 0.0
    %821 = vmatpush.msra.mxu0 0.0
    %822 = vmatpush.msra.mxu0 0.0
    %823 = vmatpush.msra.mxu0 0.0
    %824 = vmatpush.msra.mxu0 0.0
    %825 = vmatpush.msra.mxu0 0.0
    %826 = vmatpush.msra.mxu0 0.0
    %v827 = vand.u32 %v126, 4294901760
    %828 = vmatpush.msra.mxu0 %v827
    %v829 = vand.u32 %v117, 4294901760
    %830 = vmatpush.msra.mxu0 %v829
    %v831 = vand.u32 %v108, 4294901760
    %832 = vmatpush.msra.mxu0 %v831
    %v833 = vand.u32 %v99, 4294901760
    %834 = vmatpush.msra.mxu0 %v833
    %v835 = vand.u32 %v90, 4294901760
    %836 = vmatpush.msra.mxu0 %v835
    %v837 = vand.u32 %v81, 4294901760
    %838 = vmatpush.msra.mxu0 %v837
    %v839 = vand.u32 %v72, 4294901760
    %840 = vmatpush.msra.mxu0 %v839
    %v841 = vand.u32 %v63, 4294901760
    %842 = vmatpush.msra.mxu0 %v841
    %v843 = vand.u32 %v135, 4294901760
    %844 = vmatmul.f32.gmra.mxu0 %v843
    %v845 = vpop.f32.mrf.mxu0
    %v846 = vadd.f32 %v817, %v845
    %847 = vdwg.mxu0
    %848 = vmatpush.msra.mxu0 0.0
    %849 = vmatpush.msra.mxu0 0.0
    %850 = vmatpush.msra.mxu0 0.0
    %851 = vmatpush.msra.mxu0 0.0
    %852 = vmatpush.msra.mxu0 0.0
    %853 = vmatpush.msra.mxu0 0.0
    %854 = vmatpush.msra.mxu0 0.0
    %855 = vmatpush.msra.mxu0 0.0
    %v856 = vand.u32 %v127, 4294901760
    %857 = vmatpush.msra.mxu0 %v856
    %v858 = vand.u32 %v118, 4294901760
    %859 = vmatpush.msra.mxu0 %v858
    %v860 = vand.u32 %v109, 4294901760
    %861 = vmatpush.msra.mxu0 %v860
    %v862 = vand.u32 %v100, 4294901760
    %863 = vmatpush.msra.mxu0 %v862
    %v864 = vand.u32 %v91, 4294901760
    %865 = vmatpush.msra.mxu0 %v864
    %v866 = vand.u32 %v82, 4294901760
    %867 = vmatpush.msra.mxu0 %v866
    %v868 = vand.u32 %v73, 4294901760
    %869 = vmatpush.msra.mxu0 %v868
    %v870 = vand.u32 %v64, 4294901760
    %871 = vmatpush.msra.mxu0 %v870
    %v872 = vand.u32 %v135, 4294901760
    %v873 = vsub.f32 %v135, %v872
    %v874 = vand.u32 %v873, 4294901760
    %v875 = vsub.f32 %v873, %v874
    %v876 = vand.u32 %v875, 4294901760
    %877 = vmatmul.f32.gmra.mxu0 %v876
    %v878 = vpop.f32.mrf.mxu0
    %v879 = vadd.f32 0.0, %v878
    %880 = vdwg.mxu0
    %881 = vmatpush.msra.mxu0 0.0
    %882 = vmatpush.msra.mxu0 0.0
    %883 = vmatpush.msra.mxu0 0.0
    %884 = vmatpush.msra.mxu0 0.0
    %885 = vmatpush.msra.mxu0 0.0
    %886 = vmatpush.msra.mxu0 0.0
    %887 = vmatpush.msra.mxu0 0.0
    %888 = vmatpush.msra.mxu0 0.0
    %v889 = vand.u32 %v127, 4294901760
    %v890 = vsub.f32 %v127, %v889
    %v891 = vand.u32 %v890, 4294901760
    %v892 = vsub.f32 %v890, %v891
    %v893 = vand.u32 %v892, 4294901760
    %894 = vmatpush.msra.mxu0 %v893
    %v895 = vand.u32 %v118, 4294901760
    %v896 = vsub.f32 %v118, %v895
    %v897 = vand.u32 %v896, 4294901760
    %v898 = vsub.f32 %v896, %v897
    %v899 = vand.u32 %v898, 4294901760
    %900 = vmatpush.msra.mxu0 %v899
    %v901 = vand.u32 %v109, 4294901760
    %v902 = vsub.f32 %v109, %v901
    %v903 = vand.u32 %v902, 4294901760
    %v904 = vsub.f32 %v902, %v903
    %v905 = vand.u32 %v904, 4294901760
    %906 = vmatpush.msra.mxu0 %v905
    %v907 = vand.u32 %v100, 4294901760
    %v908 = vsub.f32 %v100, %v907
    %v909 = vand.u32 %v908, 4294901760
    %v910 = vsub.f32 %v908, %v909
    %v911 = vand.u32 %v910, 4294901760
    %912 = vmatpush.msra.mxu0 %v911
    %v913 = vand.u32 %v91, 4294901760
    %v914 = vsub.f32 %v91, %v913
    %v915 = vand.u32 %v914, 4294901760
    %v916 = vsub.f32 %v914, %v915
    %v917 = vand.u32 %v916, 4294901760
    %918 = vmatpush.msra.mxu0 %v917
    %v919 = vand.u32 %v82, 4294901760
    %v920 = vsub.f32 %v82, %v919
    %v921 = vand.u32 %v920, 4294901760
    %v922 = vsub.f32 %v920, %v921
    %v923 = vand.u32 %v922, 4294901760
    %924 = vmatpush.msra.mxu0 %v923
    %v925 = vand.u32 %v73, 4294901760
    %v926 = vsub.f32 %v73, %v925
    %v927 = vand.u32 %v926, 4294901760
    %v928 = vsub.f32 %v926, %v927
    %v929 = vand.u32 %v928, 4294901760
    %930 = vmatpush.msra.mxu0 %v929
    %v931 = vand.u32 %v64, 4294901760
    %v932 = vsub.f32 %v64, %v931
    %v933 = vand.u32 %v932, 4294901760
    %v934 = vsub.f32 %v932, %v933
    %v935 = vand.u32 %v934, 4294901760
    %936 = vmatpush.msra.mxu0 %v935
    %v937 = vand.u32 %v135, 4294901760
    %938 = vmatmul.f32.gmra.mxu0 %v937
    %v939 = vpop.f32.mrf.mxu0
    %v940 = vadd.f32 %v879, %v939
    %941 = vdwg.mxu0
    %942 = vmatpush.msra.mxu0 0.0
    %943 = vmatpush.msra.mxu0 0.0
    %944 = vmatpush.msra.mxu0 0.0
    %945 = vmatpush.msra.mxu0 0.0
    %946 = vmatpush.msra.mxu0 0.0
    %947 = vmatpush.msra.mxu0 0.0
    %948 = vmatpush.msra.mxu0 0.0
    %949 = vmatpush.msra.mxu0 0.0
    %v950 = vand.u32 %v127, 4294901760
    %v951 = vsub.f32 %v127, %v950
    %952 = vmatpush.msra.mxu0 %v951
    %v953 = vand.u32 %v118, 4294901760
    %v954 = vsub.f32 %v118, %v953
    %955 = vmatpush.msra.mxu0 %v954
    %v956 = vand.u32 %v109, 4294901760
    %v957 = vsub.f32 %v109, %v956
    %958 = vmatpush.msra.mxu0 %v957
    %v959 = vand.u32 %v100, 4294901760
    %v960 = vsub.f32 %v100, %v959
    %961 = vmatpush.msra.mxu0 %v960
    %v962 = vand.u32 %v91, 4294901760
    %v963 = vsub.f32 %v91, %v962
    %964 = vmatpush.msra.mxu0 %v963
    %v965 = vand.u32 %v82, 4294901760
    %v966 = vsub.f32 %v82, %v965
    %967 = vmatpush.msra.mxu0 %v966
    %v968 = vand.u32 %v73, 4294901760
    %v969 = vsub.f32 %v73, %v968
    %970 = vmatpush.msra.mxu0 %v969
    %v971 = vand.u32 %v64, 4294901760
    %v972 = vsub.f32 %v64, %v971
    %973 = vmatpush.msra.mxu0 %v972
    %v974 = vand.u32 %v135, 4294901760
    %v975 = vsub.f32 %v135, %v974
    %976 = vmatmul.f32.gmra.mxu0 %v975
    %v977 = vpop.f32.mrf.mxu0
    %v978 = vadd.f32 %v940, %v977
    %979 = vdwg.mxu0
    %980 = vmatpush.msra.mxu0 0.0
    %981 = vmatpush.msra.mxu0 0.0
    %982 = vmatpush.msra.mxu0 0.0
    %983 = vmatpush.msra.mxu0 0.0
    %984 = vmatpush.msra.mxu0 0.0
    %985 = vmatpush.msra.mxu0 0.0
    %986 = vmatpush.msra.mxu0 0.0
    %987 = vmatpush.msra.mxu0 0.0
    %v988 = vand.u32 %v127, 4294901760
    %989 = vmatpush.msra.mxu0 %v988
    %v990 = vand.u32 %v118, 4294901760
    %991 = vmatpush.msra.mxu0 %v990
    %v992 = vand.u32 %v109, 4294901760
    %993 = vmatpush.msra.mxu0 %v992
    %v994 = vand.u32 %v100, 4294901760
    %995 = vmatpush.msra.mxu0 %v994
    %v996 = vand.u32 %v91, 4294901760
    %997 = vmatpush.msra.mxu0 %v996
    %v998 = vand.u32 %v82, 4294901760
    %999 = vmatpush.msra.mxu0 %v998
    %v1000 = vand.u32 %v73, 4294901760
    %1001 = vmatpush.msra.mxu0 %v1000
    %v1002 = vand.u32 %v64, 4294901760
    %1003 = vmatpush.msra.mxu0 %v1002
    %v1004 = vand.u32 %v135, 4294901760
    %v1005 = vsub.f32 %v135, %v1004
    %v1006 = vand.u32 %v1005, 4294901760
    %1007 = vmatmul.f32.gmra.mxu0 %v1006
    %v1008 = vpop.f32.mrf.mxu0
    %v1009 = vadd.f32 %v978, %v1008
    %1010 = vdwg.mxu0
    %1011 = vmatpush.msra.mxu0 0.0
    %1012 = vmatpush.msra.mxu0 0.0
    %1013 = vmatpush.msra.mxu0 0.0
    %1014 = vmatpush.msra.mxu0 0.0
    %1015 = vmatpush.msra.mxu0 0.0
    %1016 = vmatpush.msra.mxu0 0.0
    %1017 = vmatpush.msra.mxu0 0.0
    %1018 = vmatpush.msra.mxu0 0.0
    %v1019 = vand.u32 %v127, 4294901760
    %v1020 = vsub.f32 %v127, %v1019
    %v1021 = vand.u32 %v1020, 4294901760
    %1022 = vmatpush.msra.mxu0 %v1021
    %v1023 = vand.u32 %v118, 4294901760
    %v1024 = vsub.f32 %v118, %v1023
    %v1025 = vand.u32 %v1024, 4294901760
    %1026 = vmatpush.msra.mxu0 %v1025
    %v1027 = vand.u32 %v109, 4294901760
    %v1028 = vsub.f32 %v109, %v1027
    %v1029 = vand.u32 %v1028, 4294901760
    %1030 = vmatpush.msra.mxu0 %v1029
    %v1031 = vand.u32 %v100, 4294901760
    %v1032 = vsub.f32 %v100, %v1031
    %v1033 = vand.u32 %v1032, 4294901760
    %1034 = vmatpush.msra.mxu0 %v1033
    %v1035 = vand.u32 %v91, 4294901760
    %v1036 = vsub.f32 %v91, %v1035
    %v1037 = vand.u32 %v1036, 4294901760
    %1038 = vmatpush.msra.mxu0 %v1037
    %v1039 = vand.u32 %v82, 4294901760
    %v1040 = vsub.f32 %v82, %v1039
    %v1041 = vand.u32 %v1040, 4294901760
    %1042 = vmatpush.msra.mxu0 %v1041
    %v1043 = vand.u32 %v73, 4294901760
    %v1044 = vsub.f32 %v73, %v1043
    %v1045 = vand.u32 %v1044, 4294901760
    %1046 = vmatpush.msra.mxu0 %v1045
    %v1047 = vand.u32 %v64, 4294901760
    %v1048 = vsub.f32 %v64, %v1047
    %v1049 = vand.u32 %v1048, 4294901760
    %1050 = vmatpush.msra.mxu0 %v1049
    %v1051 = vand.u32 %v135, 4294901760
    %1052 = vmatmul.f32.gmra.mxu0 %v1051
    %v1053 = vpop.f32.mrf.mxu0
    %v1054 = vadd.f32 %v1009, %v1053
    %1055 = vdwg.mxu0
    %1056 = vmatpush.msra.mxu0 0.0
    %1057 = vmatpush.msra.mxu0 0.0
    %1058 = vmatpush.msra.mxu0 0.0
    %1059 = vmatpush.msra.mxu0 0.0
    %1060 = vmatpush.msra.mxu0 0.0
    %1061 = vmatpush.msra.mxu0 0.0
    %1062 = vmatpush.msra.mxu0 0.0
    %1063 = vmatpush.msra.mxu0 0.0
    %v1064 = vand.u32 %v127, 4294901760
    %1065 = vmatpush.msra.mxu0 %v1064
    %v1066 = vand.u32 %v118, 4294901760
    %1067 = vmatpush.msra.mxu0 %v1066
    %v1068 = vand.u32 %v109, 4294901760
    %1069 = vmatpush.msra.mxu0 %v1068
    %v1070 = vand.u32 %v100, 4294901760
    %1071 = vmatpush.msra.mxu0 %v1070
    %v1072 = vand.u32 %v91, 4294901760
    %1073 = vmatpush.msra.mxu0 %v1072
    %v1074 = vand.u32 %v82, 4294901760
    %1075 = vmatpush.msra.mxu0 %v1074
    %v1076 = vand.u32 %v73, 4294901760
    %1077 = vmatpush.msra.mxu0 %v1076
    %v1078 = vand.u32 %v64, 4294901760
    %1079 = vmatpush.msra.mxu0 %v1078
    %v1080 = vand.u32 %v135, 4294901760
    %1081 = vmatmul.f32.gmra.mxu0 %v1080
    %v1082 = vpop.f32.mrf.mxu0
    %v1083 = vadd.f32 %v1054, %v1082
    %1084 = vdwg.mxu0
    %1085 = vmatpush.msra.mxu0 0.0
    %1086 = vmatpush.msra.mxu0 0.0
    %1087 = vmatpush.msra.mxu0 0.0
    %1088 = vmatpush.msra.mxu0 0.0
    %1089 = vmatpush.msra.mxu0 0.0
    %1090 = vmatpush.msra.mxu0 0.0
    %1091 = vmatpush.msra.mxu0 0.0
    %1092 = vmatpush.msra.mxu0 0.0
    %v1093 = vand.u32 %v128, 4294901760
    %1094 = vmatpush.msra.mxu0 %v1093
    %v1095 = vand.u32 %v119, 4294901760
    %1096 = vmatpush.msra.mxu0 %v1095
    %v1097 = vand.u32 %v110, 4294901760
    %1098 = vmatpush.msra.mxu0 %v1097
    %v1099 = vand.u32 %v101, 4294901760
    %1100 = vmatpush.msra.mxu0 %v1099
    %v1101 = vand.u32 %v92, 4294901760
    %1102 = vmatpush.msra.mxu0 %v1101
    %v1103 = vand.u32 %v83, 4294901760
    %1104 = vmatpush.msra.mxu0 %v1103
    %v1105 = vand.u32 %v74, 4294901760
    %1106 = vmatpush.msra.mxu0 %v1105
    %v1107 = vand.u32 %v65, 4294901760
    %1108 = vmatpush.msra.mxu0 %v1107
    %v1109 = vand.u32 %v135, 4294901760
    %v1110 = vsub.f32 %v135, %v1109
    %v1111 = vand.u32 %v1110, 4294901760
    %v1112 = vsub.f32 %v1110, %v1111
    %v1113 = vand.u32 %v1112, 4294901760
    %1114 = vmatmul.f32.gmra.mxu0 %v1113
    %v1115 = vpop.f32.mrf.mxu0
    %v1116 = vadd.f32 0.0, %v1115
    %1117 = vdwg.mxu0
    %1118 = vmatpush.msra.mxu0 0.0
    %1119 = vmatpush.msra.mxu0 0.0
    %1120 = vmatpush.msra.mxu0 0.0
    %1121 = vmatpush.msra.mxu0 0.0
    %1122 = vmatpush.msra.mxu0 0.0
    %1123 = vmatpush.msra.mxu0 0.0
    %1124 = vmatpush.msra.mxu0 0.0
    %1125 = vmatpush.msra.mxu0 0.0
    %v1126 = vand.u32 %v128, 4294901760
    %v1127 = vsub.f32 %v128, %v1126
    %v1128 = vand.u32 %v1127, 4294901760
    %v1129 = vsub.f32 %v1127, %v1128
    %v1130 = vand.u32 %v1129, 4294901760
    %1131 = vmatpush.msra.mxu0 %v1130
    %v1132 = vand.u32 %v119, 4294901760
    %v1133 = vsub.f32 %v119, %v1132
    %v1134 = vand.u32 %v1133, 4294901760
    %v1135 = vsub.f32 %v1133, %v1134
    %v1136 = vand.u32 %v1135, 4294901760
    %1137 = vmatpush.msra.mxu0 %v1136
    %v1138 = vand.u32 %v110, 4294901760
    %v1139 = vsub.f32 %v110, %v1138
    %v1140 = vand.u32 %v1139, 4294901760
    %v1141 = vsub.f32 %v1139, %v1140
    %v1142 = vand.u32 %v1141, 4294901760
    %1143 = vmatpush.msra.mxu0 %v1142
    %v1144 = vand.u32 %v101, 4294901760
    %v1145 = vsub.f32 %v101, %v1144
    %v1146 = vand.u32 %v1145, 4294901760
    %v1147 = vsub.f32 %v1145, %v1146
    %v1148 = vand.u32 %v1147, 4294901760
    %1149 = vmatpush.msra.mxu0 %v1148
    %v1150 = vand.u32 %v92, 4294901760
    %v1151 = vsub.f32 %v92, %v1150
    %v1152 = vand.u32 %v1151, 4294901760
    %v1153 = vsub.f32 %v1151, %v1152
    %v1154 = vand.u32 %v1153, 4294901760
    %1155 = vmatpush.msra.mxu0 %v1154
    %v1156 = vand.u32 %v83, 4294901760
    %v1157 = vsub.f32 %v83, %v1156
    %v1158 = vand.u32 %v1157, 4294901760
    %v1159 = vsub.f32 %v1157, %v1158
    %v1160 = vand.u32 %v1159, 4294901760
    %1161 = vmatpush.msra.mxu0 %v1160
    %v1162 = vand.u32 %v74, 4294901760
    %v1163 = vsub.f32 %v74, %v1162
    %v1164 = vand.u32 %v1163, 4294901760
    %v1165 = vsub.f32 %v1163, %v1164
    %v1166 = vand.u32 %v1165, 4294901760
    %1167 = vmatpush.msra.mxu0 %v1166
    %v1168 = vand.u32 %v65, 4294901760
    %v1169 = vsub.f32 %v65, %v1168
    %v1170 = vand.u32 %v1169, 4294901760
    %v1171 = vsub.f32 %v1169, %v1170
    %v1172 = vand.u32 %v1171, 4294901760
    %1173 = vmatpush.msra.mxu0 %v1172
    %v1174 = vand.u32 %v135, 4294901760
    %1175 = vmatmul.f32.gmra.mxu0 %v1174
    %v1176 = vpop.f32.mrf.mxu0
    %v1177 = vadd.f32 %v1116, %v1176
    %1178 = vdwg.mxu0
    %1179 = vmatpush.msra.mxu0 0.0
    %1180 = vmatpush.msra.mxu0 0.0
    %1181 = vmatpush.msra.mxu0 0.0
    %1182 = vmatpush.msra.mxu0 0.0
    %1183 = vmatpush.msra.mxu0 0.0
    %1184 = vmatpush.msra.mxu0 0.0
    %1185 = vmatpush.msra.mxu0 0.0
    %1186 = vmatpush.msra.mxu0 0.0
    %v1187 = vand.u32 %v128, 4294901760
    %v1188 = vsub.f32 %v128, %v1187
    %1189 = vmatpush.msra.mxu0 %v1188
    %v1190 = vand.u32 %v119, 4294901760
    %v1191 = vsub.f32 %v119, %v1190
    %1192 = vmatpush.msra.mxu0 %v1191
    %v1193 = vand.u32 %v110, 4294901760
    %v1194 = vsub.f32 %v110, %v1193
    %1195 = vmatpush.msra.mxu0 %v1194
    %v1196 = vand.u32 %v101, 4294901760
    %v1197 = vsub.f32 %v101, %v1196
    %1198 = vmatpush.msra.mxu0 %v1197
    %v1199 = vand.u32 %v92, 4294901760
    %v1200 = vsub.f32 %v92, %v1199
    %1201 = vmatpush.msra.mxu0 %v1200
    %v1202 = vand.u32 %v83, 4294901760
    %v1203 = vsub.f32 %v83, %v1202
    %1204 = vmatpush.msra.mxu0 %v1203
    %v1205 = vand.u32 %v74, 4294901760
    %v1206 = vsub.f32 %v74, %v1205
    %1207 = vmatpush.msra.mxu0 %v1206
    %v1208 = vand.u32 %v65, 4294901760
    %v1209 = vsub.f32 %v65, %v1208
    %1210 = vmatpush.msra.mxu0 %v1209
    %v1211 = vand.u32 %v135, 4294901760
    %v1212 = vsub.f32 %v135, %v1211
    %1213 = vmatmul.f32.gmra.mxu0 %v1212
    %v1214 = vpop.f32.mrf.mxu0
    %v1215 = vadd.f32 %v1177, %v1214
    %1216 = vdwg.mxu0
    %1217 = vmatpush.msra.mxu0 0.0
    %1218 = vmatpush.msra.mxu0 0.0
    %1219 = vmatpush.msra.mxu0 0.0
    %1220 = vmatpush.msra.mxu0 0.0
    %1221 = vmatpush.msra.mxu0 0.0
    %1222 = vmatpush.msra.mxu0 0.0
    %1223 = vmatpush.msra.mxu0 0.0
    %1224 = vmatpush.msra.mxu0 0.0
    %v1225 = vand.u32 %v128, 4294901760
    %1226 = vmatpush.msra.mxu0 %v1225
    %v1227 = vand.u32 %v119, 4294901760
    %1228 = vmatpush.msra.mxu0 %v1227
    %v1229 = vand.u32 %v110, 4294901760
    %1230 = vmatpush.msra.mxu0 %v1229
    %v1231 = vand.u32 %v101, 4294901760
    %1232 = vmatpush.msra.mxu0 %v1231
    %v1233 = vand.u32 %v92, 4294901760
    %1234 = vmatpush.msra.mxu0 %v1233
    %v1235 = vand.u32 %v83, 4294901760
    %1236 = vmatpush.msra.mxu0 %v1235
    %v1237 = vand.u32 %v74, 4294901760
    %1238 = vmatpush.msra.mxu0 %v1237
    %v1239 = vand.u32 %v65, 4294901760
    %1240 = vmatpush.msra.mxu0 %v1239
    %v1241 = vand.u32 %v135, 4294901760
    %v1242 = vsub.f32 %v135, %v1241
    %v1243 = vand.u32 %v1242, 4294901760
    %1244 = vmatmul.f32.gmra.mxu0 %v1243
    %v1245 = vpop.f32.mrf.mxu0
    %v1246 = vadd.f32 %v1215, %v1245
    %1247 = vdwg.mxu0
    %1248 = vmatpush.msra.mxu0 0.0
    %1249 = vmatpush.msra.mxu0 0.0
    %1250 = vmatpush.msra.mxu0 0.0
    %1251 = vmatpush.msra.mxu0 0.0
    %1252 = vmatpush.msra.mxu0 0.0
    %1253 = vmatpush.msra.mxu0 0.0
    %1254 = vmatpush.msra.mxu0 0.0
    %1255 = vmatpush.msra.mxu0 0.0
    %v1256 = vand.u32 %v128, 4294901760
    %v1257 = vsub.f32 %v128, %v1256
    %v1258 = vand.u32 %v1257, 4294901760
    %1259 = vmatpush.msra.mxu0 %v1258
    %v1260 = vand.u32 %v119, 4294901760
    %v1261 = vsub.f32 %v119, %v1260
    %v1262 = vand.u32 %v1261, 4294901760
    %1263 = vmatpush.msra.mxu0 %v1262
    %v1264 = vand.u32 %v110, 4294901760
    %v1265 = vsub.f32 %v110, %v1264
    %v1266 = vand.u32 %v1265, 4294901760
    %1267 = vmatpush.msra.mxu0 %v1266
    %v1268 = vand.u32 %v101, 4294901760
    %v1269 = vsub.f32 %v101, %v1268
    %v1270 = vand.u32 %v1269, 4294901760
    %1271 = vmatpush.msra.mxu0 %v1270
    %v1272 = vand.u32 %v92, 4294901760
    %v1273 = vsub.f32 %v92, %v1272
    %v1274 = vand.u32 %v1273, 4294901760
    %1275 = vmatpush.msra.mxu0 %v1274
    %v1276 = vand.u32 %v83, 4294901760
    %v1277 = vsub.f32 %v83, %v1276
    %v1278 = vand.u32 %v1277, 4294901760
    %1279 = vmatpush.msra.mxu0 %v1278
    %v1280 = vand.u32 %v74, 4294901760
    %v1281 = vsub.f32 %v74, %v1280
    %v1282 = vand.u32 %v1281, 4294901760
    %1283 = vmatpush.msra.mxu0 %v1282
    %v1284 = vand.u32 %v65, 4294901760
    %v1285 = vsub.f32 %v65, %v1284
    %v1286 = vand.u32 %v1285, 4294901760
    %1287 = vmatpush.msra.mxu0 %v1286
    %v1288 = vand.u32 %v135, 4294901760
    %1289 = vmatmul.f32.gmra.mxu0 %v1288
    %v1290 = vpop.f32.mrf.mxu0
    %v1291 = vadd.f32 %v1246, %v1290
    %1292 = vdwg.mxu0
    %1293 = vmatpush.msra.mxu0 0.0
    %1294 = vmatpush.msra.mxu0 0.0
    %1295 = vmatpush.msra.mxu0 0.0
    %1296 = vmatpush.msra.mxu0 0.0
    %1297 = vmatpush.msra.mxu0 0.0
    %1298 = vmatpush.msra.mxu0 0.0
    %1299 = vmatpush.msra.mxu0 0.0
    %1300 = vmatpush.msra.mxu0 0.0
    %v1301 = vand.u32 %v128, 4294901760
    %1302 = vmatpush.msra.mxu0 %v1301
    %v1303 = vand.u32 %v119, 4294901760
    %1304 = vmatpush.msra.mxu0 %v1303
    %v1305 = vand.u32 %v110, 4294901760
    %1306 = vmatpush.msra.mxu0 %v1305
    %v1307 = vand.u32 %v101, 4294901760
    %1308 = vmatpush.msra.mxu0 %v1307
    %v1309 = vand.u32 %v92, 4294901760
    %1310 = vmatpush.msra.mxu0 %v1309
    %v1311 = vand.u32 %v83, 4294901760
    %1312 = vmatpush.msra.mxu0 %v1311
    %v1313 = vand.u32 %v74, 4294901760
    %1314 = vmatpush.msra.mxu0 %v1313
    %v1315 = vand.u32 %v65, 4294901760
    %1316 = vmatpush.msra.mxu0 %v1315
    %v1317 = vand.u32 %v135, 4294901760
    %1318 = vmatmul.f32.gmra.mxu0 %v1317
    %v1319 = vpop.f32.mrf.mxu0
    %v1320 = vadd.f32 %v1291, %v1319
    %1321 = vdwg.mxu0
    %1322 = vmatpush.msra.mxu0 0.0
    %1323 = vmatpush.msra.mxu0 0.0
    %1324 = vmatpush.msra.mxu0 0.0
    %1325 = vmatpush.msra.mxu0 0.0
    %1326 = vmatpush.msra.mxu0 0.0
    %1327 = vmatpush.msra.mxu0 0.0
    %1328 = vmatpush.msra.mxu0 0.0
    %1329 = vmatpush.msra.mxu0 0.0
    %v1330 = vand.u32 %v129, 4294901760
    %1331 = vmatpush.msra.mxu0 %v1330
    %v1332 = vand.u32 %v120, 4294901760
    %1333 = vmatpush.msra.mxu0 %v1332
    %v1334 = vand.u32 %v111, 4294901760
    %1335 = vmatpush.msra.mxu0 %v1334
    %v1336 = vand.u32 %v102, 4294901760
    %1337 = vmatpush.msra.mxu0 %v1336
    %v1338 = vand.u32 %v93, 4294901760
    %1339 = vmatpush.msra.mxu0 %v1338
    %v1340 = vand.u32 %v84, 4294901760
    %1341 = vmatpush.msra.mxu0 %v1340
    %v1342 = vand.u32 %v75, 4294901760
    %1343 = vmatpush.msra.mxu0 %v1342
    %v1344 = vand.u32 %v66, 4294901760
    %1345 = vmatpush.msra.mxu0 %v1344
    %v1346 = vand.u32 %v135, 4294901760
    %v1347 = vsub.f32 %v135, %v1346
    %v1348 = vand.u32 %v1347, 4294901760
    %v1349 = vsub.f32 %v1347, %v1348
    %v1350 = vand.u32 %v1349, 4294901760
    %1351 = vmatmul.f32.gmra.mxu0 %v1350
    %v1352 = vpop.f32.mrf.mxu0
    %v1353 = vadd.f32 0.0, %v1352
    %1354 = vdwg.mxu0
    %1355 = vmatpush.msra.mxu0 0.0
    %1356 = vmatpush.msra.mxu0 0.0
    %1357 = vmatpush.msra.mxu0 0.0
    %1358 = vmatpush.msra.mxu0 0.0
    %1359 = vmatpush.msra.mxu0 0.0
    %1360 = vmatpush.msra.mxu0 0.0
    %1361 = vmatpush.msra.mxu0 0.0
    %1362 = vmatpush.msra.mxu0 0.0
    %v1363 = vand.u32 %v129, 4294901760
    %v1364 = vsub.f32 %v129, %v1363
    %v1365 = vand.u32 %v1364, 4294901760
    %v1366 = vsub.f32 %v1364, %v1365
    %v1367 = vand.u32 %v1366, 4294901760
    %1368 = vmatpush.msra.mxu0 %v1367
    %v1369 = vand.u32 %v120, 4294901760
    %v1370 = vsub.f32 %v120, %v1369
    %v1371 = vand.u32 %v1370, 4294901760
    %v1372 = vsub.f32 %v1370, %v1371
    %v1373 = vand.u32 %v1372, 4294901760
    %1374 = vmatpush.msra.mxu0 %v1373
    %v1375 = vand.u32 %v111, 4294901760
    %v1376 = vsub.f32 %v111, %v1375
    %v1377 = vand.u32 %v1376, 4294901760
    %v1378 = vsub.f32 %v1376, %v1377
    %v1379 = vand.u32 %v1378, 4294901760
    %1380 = vmatpush.msra.mxu0 %v1379
    %v1381 = vand.u32 %v102, 4294901760
    %v1382 = vsub.f32 %v102, %v1381
    %v1383 = vand.u32 %v1382, 4294901760
    %v1384 = vsub.f32 %v1382, %v1383
    %v1385 = vand.u32 %v1384, 4294901760
    %1386 = vmatpush.msra.mxu0 %v1385
    %v1387 = vand.u32 %v93, 4294901760
    %v1388 = vsub.f32 %v93, %v1387
    %v1389 = vand.u32 %v1388, 4294901760
    %v1390 = vsub.f32 %v1388, %v1389
    %v1391 = vand.u32 %v1390, 4294901760
    %1392 = vmatpush.msra.mxu0 %v1391
    %v1393 = vand.u32 %v84, 4294901760
    %v1394 = vsub.f32 %v84, %v1393
    %v1395 = vand.u32 %v1394, 4294901760
    %v1396 = vsub.f32 %v1394, %v1395
    %v1397 = vand.u32 %v1396, 4294901760
    %1398 = vmatpush.msra.mxu0 %v1397
    %v1399 = vand.u32 %v75, 4294901760
    %v1400 = vsub.f32 %v75, %v1399
    %v1401 = vand.u32 %v1400, 4294901760
    %v1402 = vsub.f32 %v1400, %v1401
    %v1403 = vand.u32 %v1402, 4294901760
    %1404 = vmatpush.msra.mxu0 %v1403
    %v1405 = vand.u32 %v66, 4294901760
    %v1406 = vsub.f32 %v66, %v1405
    %v1407 = vand.u32 %v1406, 4294901760
    %v1408 = vsub.f32 %v1406, %v1407
    %v1409 = vand.u32 %v1408, 4294901760
    %1410 = vmatpush.msra.mxu0 %v1409
    %v1411 = vand.u32 %v135, 4294901760
    %1412 = vmatmul.f32.gmra.mxu0 %v1411
    %v1413 = vpop.f32.mrf.mxu0
    %v1414 = vadd.f32 %v1353, %v1413
    %1415 = vdwg.mxu0
    %1416 = vmatpush.msra.mxu0 0.0
    %1417 = vmatpush.msra.mxu0 0.0
    %1418 = vmatpush.msra.mxu0 0.0
    %1419 = vmatpush.msra.mxu0 0.0
    %1420 = vmatpush.msra.mxu0 0.0
    %1421 = vmatpush.msra.mxu0 0.0
    %1422 = vmatpush.msra.mxu0 0.0
    %1423 = vmatpush.msra.mxu0 0.0
    %v1424 = vand.u32 %v129, 4294901760
    %v1425 = vsub.f32 %v129, %v1424
    %1426 = vmatpush.msra.mxu0 %v1425
    %v1427 = vand.u32 %v120, 4294901760
    %v1428 = vsub.f32 %v120, %v1427
    %1429 = vmatpush.msra.mxu0 %v1428
    %v1430 = vand.u32 %v111, 4294901760
    %v1431 = vsub.f32 %v111, %v1430
    %1432 = vmatpush.msra.mxu0 %v1431
    %v1433 = vand.u32 %v102, 4294901760
    %v1434 = vsub.f32 %v102, %v1433
    %1435 = vmatpush.msra.mxu0 %v1434
    %v1436 = vand.u32 %v93, 4294901760
    %v1437 = vsub.f32 %v93, %v1436
    %1438 = vmatpush.msra.mxu0 %v1437
    %v1439 = vand.u32 %v84, 4294901760
    %v1440 = vsub.f32 %v84, %v1439
    %1441 = vmatpush.msra.mxu0 %v1440
    %v1442 = vand.u32 %v75, 4294901760
    %v1443 = vsub.f32 %v75, %v1442
    %1444 = vmatpush.msra.mxu0 %v1443
    %v1445 = vand.u32 %v66, 4294901760
    %v1446 = vsub.f32 %v66, %v1445
    %1447 = vmatpush.msra.mxu0 %v1446
    %v1448 = vand.u32 %v135, 4294901760
    %v1449 = vsub.f32 %v135, %v1448
    %1450 = vmatmul.f32.gmra.mxu0 %v1449
    %v1451 = vpop.f32.mrf.mxu0
    %v1452 = vadd.f32 %v1414, %v1451
    %1453 = vdwg.mxu0
    %1454 = vmatpush.msra.mxu0 0.0
    %1455 = vmatpush.msra.mxu0 0.0
    %1456 = vmatpush.msra.mxu0 0.0
    %1457 = vmatpush.msra.mxu0 0.0
    %1458 = vmatpush.msra.mxu0 0.0
    %1459 = vmatpush.msra.mxu0 0.0
    %1460 = vmatpush.msra.mxu0 0.0
    %1461 = vmatpush.msra.mxu0 0.0
    %v1462 = vand.u32 %v129, 4294901760
    %1463 = vmatpush.msra.mxu0 %v1462
    %v1464 = vand.u32 %v120, 4294901760
    %1465 = vmatpush.msra.mxu0 %v1464
    %v1466 = vand.u32 %v111, 4294901760
    %1467 = vmatpush.msra.mxu0 %v1466
    %v1468 = vand.u32 %v102, 4294901760
    %1469 = vmatpush.msra.mxu0 %v1468
    %v1470 = vand.u32 %v93, 4294901760
    %1471 = vmatpush.msra.mxu0 %v1470
    %v1472 = vand.u32 %v84, 4294901760
    %1473 = vmatpush.msra.mxu0 %v1472
    %v1474 = vand.u32 %v75, 4294901760
    %1475 = vmatpush.msra.mxu0 %v1474
    %v1476 = vand.u32 %v66, 4294901760
    %1477 = vmatpush.msra.mxu0 %v1476
    %v1478 = vand.u32 %v135, 4294901760
    %v1479 = vsub.f32 %v135, %v1478
    %v1480 = vand.u32 %v1479, 4294901760
    %1481 = vmatmul.f32.gmra.mxu0 %v1480
    %v1482 = vpop.f32.mrf.mxu0
    %v1483 = vadd.f32 %v1452, %v1482
    %1484 = vdwg.mxu0
    %1485 = vmatpush.msra.mxu0 0.0
    %1486 = vmatpush.msra.mxu0 0.0
    %1487 = vmatpush.msra.mxu0 0.0
    %1488 = vmatpush.msra.mxu0 0.0
    %1489 = vmatpush.msra.mxu0 0.0
    %1490 = vmatpush.msra.mxu0 0.0
    %1491 = vmatpush.msra.mxu0 0.0
    %1492 = vmatpush.msra.mxu0 0.0
    %v1493 = vand.u32 %v129, 4294901760
    %v1494 = vsub.f32 %v129, %v1493
    %v1495 = vand.u32 %v1494, 4294901760
    %1496 = vmatpush.msra.mxu0 %v1495
    %v1497 = vand.u32 %v120, 4294901760
    %v1498 = vsub.f32 %v120, %v1497
    %v1499 = vand.u32 %v1498, 4294901760
    %1500 = vmatpush.msra.mxu0 %v1499
    %v1501 = vand.u32 %v111, 4294901760
    %v1502 = vsub.f32 %v111, %v1501
    %v1503 = vand.u32 %v1502, 4294901760
    %1504 = vmatpush.msra.mxu0 %v1503
    %v1505 = vand.u32 %v102, 4294901760
    %v1506 = vsub.f32 %v102, %v1505
    %v1507 = vand.u32 %v1506, 4294901760
    %1508 = vmatpush.msra.mxu0 %v1507
    %v1509 = vand.u32 %v93, 4294901760
    %v1510 = vsub.f32 %v93, %v1509
    %v1511 = vand.u32 %v1510, 4294901760
    %1512 = vmatpush.msra.mxu0 %v1511
    %v1513 = vand.u32 %v84, 4294901760
    %v1514 = vsub.f32 %v84, %v1513
    %v1515 = vand.u32 %v1514, 4294901760
    %1516 = vmatpush.msra.mxu0 %v1515
    %v1517 = vand.u32 %v75, 4294901760
    %v1518 = vsub.f32 %v75, %v1517
    %v1519 = vand.u32 %v1518, 4294901760
    %1520 = vmatpush.msra.mxu0 %v1519
    %v1521 = vand.u32 %v66, 4294901760
    %v1522 = vsub.f32 %v66, %v1521
    %v1523 = vand.u32 %v1522, 4294901760
    %1524 = vmatpush.msra.mxu0 %v1523
    %v1525 = vand.u32 %v135, 4294901760
    %1526 = vmatmul.f32.gmra.mxu0 %v1525
    %v1527 = vpop.f32.mrf.mxu0
    %v1528 = vadd.f32 %v1483, %v1527
    %1529 = vdwg.mxu0
    %1530 = vmatpush.msra.mxu0 0.0
    %1531 = vmatpush.msra.mxu0 0.0
    %1532 = vmatpush.msra.mxu0 0.0
    %1533 = vmatpush.msra.mxu0 0.0
    %1534 = vmatpush.msra.mxu0 0.0
    %1535 = vmatpush.msra.mxu0 0.0
    %1536 = vmatpush.msra.mxu0 0.0
    %1537 = vmatpush.msra.mxu0 0.0
    %v1538 = vand.u32 %v129, 4294901760
    %1539 = vmatpush.msra.mxu0 %v1538
    %v1540 = vand.u32 %v120, 4294901760
    %1541 = vmatpush.msra.mxu0 %v1540
    %v1542 = vand.u32 %v111, 4294901760
    %1543 = vmatpush.msra.mxu0 %v1542
    %v1544 = vand.u32 %v102, 4294901760
    %1545 = vmatpush.msra.mxu0 %v1544
    %v1546 = vand.u32 %v93, 4294901760
    %1547 = vmatpush.msra.mxu0 %v1546
    %v1548 = vand.u32 %v84, 4294901760
    %1549 = vmatpush.msra.mxu0 %v1548
    %v1550 = vand.u32 %v75, 4294901760
    %1551 = vmatpush.msra.mxu0 %v1550
    %v1552 = vand.u32 %v66, 4294901760
    %1553 = vmatpush.msra.mxu0 %v1552
    %v1554 = vand.u32 %v135, 4294901760
    %1555 = vmatmul.f32.gmra.mxu0 %v1554
    %v1556 = vpop.f32.mrf.mxu0
    %v1557 = vadd.f32 %v1528, %v1556
    %1558 = vdwg.mxu0
    %1559 = vmatpush.msra.mxu0 0.0
    %1560 = vmatpush.msra.mxu0 0.0
    %1561 = vmatpush.msra.mxu0 0.0
    %1562 = vmatpush.msra.mxu0 0.0
    %1563 = vmatpush.msra.mxu0 0.0
    %1564 = vmatpush.msra.mxu0 0.0
    %1565 = vmatpush.msra.mxu0 0.0
    %1566 = vmatpush.msra.mxu0 0.0
    %v1567 = vand.u32 %v130, 4294901760
    %1568 = vmatpush.msra.mxu0 %v1567
    %v1569 = vand.u32 %v121, 4294901760
    %1570 = vmatpush.msra.mxu0 %v1569
    %v1571 = vand.u32 %v112, 4294901760
    %1572 = vmatpush.msra.mxu0 %v1571
    %v1573 = vand.u32 %v103, 4294901760
    %1574 = vmatpush.msra.mxu0 %v1573
    %v1575 = vand.u32 %v94, 4294901760
    %1576 = vmatpush.msra.mxu0 %v1575
    %v1577 = vand.u32 %v85, 4294901760
    %1578 = vmatpush.msra.mxu0 %v1577
    %v1579 = vand.u32 %v76, 4294901760
    %1580 = vmatpush.msra.mxu0 %v1579
    %v1581 = vand.u32 %v67, 4294901760
    %1582 = vmatpush.msra.mxu0 %v1581
    %v1583 = vand.u32 %v135, 4294901760
    %v1584 = vsub.f32 %v135, %v1583
    %v1585 = vand.u32 %v1584, 4294901760
    %v1586 = vsub.f32 %v1584, %v1585
    %v1587 = vand.u32 %v1586, 4294901760
    %1588 = vmatmul.f32.gmra.mxu0 %v1587
    %v1589 = vpop.f32.mrf.mxu0
    %v1590 = vadd.f32 0.0, %v1589
    %1591 = vdwg.mxu0
    %1592 = vmatpush.msra.mxu0 0.0
    %1593 = vmatpush.msra.mxu0 0.0
    %1594 = vmatpush.msra.mxu0 0.0
    %1595 = vmatpush.msra.mxu0 0.0
    %1596 = vmatpush.msra.mxu0 0.0
    %1597 = vmatpush.msra.mxu0 0.0
    %1598 = vmatpush.msra.mxu0 0.0
    %1599 = vmatpush.msra.mxu0 0.0
    %v1600 = vand.u32 %v130, 4294901760
    %v1601 = vsub.f32 %v130, %v1600
    %v1602 = vand.u32 %v1601, 4294901760
    %v1603 = vsub.f32 %v1601, %v1602
    %v1604 = vand.u32 %v1603, 4294901760
    %1605 = vmatpush.msra.mxu0 %v1604
    %v1606 = vand.u32 %v121, 4294901760
    %v1607 = vsub.f32 %v121, %v1606
    %v1608 = vand.u32 %v1607, 4294901760
    %v1609 = vsub.f32 %v1607, %v1608
    %v1610 = vand.u32 %v1609, 4294901760
    %1611 = vmatpush.msra.mxu0 %v1610
    %v1612 = vand.u32 %v112, 4294901760
    %v1613 = vsub.f32 %v112, %v1612
    %v1614 = vand.u32 %v1613, 4294901760
    %v1615 = vsub.f32 %v1613, %v1614
    %v1616 = vand.u32 %v1615, 4294901760
    %1617 = vmatpush.msra.mxu0 %v1616
    %v1618 = vand.u32 %v103, 4294901760
    %v1619 = vsub.f32 %v103, %v1618
    %v1620 = vand.u32 %v1619, 4294901760
    %v1621 = vsub.f32 %v1619, %v1620
    %v1622 = vand.u32 %v1621, 4294901760
    %1623 = vmatpush.msra.mxu0 %v1622
    %v1624 = vand.u32 %v94, 4294901760
    %v1625 = vsub.f32 %v94, %v1624
    %v1626 = vand.u32 %v1625, 4294901760
    %v1627 = vsub.f32 %v1625, %v1626
    %v1628 = vand.u32 %v1627, 4294901760
    %1629 = vmatpush.msra.mxu0 %v1628
    %v1630 = vand.u32 %v85, 4294901760
    %v1631 = vsub.f32 %v85, %v1630
    %v1632 = vand.u32 %v1631, 4294901760
    %v1633 = vsub.f32 %v1631, %v1632
    %v1634 = vand.u32 %v1633, 4294901760
    %1635 = vmatpush.msra.mxu0 %v1634
    %v1636 = vand.u32 %v76, 4294901760
    %v1637 = vsub.f32 %v76, %v1636
    %v1638 = vand.u32 %v1637, 4294901760
    %v1639 = vsub.f32 %v1637, %v1638
    %v1640 = vand.u32 %v1639, 4294901760
    %1641 = vmatpush.msra.mxu0 %v1640
    %v1642 = vand.u32 %v67, 4294901760
    %v1643 = vsub.f32 %v67, %v1642
    %v1644 = vand.u32 %v1643, 4294901760
    %v1645 = vsub.f32 %v1643, %v1644
    %v1646 = vand.u32 %v1645, 4294901760
    %1647 = vmatpush.msra.mxu0 %v1646
    %v1648 = vand.u32 %v135, 4294901760
    %1649 = vmatmul.f32.gmra.mxu0 %v1648
    %v1650 = vpop.f32.mrf.mxu0
    %v1651 = vadd.f32 %v1590, %v1650
    %1652 = vdwg.mxu0
    %1653 = vmatpush.msra.mxu0 0.0
    %1654 = vmatpush.msra.mxu0 0.0
    %1655 = vmatpush.msra.mxu0 0.0
    %1656 = vmatpush.msra.mxu0 0.0
    %1657 = vmatpush.msra.mxu0 0.0
    %1658 = vmatpush.msra.mxu0 0.0
    %1659 = vmatpush.msra.mxu0 0.0
    %1660 = vmatpush.msra.mxu0 0.0
    %v1661 = vand.u32 %v130, 4294901760
    %v1662 = vsub.f32 %v130, %v1661
    %1663 = vmatpush.msra.mxu0 %v1662
    %v1664 = vand.u32 %v121, 4294901760
    %v1665 = vsub.f32 %v121, %v1664
    %1666 = vmatpush.msra.mxu0 %v1665
    %v1667 = vand.u32 %v112, 4294901760
    %v1668 = vsub.f32 %v112, %v1667
    %1669 = vmatpush.msra.mxu0 %v1668
    %v1670 = vand.u32 %v103, 4294901760
    %v1671 = vsub.f32 %v103, %v1670
    %1672 = vmatpush.msra.mxu0 %v1671
    %v1673 = vand.u32 %v94, 4294901760
    %v1674 = vsub.f32 %v94, %v1673
    %1675 = vmatpush.msra.mxu0 %v1674
    %v1676 = vand.u32 %v85, 4294901760
    %v1677 = vsub.f32 %v85, %v1676
    %1678 = vmatpush.msra.mxu0 %v1677
    %v1679 = vand.u32 %v76, 4294901760
    %v1680 = vsub.f32 %v76, %v1679
    %1681 = vmatpush.msra.mxu0 %v1680
    %v1682 = vand.u32 %v67, 4294901760
    %v1683 = vsub.f32 %v67, %v1682
    %1684 = vmatpush.msra.mxu0 %v1683
    %v1685 = vand.u32 %v135, 4294901760
    %v1686 = vsub.f32 %v135, %v1685
    %1687 = vmatmul.f32.gmra.mxu0 %v1686
    %v1688 = vpop.f32.mrf.mxu0
    %v1689 = vadd.f32 %v1651, %v1688
    %1690 = vdwg.mxu0
    %1691 = vmatpush.msra.mxu0 0.0
    %1692 = vmatpush.msra.mxu0 0.0
    %1693 = vmatpush.msra.mxu0 0.0
    %1694 = vmatpush.msra.mxu0 0.0
    %1695 = vmatpush.msra.mxu0 0.0
    %1696 = vmatpush.msra.mxu0 0.0
    %1697 = vmatpush.msra.mxu0 0.0
    %1698 = vmatpush.msra.mxu0 0.0
    %v1699 = vand.u32 %v130, 4294901760
    %1700 = vmatpush.msra.mxu0 %v1699
    %v1701 = vand.u32 %v121, 4294901760
    %1702 = vmatpush.msra.mxu0 %v1701
    %v1703 = vand.u32 %v112, 4294901760
    %1704 = vmatpush.msra.mxu0 %v1703
    %v1705 = vand.u32 %v103, 4294901760
    %1706 = vmatpush.msra.mxu0 %v1705
    %v1707 = vand.u32 %v94, 4294901760
    %1708 = vmatpush.msra.mxu0 %v1707
    %v1709 = vand.u32 %v85, 4294901760
    %1710 = vmatpush.msra.mxu0 %v1709
    %v1711 = vand.u32 %v76, 4294901760
    %1712 = vmatpush.msra.mxu0 %v1711
    %v1713 = vand.u32 %v67, 4294901760
    %1714 = vmatpush.msra.mxu0 %v1713
    %v1715 = vand.u32 %v135, 4294901760
    %v1716 = vsub.f32 %v135, %v1715
    %v1717 = vand.u32 %v1716, 4294901760
    %1718 = vmatmul.f32.gmra.mxu0 %v1717
    %v1719 = vpop.f32.mrf.mxu0
    %v1720 = vadd.f32 %v1689, %v1719
    %1721 = vdwg.mxu0
    %1722 = vmatpush.msra.mxu0 0.0
    %1723 = vmatpush.msra.mxu0 0.0
    %1724 = vmatpush.msra.mxu0 0.0
    %1725 = vmatpush.msra.mxu0 0.0
    %1726 = vmatpush.msra.mxu0 0.0
    %1727 = vmatpush.msra.mxu0 0.0
    %1728 = vmatpush.msra.mxu0 0.0
    %1729 = vmatpush.msra.mxu0 0.0
    %v1730 = vand.u32 %v130, 4294901760
    %v1731 = vsub.f32 %v130, %v1730
    %v1732 = vand.u32 %v1731, 4294901760
    %1733 = vmatpush.msra.mxu0 %v1732
    %v1734 = vand.u32 %v121, 4294901760
    %v1735 = vsub.f32 %v121, %v1734
    %v1736 = vand.u32 %v1735, 4294901760
    %1737 = vmatpush.msra.mxu0 %v1736
    %v1738 = vand.u32 %v112, 4294901760
    %v1739 = vsub.f32 %v112, %v1738
    %v1740 = vand.u32 %v1739, 4294901760
    %1741 = vmatpush.msra.mxu0 %v1740
    %v1742 = vand.u32 %v103, 4294901760
    %v1743 = vsub.f32 %v103, %v1742
    %v1744 = vand.u32 %v1743, 4294901760
    %1745 = vmatpush.msra.mxu0 %v1744
    %v1746 = vand.u32 %v94, 4294901760
    %v1747 = vsub.f32 %v94, %v1746
    %v1748 = vand.u32 %v1747, 4294901760
    %1749 = vmatpush.msra.mxu0 %v1748
    %v1750 = vand.u32 %v85, 4294901760
    %v1751 = vsub.f32 %v85, %v1750
    %v1752 = vand.u32 %v1751, 4294901760
    %1753 = vmatpush.msra.mxu0 %v1752
    %v1754 = vand.u32 %v76, 4294901760
    %v1755 = vsub.f32 %v76, %v1754
    %v1756 = vand.u32 %v1755, 4294901760
    %1757 = vmatpush.msra.mxu0 %v1756
    %v1758 = vand.u32 %v67, 4294901760
    %v1759 = vsub.f32 %v67, %v1758
    %v1760 = vand.u32 %v1759, 4294901760
    %1761 = vmatpush.msra.mxu0 %v1760
    %v1762 = vand.u32 %v135, 4294901760
    %1763 = vmatmul.f32.gmra.mxu0 %v1762
    %v1764 = vpop.f32.mrf.mxu0
    %v1765 = vadd.f32 %v1720, %v1764
    %1766 = vdwg.mxu0
    %1767 = vmatpush.msra.mxu0 0.0
    %1768 = vmatpush.msra.mxu0 0.0
    %1769 = vmatpush.msra.mxu0 0.0
    %1770 = vmatpush.msra.mxu0 0.0
    %1771 = vmatpush.msra.mxu0 0.0
    %1772 = vmatpush.msra.mxu0 0.0
    %1773 = vmatpush.msra.mxu0 0.0
    %1774 = vmatpush.msra.mxu0 0.0
    %v1775 = vand.u32 %v130, 4294901760
    %1776 = vmatpush.msra.mxu0 %v1775
    %v1777 = vand.u32 %v121, 4294901760
    %1778 = vmatpush.msra.mxu0 %v1777
    %v1779 = vand.u32 %v112, 4294901760
    %1780 = vmatpush.msra.mxu0 %v1779
    %v1781 = vand.u32 %v103, 4294901760
    %1782 = vmatpush.msra.mxu0 %v1781
    %v1783 = vand.u32 %v94, 4294901760
    %1784 = vmatpush.msra.mxu0 %v1783
    %v1785 = vand.u32 %v85, 4294901760
    %1786 = vmatpush.msra.mxu0 %v1785
    %v1787 = vand.u32 %v76, 4294901760
    %1788 = vmatpush.msra.mxu0 %v1787
    %v1789 = vand.u32 %v67, 4294901760
    %1790 = vmatpush.msra.mxu0 %v1789
    %v1791 = vand.u32 %v135, 4294901760
    %1792 = vmatmul.f32.gmra.mxu0 %v1791
    %v1793 = vpop.f32.mrf.mxu0
    %v1794 = vadd.f32 %v1765, %v1793
    %1795 = vdwg.mxu0
    %1796 = vmatpush.msra.mxu0 0.0
    %1797 = vmatpush.msra.mxu0 0.0
    %1798 = vmatpush.msra.mxu0 0.0
    %1799 = vmatpush.msra.mxu0 0.0
    %1800 = vmatpush.msra.mxu0 0.0
    %1801 = vmatpush.msra.mxu0 0.0
    %1802 = vmatpush.msra.mxu0 0.0
    %1803 = vmatpush.msra.mxu0 0.0
    %v1804 = vand.u32 %v131, 4294901760
    %1805 = vmatpush.msra.mxu0 %v1804
    %v1806 = vand.u32 %v122, 4294901760
    %1807 = vmatpush.msra.mxu0 %v1806
    %v1808 = vand.u32 %v113, 4294901760
    %1809 = vmatpush.msra.mxu0 %v1808
    %v1810 = vand.u32 %v104, 4294901760
    %1811 = vmatpush.msra.mxu0 %v1810
    %v1812 = vand.u32 %v95, 4294901760
    %1813 = vmatpush.msra.mxu0 %v1812
    %v1814 = vand.u32 %v86, 4294901760
    %1815 = vmatpush.msra.mxu0 %v1814
    %v1816 = vand.u32 %v77, 4294901760
    %1817 = vmatpush.msra.mxu0 %v1816
    %v1818 = vand.u32 %v68, 4294901760
    %1819 = vmatpush.msra.mxu0 %v1818
    %v1820 = vand.u32 %v135, 4294901760
    %v1821 = vsub.f32 %v135, %v1820
    %v1822 = vand.u32 %v1821, 4294901760
    %v1823 = vsub.f32 %v1821, %v1822
    %v1824 = vand.u32 %v1823, 4294901760
    %1825 = vmatmul.f32.gmra.mxu0 %v1824
    %v1826 = vpop.f32.mrf.mxu0
    %v1827 = vadd.f32 0.0, %v1826
    %1828 = vdwg.mxu0
    %1829 = vmatpush.msra.mxu0 0.0
    %1830 = vmatpush.msra.mxu0 0.0
    %1831 = vmatpush.msra.mxu0 0.0
    %1832 = vmatpush.msra.mxu0 0.0
    %1833 = vmatpush.msra.mxu0 0.0
    %1834 = vmatpush.msra.mxu0 0.0
    %1835 = vmatpush.msra.mxu0 0.0
    %1836 = vmatpush.msra.mxu0 0.0
    %v1837 = vand.u32 %v131, 4294901760
    %v1838 = vsub.f32 %v131, %v1837
    %v1839 = vand.u32 %v1838, 4294901760
    %v1840 = vsub.f32 %v1838, %v1839
    %v1841 = vand.u32 %v1840, 4294901760
    %1842 = vmatpush.msra.mxu0 %v1841
    %v1843 = vand.u32 %v122, 4294901760
    %v1844 = vsub.f32 %v122, %v1843
    %v1845 = vand.u32 %v1844, 4294901760
    %v1846 = vsub.f32 %v1844, %v1845
    %v1847 = vand.u32 %v1846, 4294901760
    %1848 = vmatpush.msra.mxu0 %v1847
    %v1849 = vand.u32 %v113, 4294901760
    %v1850 = vsub.f32 %v113, %v1849
    %v1851 = vand.u32 %v1850, 4294901760
    %v1852 = vsub.f32 %v1850, %v1851
    %v1853 = vand.u32 %v1852, 4294901760
    %1854 = vmatpush.msra.mxu0 %v1853
    %v1855 = vand.u32 %v104, 4294901760
    %v1856 = vsub.f32 %v104, %v1855
    %v1857 = vand.u32 %v1856, 4294901760
    %v1858 = vsub.f32 %v1856, %v1857
    %v1859 = vand.u32 %v1858, 4294901760
    %1860 = vmatpush.msra.mxu0 %v1859
    %v1861 = vand.u32 %v95, 4294901760
    %v1862 = vsub.f32 %v95, %v1861
    %v1863 = vand.u32 %v1862, 4294901760
    %v1864 = vsub.f32 %v1862, %v1863
    %v1865 = vand.u32 %v1864, 4294901760
    %1866 = vmatpush.msra.mxu0 %v1865
    %v1867 = vand.u32 %v86, 4294901760
    %v1868 = vsub.f32 %v86, %v1867
    %v1869 = vand.u32 %v1868, 4294901760
    %v1870 = vsub.f32 %v1868, %v1869
    %v1871 = vand.u32 %v1870, 4294901760
    %1872 = vmatpush.msra.mxu0 %v1871
    %v1873 = vand.u32 %v77, 4294901760
    %v1874 = vsub.f32 %v77, %v1873
    %v1875 = vand.u32 %v1874, 4294901760
    %v1876 = vsub.f32 %v1874, %v1875
    %v1877 = vand.u32 %v1876, 4294901760
    %1878 = vmatpush.msra.mxu0 %v1877
    %v1879 = vand.u32 %v68, 4294901760
    %v1880 = vsub.f32 %v68, %v1879
    %v1881 = vand.u32 %v1880, 4294901760
    %v1882 = vsub.f32 %v1880, %v1881
    %v1883 = vand.u32 %v1882, 4294901760
    %1884 = vmatpush.msra.mxu0 %v1883
    %v1885 = vand.u32 %v135, 4294901760
    %1886 = vmatmul.f32.gmra.mxu0 %v1885
    %v1887 = vpop.f32.mrf.mxu0
    %v1888 = vadd.f32 %v1827, %v1887
    %1889 = vdwg.mxu0
    %1890 = vmatpush.msra.mxu0 0.0
    %1891 = vmatpush.msra.mxu0 0.0
    %1892 = vmatpush.msra.mxu0 0.0
    %1893 = vmatpush.msra.mxu0 0.0
    %1894 = vmatpush.msra.mxu0 0.0
    %1895 = vmatpush.msra.mxu0 0.0
    %1896 = vmatpush.msra.mxu0 0.0
    %1897 = vmatpush.msra.mxu0 0.0
    %v1898 = vand.u32 %v131, 4294901760
    %v1899 = vsub.f32 %v131, %v1898
    %1900 = vmatpush.msra.mxu0 %v1899
    %v1901 = vand.u32 %v122, 4294901760
    %v1902 = vsub.f32 %v122, %v1901
    %1903 = vmatpush.msra.mxu0 %v1902
    %v1904 = vand.u32 %v113, 4294901760
    %v1905 = vsub.f32 %v113, %v1904
    %1906 = vmatpush.msra.mxu0 %v1905
    %v1907 = vand.u32 %v104, 4294901760
    %v1908 = vsub.f32 %v104, %v1907
    %1909 = vmatpush.msra.mxu0 %v1908
    %v1910 = vand.u32 %v95, 4294901760
    %v1911 = vsub.f32 %v95, %v1910
    %1912 = vmatpush.msra.mxu0 %v1911
    %v1913 = vand.u32 %v86, 4294901760
    %v1914 = vsub.f32 %v86, %v1913
    %1915 = vmatpush.msra.mxu0 %v1914
    %v1916 = vand.u32 %v77, 4294901760
    %v1917 = vsub.f32 %v77, %v1916
    %1918 = vmatpush.msra.mxu0 %v1917
    %v1919 = vand.u32 %v68, 4294901760
    %v1920 = vsub.f32 %v68, %v1919
    %1921 = vmatpush.msra.mxu0 %v1920
    %v1922 = vand.u32 %v135, 4294901760
    %v1923 = vsub.f32 %v135, %v1922
    %1924 = vmatmul.f32.gmra.mxu0 %v1923
    %v1925 = vpop.f32.mrf.mxu0
    %v1926 = vadd.f32 %v1888, %v1925
    %1927 = vdwg.mxu0
    %1928 = vmatpush.msra.mxu0 0.0
    %1929 = vmatpush.msra.mxu0 0.0
    %1930 = vmatpush.msra.mxu0 0.0
    %1931 = vmatpush.msra.mxu0 0.0
    %1932 = vmatpush.msra.mxu0 0.0
    %1933 = vmatpush.msra.mxu0 0.0
    %1934 = vmatpush.msra.mxu0 0.0
    %1935 = vmatpush.msra.mxu0 0.0
    %v1936 = vand.u32 %v131, 4294901760
    %1937 = vmatpush.msra.mxu0 %v1936
    %v1938 = vand.u32 %v122, 4294901760
    %1939 = vmatpush.msra.mxu0 %v1938
    %v1940 = vand.u32 %v113, 4294901760
    %1941 = vmatpush.msra.mxu0 %v1940
    %v1942 = vand.u32 %v104, 4294901760
    %1943 = vmatpush.msra.mxu0 %v1942
    %v1944 = vand.u32 %v95, 4294901760
    %1945 = vmatpush.msra.mxu0 %v1944
    %v1946 = vand.u32 %v86, 4294901760
    %1947 = vmatpush.msra.mxu0 %v1946
    %v1948 = vand.u32 %v77, 4294901760
    %1949 = vmatpush.msra.mxu0 %v1948
    %v1950 = vand.u32 %v68, 4294901760
    %1951 = vmatpush.msra.mxu0 %v1950
    %v1952 = vand.u32 %v135, 4294901760
    %v1953 = vsub.f32 %v135, %v1952
    %v1954 = vand.u32 %v1953, 4294901760
    %1955 = vmatmul.f32.gmra.mxu0 %v1954
    %v1956 = vpop.f32.mrf.mxu0
    %v1957 = vadd.f32 %v1926, %v1956
    %1958 = vdwg.mxu0
    %1959 = vmatpush.msra.mxu0 0.0
    %1960 = vmatpush.msra.mxu0 0.0
    %1961 = vmatpush.msra.mxu0 0.0
    %1962 = vmatpush.msra.mxu0 0.0
    %1963 = vmatpush.msra.mxu0 0.0
    %1964 = vmatpush.msra.mxu0 0.0
    %1965 = vmatpush.msra.mxu0 0.0
    %1966 = vmatpush.msra.mxu0 0.0
    %v1967 = vand.u32 %v131, 4294901760
    %v1968 = vsub.f32 %v131, %v1967
    %v1969 = vand.u32 %v1968, 4294901760
    %1970 = vmatpush.msra.mxu0 %v1969
    %v1971 = vand.u32 %v122, 4294901760
    %v1972 = vsub.f32 %v122, %v1971
    %v1973 = vand.u32 %v1972, 4294901760
    %1974 = vmatpush.msra.mxu0 %v1973
    %v1975 = vand.u32 %v113, 4294901760
    %v1976 = vsub.f32 %v113, %v1975
    %v1977 = vand.u32 %v1976, 4294901760
    %1978 = vmatpush.msra.mxu0 %v1977
    %v1979 = vand.u32 %v104, 4294901760
    %v1980 = vsub.f32 %v104, %v1979
    %v1981 = vand.u32 %v1980, 4294901760
    %1982 = vmatpush.msra.mxu0 %v1981
    %v1983 = vand.u32 %v95, 4294901760
    %v1984 = vsub.f32 %v95, %v1983
    %v1985 = vand.u32 %v1984, 4294901760
    %1986 = vmatpush.msra.mxu0 %v1985
    %v1987 = vand.u32 %v86, 4294901760
    %v1988 = vsub.f32 %v86, %v1987
    %v1989 = vand.u32 %v1988, 4294901760
    %1990 = vmatpush.msra.mxu0 %v1989
    %v1991 = vand.u32 %v77, 4294901760
    %v1992 = vsub.f32 %v77, %v1991
    %v1993 = vand.u32 %v1992, 4294901760
    %1994 = vmatpush.msra.mxu0 %v1993
    %v1995 = vand.u32 %v68, 4294901760
    %v1996 = vsub.f32 %v68, %v1995
    %v1997 = vand.u32 %v1996, 4294901760
    %1998 = vmatpush.msra.mxu0 %v1997
    %v1999 = vand.u32 %v135, 4294901760
    %2000 = vmatmul.f32.gmra.mxu0 %v1999
    %v2001 = vpop.f32.mrf.mxu0
    %v2002 = vadd.f32 %v1957, %v2001
    %2003 = vdwg.mxu0
    %2004 = vmatpush.msra.mxu0 0.0
    %2005 = vmatpush.msra.mxu0 0.0
    %2006 = vmatpush.msra.mxu0 0.0
    %2007 = vmatpush.msra.mxu0 0.0
    %2008 = vmatpush.msra.mxu0 0.0
    %2009 = vmatpush.msra.mxu0 0.0
    %2010 = vmatpush.msra.mxu0 0.0
    %2011 = vmatpush.msra.mxu0 0.0
    %v2012 = vand.u32 %v131, 4294901760
    %2013 = vmatpush.msra.mxu0 %v2012
    %v2014 = vand.u32 %v122, 4294901760
    %2015 = vmatpush.msra.mxu0 %v2014
    %v2016 = vand.u32 %v113, 4294901760
    %2017 = vmatpush.msra.mxu0 %v2016
    %v2018 = vand.u32 %v104, 4294901760
    %2019 = vmatpush.msra.mxu0 %v2018
    %v2020 = vand.u32 %v95, 4294901760
    %2021 = vmatpush.msra.mxu0 %v2020
    %v2022 = vand.u32 %v86, 4294901760
    %2023 = vmatpush.msra.mxu0 %v2022
    %v2024 = vand.u32 %v77, 4294901760
    %2025 = vmatpush.msra.mxu0 %v2024
    %v2026 = vand.u32 %v68, 4294901760
    %2027 = vmatpush.msra.mxu0 %v2026
    %v2028 = vand.u32 %v135, 4294901760
    %2029 = vmatmul.f32.gmra.mxu0 %v2028
    %v2030 = vpop.f32.mrf.mxu0
    %v2031 = vadd.f32 %v2002, %v2030
    %2032 = vdwg.mxu0
    %2033 = vmatpush.msra.mxu0 0.0
    %2034 = vmatpush.msra.mxu0 0.0
    %2035 = vmatpush.msra.mxu0 0.0
    %2036 = vmatpush.msra.mxu0 0.0
    %2037 = vmatpush.msra.mxu0 0.0
    %2038 = vmatpush.msra.mxu0 0.0
    %2039 = vmatpush.msra.mxu0 0.0
    %2040 = vmatpush.msra.mxu0 0.0
    %v2041 = vand.u32 %v132, 4294901760
    %2042 = vmatpush.msra.mxu0 %v2041
    %v2043 = vand.u32 %v123, 4294901760
    %2044 = vmatpush.msra.mxu0 %v2043
    %v2045 = vand.u32 %v114, 4294901760
    %2046 = vmatpush.msra.mxu0 %v2045
    %v2047 = vand.u32 %v105, 4294901760
    %2048 = vmatpush.msra.mxu0 %v2047
    %v2049 = vand.u32 %v96, 4294901760
    %2050 = vmatpush.msra.mxu0 %v2049
    %v2051 = vand.u32 %v87, 4294901760
    %2052 = vmatpush.msra.mxu0 %v2051
    %v2053 = vand.u32 %v78, 4294901760
    %2054 = vmatpush.msra.mxu0 %v2053
    %v2055 = vand.u32 %v69, 4294901760
    %2056 = vmatpush.msra.mxu0 %v2055
    %v2057 = vand.u32 %v135, 4294901760
    %v2058 = vsub.f32 %v135, %v2057
    %v2059 = vand.u32 %v2058, 4294901760
    %v2060 = vsub.f32 %v2058, %v2059
    %v2061 = vand.u32 %v2060, 4294901760
    %2062 = vmatmul.f32.gmra.mxu0 %v2061
    %v2063 = vpop.f32.mrf.mxu0
    %v2064 = vadd.f32 0.0, %v2063
    %2065 = vdwg.mxu0
    %2066 = vmatpush.msra.mxu0 0.0
    %2067 = vmatpush.msra.mxu0 0.0
    %2068 = vmatpush.msra.mxu0 0.0
    %2069 = vmatpush.msra.mxu0 0.0
    %2070 = vmatpush.msra.mxu0 0.0
    %2071 = vmatpush.msra.mxu0 0.0
    %2072 = vmatpush.msra.mxu0 0.0
    %2073 = vmatpush.msra.mxu0 0.0
    %v2074 = vand.u32 %v132, 4294901760
    %v2075 = vsub.f32 %v132, %v2074
    %v2076 = vand.u32 %v2075, 4294901760
    %v2077 = vsub.f32 %v2075, %v2076
    %v2078 = vand.u32 %v2077, 4294901760
    %2079 = vmatpush.msra.mxu0 %v2078
    %v2080 = vand.u32 %v123, 4294901760
    %v2081 = vsub.f32 %v123, %v2080
    %v2082 = vand.u32 %v2081, 4294901760
    %v2083 = vsub.f32 %v2081, %v2082
    %v2084 = vand.u32 %v2083, 4294901760
    %2085 = vmatpush.msra.mxu0 %v2084
    %v2086 = vand.u32 %v114, 4294901760
    %v2087 = vsub.f32 %v114, %v2086
    %v2088 = vand.u32 %v2087, 4294901760
    %v2089 = vsub.f32 %v2087, %v2088
    %v2090 = vand.u32 %v2089, 4294901760
    %2091 = vmatpush.msra.mxu0 %v2090
    %v2092 = vand.u32 %v105, 4294901760
    %v2093 = vsub.f32 %v105, %v2092
    %v2094 = vand.u32 %v2093, 4294901760
    %v2095 = vsub.f32 %v2093, %v2094
    %v2096 = vand.u32 %v2095, 4294901760
    %2097 = vmatpush.msra.mxu0 %v2096
    %v2098 = vand.u32 %v96, 4294901760
    %v2099 = vsub.f32 %v96, %v2098
    %v2100 = vand.u32 %v2099, 4294901760
    %v2101 = vsub.f32 %v2099, %v2100
    %v2102 = vand.u32 %v2101, 4294901760
    %2103 = vmatpush.msra.mxu0 %v2102
    %v2104 = vand.u32 %v87, 4294901760
    %v2105 = vsub.f32 %v87, %v2104
    %v2106 = vand.u32 %v2105, 4294901760
    %v2107 = vsub.f32 %v2105, %v2106
    %v2108 = vand.u32 %v2107, 4294901760
    %2109 = vmatpush.msra.mxu0 %v2108
    %v2110 = vand.u32 %v78, 4294901760
    %v2111 = vsub.f32 %v78, %v2110
    %v2112 = vand.u32 %v2111, 4294901760
    %v2113 = vsub.f32 %v2111, %v2112
    %v2114 = vand.u32 %v2113, 4294901760
    %2115 = vmatpush.msra.mxu0 %v2114
    %v2116 = vand.u32 %v69, 4294901760
    %v2117 = vsub.f32 %v69, %v2116
    %v2118 = vand.u32 %v2117, 4294901760
    %v2119 = vsub.f32 %v2117, %v2118
    %v2120 = vand.u32 %v2119, 4294901760
    %2121 = vmatpush.msra.mxu0 %v2120
    %v2122 = vand.u32 %v135, 4294901760
    %2123 = vmatmul.f32.gmra.mxu0 %v2122
    %v2124 = vpop.f32.mrf.mxu0
    %v2125 = vadd.f32 %v2064, %v2124
    %2126 = vdwg.mxu0
    %2127 = vmatpush.msra.mxu0 0.0
    %2128 = vmatpush.msra.mxu0 0.0
    %2129 = vmatpush.msra.mxu0 0.0
    %2130 = vmatpush.msra.mxu0 0.0
    %2131 = vmatpush.msra.mxu0 0.0
    %2132 = vmatpush.msra.mxu0 0.0
    %2133 = vmatpush.msra.mxu0 0.0
    %2134 = vmatpush.msra.mxu0 0.0
    %v2135 = vand.u32 %v132, 4294901760
    %v2136 = vsub.f32 %v132, %v2135
    %2137 = vmatpush.msra.mxu0 %v2136
    %v2138 = vand.u32 %v123, 4294901760
    %v2139 = vsub.f32 %v123, %v2138
    %2140 = vmatpush.msra.mxu0 %v2139
    %v2141 = vand.u32 %v114, 4294901760
    %v2142 = vsub.f32 %v114, %v2141
    %2143 = vmatpush.msra.mxu0 %v2142
    %v2144 = vand.u32 %v105, 4294901760
    %v2145 = vsub.f32 %v105, %v2144
    %2146 = vmatpush.msra.mxu0 %v2145
    %v2147 = vand.u32 %v96, 4294901760
    %v2148 = vsub.f32 %v96, %v2147
    %2149 = vmatpush.msra.mxu0 %v2148
    %v2150 = vand.u32 %v87, 4294901760
    %v2151 = vsub.f32 %v87, %v2150
    %2152 = vmatpush.msra.mxu0 %v2151
    %v2153 = vand.u32 %v78, 4294901760
    %v2154 = vsub.f32 %v78, %v2153
    %2155 = vmatpush.msra.mxu0 %v2154
    %v2156 = vand.u32 %v69, 4294901760
    %v2157 = vsub.f32 %v69, %v2156
    %2158 = vmatpush.msra.mxu0 %v2157
    %v2159 = vand.u32 %v135, 4294901760
    %v2160 = vsub.f32 %v135, %v2159
    %2161 = vmatmul.f32.gmra.mxu0 %v2160
    %v2162 = vpop.f32.mrf.mxu0
    %v2163 = vadd.f32 %v2125, %v2162
    %2164 = vdwg.mxu0
    %2165 = vmatpush.msra.mxu0 0.0
    %2166 = vmatpush.msra.mxu0 0.0
    %2167 = vmatpush.msra.mxu0 0.0
    %2168 = vmatpush.msra.mxu0 0.0
    %2169 = vmatpush.msra.mxu0 0.0
    %2170 = vmatpush.msra.mxu0 0.0
    %2171 = vmatpush.msra.mxu0 0.0
    %2172 = vmatpush.msra.mxu0 0.0
    %v2173 = vand.u32 %v132, 4294901760
    %2174 = vmatpush.msra.mxu0 %v2173
    %v2175 = vand.u32 %v123, 4294901760
    %2176 = vmatpush.msra.mxu0 %v2175
    %v2177 = vand.u32 %v114, 4294901760
    %2178 = vmatpush.msra.mxu0 %v2177
    %v2179 = vand.u32 %v105, 4294901760
    %2180 = vmatpush.msra.mxu0 %v2179
    %v2181 = vand.u32 %v96, 4294901760
    %2182 = vmatpush.msra.mxu0 %v2181
    %v2183 = vand.u32 %v87, 4294901760
    %2184 = vmatpush.msra.mxu0 %v2183
    %v2185 = vand.u32 %v78, 4294901760
    %2186 = vmatpush.msra.mxu0 %v2185
    %v2187 = vand.u32 %v69, 4294901760
    %2188 = vmatpush.msra.mxu0 %v2187
    %v2189 = vand.u32 %v135, 4294901760
    %v2190 = vsub.f32 %v135, %v2189
    %v2191 = vand.u32 %v2190, 4294901760
    %2192 = vmatmul.f32.gmra.mxu0 %v2191
    %v2193 = vpop.f32.mrf.mxu0
    %v2194 = vadd.f32 %v2163, %v2193
    %2195 = vdwg.mxu0
    %2196 = vmatpush.msra.mxu0 0.0
    %2197 = vmatpush.msra.mxu0 0.0
    %2198 = vmatpush.msra.mxu0 0.0
    %2199 = vmatpush.msra.mxu0 0.0
    %2200 = vmatpush.msra.mxu0 0.0
    %2201 = vmatpush.msra.mxu0 0.0
    %2202 = vmatpush.msra.mxu0 0.0
    %2203 = vmatpush.msra.mxu0 0.0
    %v2204 = vand.u32 %v132, 4294901760
    %v2205 = vsub.f32 %v132, %v2204
    %v2206 = vand.u32 %v2205, 4294901760
    %2207 = vmatpush.msra.mxu0 %v2206
    %v2208 = vand.u32 %v123, 4294901760
    %v2209 = vsub.f32 %v123, %v2208
    %v2210 = vand.u32 %v2209, 4294901760
    %2211 = vmatpush.msra.mxu0 %v2210
    %v2212 = vand.u32 %v114, 4294901760
    %v2213 = vsub.f32 %v114, %v2212
    %v2214 = vand.u32 %v2213, 4294901760
    %2215 = vmatpush.msra.mxu0 %v2214
    %v2216 = vand.u32 %v105, 4294901760
    %v2217 = vsub.f32 %v105, %v2216
    %v2218 = vand.u32 %v2217, 4294901760
    %2219 = vmatpush.msra.mxu0 %v2218
    %v2220 = vand.u32 %v96, 4294901760
    %v2221 = vsub.f32 %v96, %v2220
    %v2222 = vand.u32 %v2221, 4294901760
    %2223 = vmatpush.msra.mxu0 %v2222
    %v2224 = vand.u32 %v87, 4294901760
    %v2225 = vsub.f32 %v87, %v2224
    %v2226 = vand.u32 %v2225, 4294901760
    %2227 = vmatpush.msra.mxu0 %v2226
    %v2228 = vand.u32 %v78, 4294901760
    %v2229 = vsub.f32 %v78, %v2228
    %v2230 = vand.u32 %v2229, 4294901760
    %2231 = vmatpush.msra.mxu0 %v2230
    %v2232 = vand.u32 %v69, 4294901760
    %v2233 = vsub.f32 %v69, %v2232
    %v2234 = vand.u32 %v2233, 4294901760
    %2235 = vmatpush.msra.mxu0 %v2234
    %v2236 = vand.u32 %v135, 4294901760
    %2237 = vmatmul.f32.gmra.mxu0 %v2236
    %v2238 = vpop.f32.mrf.mxu0
    %v2239 = vadd.f32 %v2194, %v2238
    %2240 = vdwg.mxu0
    %2241 = vmatpush.msra.mxu0 0.0
    %2242 = vmatpush.msra.mxu0 0.0
    %2243 = vmatpush.msra.mxu0 0.0
    %2244 = vmatpush.msra.mxu0 0.0
    %2245 = vmatpush.msra.mxu0 0.0
    %2246 = vmatpush.msra.mxu0 0.0
    %2247 = vmatpush.msra.mxu0 0.0
    %2248 = vmatpush.msra.mxu0 0.0
    %v2249 = vand.u32 %v132, 4294901760
    %2250 = vmatpush.msra.mxu0 %v2249
    %v2251 = vand.u32 %v123, 4294901760
    %2252 = vmatpush.msra.mxu0 %v2251
    %v2253 = vand.u32 %v114, 4294901760
    %2254 = vmatpush.msra.mxu0 %v2253
    %v2255 = vand.u32 %v105, 4294901760
    %2256 = vmatpush.msra.mxu0 %v2255
    %v2257 = vand.u32 %v96, 4294901760
    %2258 = vmatpush.msra.mxu0 %v2257
    %v2259 = vand.u32 %v87, 4294901760
    %2260 = vmatpush.msra.mxu0 %v2259
    %v2261 = vand.u32 %v78, 4294901760
    %2262 = vmatpush.msra.mxu0 %v2261
    %v2263 = vand.u32 %v69, 4294901760
    %2264 = vmatpush.msra.mxu0 %v2263
    %v2265 = vand.u32 %v135, 4294901760
    %2266 = vmatmul.f32.gmra.mxu0 %v2265
    %v2267 = vpop.f32.mrf.mxu0
    %v2268 = vadd.f32 %v2239, %v2267
    %2269 = vdwg.mxu0
    %v2270 = vand.u32 2147483647, %v372
    %vm2271 = vcmp.le.f32.partialorder %v2270, 0.7853982
    %vm2272 = vcmp.lt.s32.totalorder %v372, 0
    %v2273 = vand.u32 %v372, 2139095040
    %v2274 = vshrl.u32 %v2273, 23
    %v2275 = vsub.s32 %v2274, 127
    %v2276 = vand.u32 2147483647, %v372
    %v2277 = vand.u32 %v2276, 8388607
    %v2278 = vor.u32 %v2277, 8388608
    %v2279 = vsub.s32 0, %v2278
    %v2280 = vadd.s32 %v2275, 1
    %vm2281 = vcmp.gt.s32.totalorder %v2280, 0
    %v2282 = vsel %vm2281, %v2280, 0
    %v2283 = vshrl.u32 %v2282, 5
    %v2284 = vand.u32 %v2282, 31
    %v2285 = vsub.s32 32, %v2284
    %v2286 = vshrl.u32 683565275, %v2285
    %v2287 = vshll.u32 683565275, %v2284
    %v2288 = vshrl.u32 2475754826, %v2285
    %v2289 = vor.u32 %v2287, %v2288
    %v2290 = vshll.u32 2475754826, %v2284
    %v2291 = vshrl.u32 2131351028, %v2285
    %v2292 = vor.u32 %v2290, %v2291
    %v2293 = vshll.u32 2131351028, %v2284
    %v2294 = vshrl.u32 2102212464, %v2285
    %v2295 = vor.u32 %v2293, %v2294
    %v2296 = vshll.u32 2102212464, %v2284
    %v2297 = vshrl.u32 920167782, %v2285
    %v2298 = vor.u32 %v2296, %v2297
    %v2299 = vshll.u32 920167782, %v2284
    %v2300 = vshrl.u32 1326507024, %v2285
    %v2301 = vor.u32 %v2299, %v2300
    %vm2302 = vcmp.lt.s32.totalorder %v2283, 1
    %vm2303 = vcmp.lt.s32.totalorder %v2283, 2
    %vm2304 = vcmp.lt.s32.totalorder %v2283, 3
    %vm2305 = vcmp.lt.s32.totalorder %v2283, 4
    %v2306 = vsel %vm2302, %v2286, %v2289
    %v2307 = vsel %vm2305, %v2295, 2102212464
    %v2308 = vsel %vm2304, %v2292, %v2307
    %v2309 = vsel %vm2303, %v2306, %v2308
    %v2310 = vsel %vm2302, %v2289, %v2292
    %v2311 = vsel %vm2305, %v2298, 920167782
    %v2312 = vsel %vm2304, %v2295, %v2311
    %v2313 = vsel %vm2303, %v2310, %v2312
    %v2314 = vsel %vm2302, %v2292, %v2295
    %v2315 = vsel %vm2305, %v2301, 1326507024
    %v2316 = vsel %vm2304, %v2298, %v2315
    %v2317 = vsel %vm2303, %v2314, %v2316
    %v2318 = vshll.u32 %v2278, 8
    %v2319 = vand.u32 %v2318, 65535
    %v2320 = vshrl.u32 %v2318, 16
    %v2321 = vand.u32 %v2317, 65535
    %v2322 = vshrl.u32 %v2317, 16
    %v2323 = vmul.u32 %v2319, %v2321
    %v2324 = vmul.u32 %v2319, %v2322
    %v2325 = vmul.u32 %v2320, %v2321
    %v2326 = vmul.u32 %v2320, %v2322
    %v2327 = vshll.u32 %v2324, 16
    %v2328 = vshrl.u32 %v2324, 16
    %v2329 = vshll.u32 %v2325, 16
    %v2330 = vshrl.u32 %v2325, 16
    %vm2331 = vc.u32 %v2323, %v2327
    %v2332 = vsel %vm2331, 1, 0
    %v2333 = vadd.s32 %v2323, %v2327
    %v2334 = vadd.s32 %v2326, %v2332
    %vm2335 = vc.u32 %v2333, %v2329
    %v2336 = vsel %vm2335, 1, 0
    %v2337 = vadd.s32 %v2333, %v2329
    %v2338 = vadd.s32 %v2334, %v2336
    %v2339 = vadd.s32 %v2338, %v2328
    %v2340 = vadd.s32 %v2339, %v2330
    %v2341 = vand.u32 %v2318, 65535
    %v2342 = vshrl.u32 %v2318, 16
    %v2343 = vand.u32 %v2313, 65535
    %v2344 = vshrl.u32 %v2313, 16
    %v2345 = vmul.u32 %v2341, %v2343
    %v2346 = vmul.u32 %v2341, %v2344
    %v2347 = vmul.u32 %v2342, %v2343
    %v2348 = vmul.u32 %v2342, %v2344
    %v2349 = vshll.u32 %v2346, 16
    %v2350 = vshrl.u32 %v2346, 16
    %v2351 = vshll.u32 %v2347, 16
    %v2352 = vshrl.u32 %v2347, 16
    %vm2353 = vc.u32 %v2345, %v2349
    %v2354 = vsel %vm2353, 1, 0
    %v2355 = vadd.s32 %v2345, %v2349
    %v2356 = vadd.s32 %v2348, %v2354
    %vm2357 = vc.u32 %v2355, %v2351
    %v2358 = vsel %vm2357, 1, 0
    %v2359 = vadd.s32 %v2355, %v2351
    %v2360 = vadd.s32 %v2356, %v2358
    %v2361 = vadd.s32 %v2360, %v2350
    %v2362 = vadd.s32 %v2361, %v2352
    %v2363 = vmul.u32 %v2318, %v2309
    %v2364 = vadd.s32 %v2340, %v2359
    %vm2365 = vc.u32 %v2340, %v2359
    %v2366 = vadd.s32 %v2362, 1
    %v2367 = vsel %vm2365, %v2366, %v2362
    %v2368 = vadd.s32 %v2363, %v2367
    %v2369 = vadd.s32 %v2368, 536870912
    %v2370 = vshrl.u32 %v2369, 30
    %v2371 = vshll.u32 %v2370, 30
    %v2372 = vsub.s32 %v2368, %v2371
    %vm2373 = vcmp.lt.s32.totalorder %v2372, 0
    %v2374 = vsub.s32 0, %v2372
    %v2375 = vsel %vm2373, %v2374, %v2372
    %v2376 = vclz %v2375
    %v2377 = vsub.s32 %v2376, 2
    %vm2378 = vcmp.gt.s32.totalorder 0, %v2377
    %v2379 = vsel %vm2378, 0, %v2377
    %v2380 = vsub.s32 32, %v2379
    %v2381 = vshll.u32 %v2372, %v2379
    %v2382 = vshrl.u32 %v2364, %v2380
    %v2383 = vor.u32 %v2381, %v2382
    %v2384 = vsub.s32 4294967266, %v2379
    %v2385 = vadd.s32 %v2384, 127
    %v2386 = vshll.u32 %v2385, 23
    %v2387 = vor.u32 4788187, %v2386
    %v2388 = vand.u32 2147483647, %v2387
    %v2390 = vcvt.s32.f32 %v2383
    %v2391 = vmul.f32 %v2390, %v2388
    %v2392 = vxor.u32 %v2391, 2147483648
    %v2393 = vsel %vm2272, %v2392, %v2391
    %v2394 = vsub.s32 4, %v2370
    %v2395 = vsel %vm2272, %v2394, %v2370
    %v2396 = vsel %vm2271, %v372, %v2393
    %v2397 = vsel %vm2271, 0, %v2395
    %v2398 = vmul.f32 %v2396, %v2396
    %v2399 = vmul.f32 %v2398, -0.001358992
    %v2400 = vadd.f32 %v2399, 0.041655596
    %v2401 = vmul.f32 %v2398, %v2400
    %v2402 = vadd.f32 %v2401, -0.4999988
    %v2403 = vmul.f32 %v2398, %v2402
    %v2404 = vadd.f32 1.0, %v2403
    %v2405 = vmul.f32 %v2396, %v2396
    %v2406 = vmul.f32 %v2405, -0.00019511016
    %v2407 = vadd.f32 %v2406, 0.008332121
    %v2408 = vmul.f32 %v2405, %v2407
    %v2409 = vadd.f32 %v2408, -0.16666654
    %v2410 = vmul.f32 %v2405, %v2409
    %v2411 = vadd.f32 %v2410, 1.0
    %v2412 = vmul.f32 %v2411, %v2396
    %vm2413 = vweird.f32 %v372
    %v2414 = vand.u32 %v2397, 3
    %vm2415 = vcmp.lt.s32.totalorder %v2414, 2
    %vm2416 = vcmp.eq.s32.totalorder %v2414, 0
    %v2417 = vxor.u32 %v2412, 2147483648
    %v2418 = vsel %vm2416, %v2404, %v2417
    %vm2419 = vcmp.eq.s32.totalorder %v2414, 2
    %v2420 = vxor.u32 %v2404, 2147483648
    %v2421 = vsel %vm2419, %v2420, %v2412
    %v2422 = vsel %vm2415, %v2418, %v2421
    %v2423 = vsel %vm2413, nan, %v2422
    %v2424 = vand.u32 2147483647, %v609
    %vm2425 = vcmp.le.f32.partialorder %v2424, 0.7853982
    %vm2426 = vcmp.lt.s32.totalorder %v609, 0
    %v2427 = vand.u32 %v609, 2139095040
    %v2428 = vshrl.u32 %v2427, 23
    %v2429 = vsub.s32 %v2428, 127
    %v2430 = vand.u32 2147483647, %v609
    %v2431 = vand.u32 %v2430, 8388607
    %v2432 = vor.u32 %v2431, 8388608
    %v2433 = vsub.s32 0, %v2432
    %v2434 = vadd.s32 %v2429, 1
    %vm2435 = vcmp.gt.s32.totalorder %v2434, 0
    %v2436 = vsel %vm2435, %v2434, 0
    %v2437 = vshrl.u32 %v2436, 5
    %v2438 = vand.u32 %v2436, 31
    %v2439 = vsub.s32 32, %v2438
    %v2440 = vshrl.u32 683565275, %v2439
    %v2441 = vshll.u32 683565275, %v2438
    %v2442 = vshrl.u32 2475754826, %v2439
    %v2443 = vor.u32 %v2441, %v2442
    %v2444 = vshll.u32 2475754826, %v2438
    %v2445 = vshrl.u32 2131351028, %v2439
    %v2446 = vor.u32 %v2444, %v2445
    %v2447 = vshll.u32 2131351028, %v2438
    %v2448 = vshrl.u32 2102212464, %v2439
    %v2449 = vor.u32 %v2447, %v2448
    %v2450 = vshll.u32 2102212464, %v2438
    %v2451 = vshrl.u32 920167782, %v2439
    %v2452 = vor.u32 %v2450, %v2451
    %v2453 = vshll.u32 920167782, %v2438
    %v2454 = vshrl.u32 1326507024, %v2439
    %v2455 = vor.u32 %v2453, %v2454
    %vm2456 = vcmp.lt.s32.totalorder %v2437, 1
    %vm2457 = vcmp.lt.s32.totalorder %v2437, 2
    %vm2458 = vcmp.lt.s32.totalorder %v2437, 3
    %vm2459 = vcmp.lt.s32.totalorder %v2437, 4
    %v2460 = vsel %vm2456, %v2440, %v2443
    %v2461 = vsel %vm2459, %v2449, 2102212464
    %v2462 = vsel %vm2458, %v2446, %v2461
    %v2463 = vsel %vm2457, %v2460, %v2462
    %v2464 = vsel %vm2456, %v2443, %v2446
    %v2465 = vsel %vm2459, %v2452, 920167782
    %v2466 = vsel %vm2458, %v2449, %v2465
    %v2467 = vsel %vm2457, %v2464, %v2466
    %v2468 = vsel %vm2456, %v2446, %v2449
    %v2469 = vsel %vm2459, %v2455, 1326507024
    %v2470 = vsel %vm2458, %v2452, %v2469
    %v2471 = vsel %vm2457, %v2468, %v2470
    %v2472 = vshll.u32 %v2432, 8
    %v2473 = vand.u32 %v2472, 65535
    %v2474 = vshrl.u32 %v2472, 16
    %v2475 = vand.u32 %v2471, 65535
    %v2476 = vshrl.u32 %v2471, 16
    %v2477 = vmul.u32 %v2473, %v2475
    %v2478 = vmul.u32 %v2473, %v2476
    %v2479 = vmul.u32 %v2474, %v2475
    %v2480 = vmul.u32 %v2474, %v2476
    %v2481 = vshll.u32 %v2478, 16
    %v2482 = vshrl.u32 %v2478, 16
    %v2483 = vshll.u32 %v2479, 16
    %v2484 = vshrl.u32 %v2479, 16
    %vm2485 = vc.u32 %v2477, %v2481
    %v2486 = vsel %vm2485, 1, 0
    %v2487 = vadd.s32 %v2477, %v2481
    %v2488 = vadd.s32 %v2480, %v2486
    %vm2489 = vc.u32 %v2487, %v2483
    %v2490 = vsel %vm2489, 1, 0
    %v2491 = vadd.s32 %v2487, %v2483
    %v2492 = vadd.s32 %v2488, %v2490
    %v2493 = vadd.s32 %v2492, %v2482
    %v2494 = vadd.s32 %v2493, %v2484
    %v2495 = vand.u32 %v2472, 65535
    %v2496 = vshrl.u32 %v2472, 16
    %v2497 = vand.u32 %v2467, 65535
    %v2498 = vshrl.u32 %v2467, 16
    %v2499 = vmul.u32 %v2495, %v2497
    %v2500 = vmul.u32 %v2495, %v2498
    %v2501 = vmul.u32 %v2496, %v2497
    %v2502 = vmul.u32 %v2496, %v2498
    %v2503 = vshll.u32 %v2500, 16
    %v2504 = vshrl.u32 %v2500, 16
    %v2505 = vshll.u32 %v2501, 16
    %v2506 = vshrl.u32 %v2501, 16
    %vm2507 = vc.u32 %v2499, %v2503
    %v2508 = vsel %vm2507, 1, 0
    %v2509 = vadd.s32 %v2499, %v2503
    %v2510 = vadd.s32 %v2502, %v2508
    %vm2511 = vc.u32 %v2509, %v2505
    %v2512 = vsel %vm2511, 1, 0
    %v2513 = vadd.s32 %v2509, %v2505
    %v2514 = vadd.s32 %v2510, %v2512
    %v2515 = vadd.s32 %v2514, %v2504
    %v2516 = vadd.s32 %v2515, %v2506
    %v2517 = vmul.u32 %v2472, %v2463
    %v2518 = vadd.s32 %v2494, %v2513
    %vm2519 = vc.u32 %v2494, %v2513
    %v2520 = vadd.s32 %v2516, 1
    %v2521 = vsel %vm2519, %v2520, %v2516
    %v2522 = vadd.s32 %v2517, %v2521
    %v2523 = vadd.s32 %v2522, 536870912
    %v2524 = vshrl.u32 %v2523, 30
    %v2525 = vshll.u32 %v2524, 30
    %v2526 = vsub.s32 %v2522, %v2525
    %vm2527 = vcmp.lt.s32.totalorder %v2526, 0
    %v2528 = vsub.s32 0, %v2526
    %v2529 = vsel %vm2527, %v2528, %v2526
    %v2530 = vclz %v2529
    %v2531 = vsub.s32 %v2530, 2
    %vm2532 = vcmp.gt.s32.totalorder 0, %v2531
    %v2533 = vsel %vm2532, 0, %v2531
    %v2534 = vsub.s32 32, %v2533
    %v2535 = vshll.u32 %v2526, %v2533
    %v2536 = vshrl.u32 %v2518, %v2534
    %v2537 = vor.u32 %v2535, %v2536
    %v2538 = vsub.s32 4294967266, %v2533
    %v2539 = vadd.s32 %v2538, 127
    %v2540 = vshll.u32 %v2539, 23
    %v2541 = vor.u32 4788187, %v2540
    %v2542 = vand.u32 2147483647, %v2541
    %v2544 = vcvt.s32.f32 %v2537
    %v2545 = vmul.f32 %v2544, %v2542
    %v2546 = vxor.u32 %v2545, 2147483648
    %v2547 = vsel %vm2426, %v2546, %v2545
    %v2548 = vsub.s32 4, %v2524
    %v2549 = vsel %vm2426, %v2548, %v2524
    %v2550 = vsel %vm2425, %v609, %v2547
    %v2551 = vsel %vm2425, 0, %v2549
    %v2552 = vmul.f32 %v2550, %v2550
    %v2553 = vmul.f32 %v2552, -0.001358992
    %v2554 = vadd.f32 %v2553, 0.041655596
    %v2555 = vmul.f32 %v2552, %v2554
    %v2556 = vadd.f32 %v2555, -0.4999988
    %v2557 = vmul.f32 %v2552, %v2556
    %v2558 = vadd.f32 1.0, %v2557
    %v2559 = vmul.f32 %v2550, %v2550
    %v2560 = vmul.f32 %v2559, -0.00019511016
    %v2561 = vadd.f32 %v2560, 0.008332121
    %v2562 = vmul.f32 %v2559, %v2561
    %v2563 = vadd.f32 %v2562, -0.16666654
    %v2564 = vmul.f32 %v2559, %v2563
    %v2565 = vadd.f32 %v2564, 1.0
    %v2566 = vmul.f32 %v2565, %v2550
    %vm2567 = vweird.f32 %v609
    %v2568 = vand.u32 %v2551, 3
    %vm2569 = vcmp.lt.s32.totalorder %v2568, 2
    %vm2570 = vcmp.eq.s32.totalorder %v2568, 0
    %v2571 = vxor.u32 %v2566, 2147483648
    %v2572 = vsel %vm2570, %v2558, %v2571
    %vm2573 = vcmp.eq.s32.totalorder %v2568, 2
    %v2574 = vxor.u32 %v2558, 2147483648
    %v2575 = vsel %vm2573, %v2574, %v2566
    %v2576 = vsel %vm2569, %v2572, %v2575
    %v2577 = vsel %vm2567, nan, %v2576
    %v2578 = vand.u32 2147483647, %v846
    %vm2579 = vcmp.le.f32.partialorder %v2578, 0.7853982
    %vm2580 = vcmp.lt.s32.totalorder %v846, 0
    %v2581 = vand.u32 %v846, 2139095040
    %v2582 = vshrl.u32 %v2581, 23
    %v2583 = vsub.s32 %v2582, 127
    %v2584 = vand.u32 2147483647, %v846
    %v2585 = vand.u32 %v2584, 8388607
    %v2586 = vor.u32 %v2585, 8388608
    %v2587 = vsub.s32 0, %v2586
    %v2588 = vadd.s32 %v2583, 1
    %vm2589 = vcmp.gt.s32.totalorder %v2588, 0
    %v2590 = vsel %vm2589, %v2588, 0
    %v2591 = vshrl.u32 %v2590, 5
    %v2592 = vand.u32 %v2590, 31
    %v2593 = vsub.s32 32, %v2592
    %v2594 = vshrl.u32 683565275, %v2593
    %v2595 = vshll.u32 683565275, %v2592
    %v2596 = vshrl.u32 2475754826, %v2593
    %v2597 = vor.u32 %v2595, %v2596
    %v2598 = vshll.u32 2475754826, %v2592
    %v2599 = vshrl.u32 2131351028, %v2593
    %v2600 = vor.u32 %v2598, %v2599
    %v2601 = vshll.u32 2131351028, %v2592
    %v2602 = vshrl.u32 2102212464, %v2593
    %v2603 = vor.u32 %v2601, %v2602
    %v2604 = vshll.u32 2102212464, %v2592
    %v2605 = vshrl.u32 920167782, %v2593
    %v2606 = vor.u32 %v2604, %v2605
    %v2607 = vshll.u32 920167782, %v2592
    %v2608 = vshrl.u32 1326507024, %v2593
    %v2609 = vor.u32 %v2607, %v2608
    %vm2610 = vcmp.lt.s32.totalorder %v2591, 1
    %vm2611 = vcmp.lt.s32.totalorder %v2591, 2
    %vm2612 = vcmp.lt.s32.totalorder %v2591, 3
    %vm2613 = vcmp.lt.s32.totalorder %v2591, 4
    %v2614 = vsel %vm2610, %v2594, %v2597
    %v2615 = vsel %vm2613, %v2603, 2102212464
    %v2616 = vsel %vm2612, %v2600, %v2615
    %v2617 = vsel %vm2611, %v2614, %v2616
    %v2618 = vsel %vm2610, %v2597, %v2600
    %v2619 = vsel %vm2613, %v2606, 920167782
    %v2620 = vsel %vm2612, %v2603, %v2619
    %v2621 = vsel %vm2611, %v2618, %v2620
    %v2622 = vsel %vm2610, %v2600, %v2603
    %v2623 = vsel %vm2613, %v2609, 1326507024
    %v2624 = vsel %vm2612, %v2606, %v2623
    %v2625 = vsel %vm2611, %v2622, %v2624
    %v2626 = vshll.u32 %v2586, 8
    %v2627 = vand.u32 %v2626, 65535
    %v2628 = vshrl.u32 %v2626, 16
    %v2629 = vand.u32 %v2625, 65535
    %v2630 = vshrl.u32 %v2625, 16
    %v2631 = vmul.u32 %v2627, %v2629
    %v2632 = vmul.u32 %v2627, %v2630
    %v2633 = vmul.u32 %v2628, %v2629
    %v2634 = vmul.u32 %v2628, %v2630
    %v2635 = vshll.u32 %v2632, 16
    %v2636 = vshrl.u32 %v2632, 16
    %v2637 = vshll.u32 %v2633, 16
    %v2638 = vshrl.u32 %v2633, 16
    %vm2639 = vc.u32 %v2631, %v2635
    %v2640 = vsel %vm2639, 1, 0
    %v2641 = vadd.s32 %v2631, %v2635
    %v2642 = vadd.s32 %v2634, %v2640
    %vm2643 = vc.u32 %v2641, %v2637
    %v2644 = vsel %vm2643, 1, 0
    %v2645 = vadd.s32 %v2641, %v2637
    %v2646 = vadd.s32 %v2642, %v2644
    %v2647 = vadd.s32 %v2646, %v2636
    %v2648 = vadd.s32 %v2647, %v2638
    %v2649 = vand.u32 %v2626, 65535
    %v2650 = vshrl.u32 %v2626, 16
    %v2651 = vand.u32 %v2621, 65535
    %v2652 = vshrl.u32 %v2621, 16
    %v2653 = vmul.u32 %v2649, %v2651
    %v2654 = vmul.u32 %v2649, %v2652
    %v2655 = vmul.u32 %v2650, %v2651
    %v2656 = vmul.u32 %v2650, %v2652
    %v2657 = vshll.u32 %v2654, 16
    %v2658 = vshrl.u32 %v2654, 16
    %v2659 = vshll.u32 %v2655, 16
    %v2660 = vshrl.u32 %v2655, 16
    %vm2661 = vc.u32 %v2653, %v2657
    %v2662 = vsel %vm2661, 1, 0
    %v2663 = vadd.s32 %v2653, %v2657
    %v2664 = vadd.s32 %v2656, %v2662
    %vm2665 = vc.u32 %v2663, %v2659
    %v2666 = vsel %vm2665, 1, 0
    %v2667 = vadd.s32 %v2663, %v2659
    %v2668 = vadd.s32 %v2664, %v2666
    %v2669 = vadd.s32 %v2668, %v2658
    %v2670 = vadd.s32 %v2669, %v2660
    %v2671 = vmul.u32 %v2626, %v2617
    %v2672 = vadd.s32 %v2648, %v2667
    %vm2673 = vc.u32 %v2648, %v2667
    %v2674 = vadd.s32 %v2670, 1
    %v2675 = vsel %vm2673, %v2674, %v2670
    %v2676 = vadd.s32 %v2671, %v2675
    %v2677 = vadd.s32 %v2676, 536870912
    %v2678 = vshrl.u32 %v2677, 30
    %v2679 = vshll.u32 %v2678, 30
    %v2680 = vsub.s32 %v2676, %v2679
    %vm2681 = vcmp.lt.s32.totalorder %v2680, 0
    %v2682 = vsub.s32 0, %v2680
    %v2683 = vsel %vm2681, %v2682, %v2680
    %v2684 = vclz %v2683
    %v2685 = vsub.s32 %v2684, 2
    %vm2686 = vcmp.gt.s32.totalorder 0, %v2685
    %v2687 = vsel %vm2686, 0, %v2685
    %v2688 = vsub.s32 32, %v2687
    %v2689 = vshll.u32 %v2680, %v2687
    %v2690 = vshrl.u32 %v2672, %v2688
    %v2691 = vor.u32 %v2689, %v2690
    %v2692 = vsub.s32 4294967266, %v2687
    %v2693 = vadd.s32 %v2692, 127
    %v2694 = vshll.u32 %v2693, 23
    %v2695 = vor.u32 4788187, %v2694
    %v2696 = vand.u32 2147483647, %v2695
    %v2698 = vcvt.s32.f32 %v2691
    %v2699 = vmul.f32 %v2698, %v2696
    %v2700 = vxor.u32 %v2699, 2147483648
    %v2701 = vsel %vm2580, %v2700, %v2699
    %v2702 = vsub.s32 4, %v2678
    %v2703 = vsel %vm2580, %v2702, %v2678
    %v2704 = vsel %vm2579, %v846, %v2701
    %v2705 = vsel %vm2579, 0, %v2703
    %v2706 = vmul.f32 %v2704, %v2704
    %v2707 = vmul.f32 %v2706, -0.001358992
    %v2708 = vadd.f32 %v2707, 0.041655596
    %v2709 = vmul.f32 %v2706, %v2708
    %v2710 = vadd.f32 %v2709, -0.4999988
    %v2711 = vmul.f32 %v2706, %v2710
    %v2712 = vadd.f32 1.0, %v2711
    %v2713 = vmul.f32 %v2704, %v2704
    %v2714 = vmul.f32 %v2713, -0.00019511016
    %v2715 = vadd.f32 %v2714, 0.008332121
    %v2716 = vmul.f32 %v2713, %v2715
    %v2717 = vadd.f32 %v2716, -0.16666654
    %v2718 = vmul.f32 %v2713, %v2717
    %v2719 = vadd.f32 %v2718, 1.0
    %v2720 = vmul.f32 %v2719, %v2704
    %vm2721 = vweird.f32 %v846
    %v2722 = vand.u32 %v2705, 3
    %vm2723 = vcmp.lt.s32.totalorder %v2722, 2
    %vm2724 = vcmp.eq.s32.totalorder %v2722, 0
    %v2725 = vxor.u32 %v2720, 2147483648
    %v2726 = vsel %vm2724, %v2712, %v2725
    %vm2727 = vcmp.eq.s32.totalorder %v2722, 2
    %v2728 = vxor.u32 %v2712, 2147483648
    %v2729 = vsel %vm2727, %v2728, %v2720
    %v2730 = vsel %vm2723, %v2726, %v2729
    %v2731 = vsel %vm2721, nan, %v2730
    %v2732 = vand.u32 2147483647, %v1083
    %vm2733 = vcmp.le.f32.partialorder %v2732, 0.7853982
    %vm2734 = vcmp.lt.s32.totalorder %v1083, 0
    %v2735 = vand.u32 %v1083, 2139095040
    %v2736 = vshrl.u32 %v2735, 23
    %v2737 = vsub.s32 %v2736, 127
    %v2738 = vand.u32 2147483647, %v1083
    %v2739 = vand.u32 %v2738, 8388607
    %v2740 = vor.u32 %v2739, 8388608
    %v2741 = vsub.s32 0, %v2740
    %v2742 = vadd.s32 %v2737, 1
    %vm2743 = vcmp.gt.s32.totalorder %v2742, 0
    %v2744 = vsel %vm2743, %v2742, 0
    %v2745 = vshrl.u32 %v2744, 5
    %v2746 = vand.u32 %v2744, 31
    %v2747 = vsub.s32 32, %v2746
    %v2748 = vshrl.u32 683565275, %v2747
    %v2749 = vshll.u32 683565275, %v2746
    %v2750 = vshrl.u32 2475754826, %v2747
    %v2751 = vor.u32 %v2749, %v2750
    %v2752 = vshll.u32 2475754826, %v2746
    %v2753 = vshrl.u32 2131351028, %v2747
    %v2754 = vor.u32 %v2752, %v2753
    %v2755 = vshll.u32 2131351028, %v2746
    %v2756 = vshrl.u32 2102212464, %v2747
    %v2757 = vor.u32 %v2755, %v2756
    %v2758 = vshll.u32 2102212464, %v2746
    %v2759 = vshrl.u32 920167782, %v2747
    %v2760 = vor.u32 %v2758, %v2759
    %v2761 = vshll.u32 920167782, %v2746
    %v2762 = vshrl.u32 1326507024, %v2747
    %v2763 = vor.u32 %v2761, %v2762
    %vm2764 = vcmp.lt.s32.totalorder %v2745, 1
    %vm2765 = vcmp.lt.s32.totalorder %v2745, 2
    %vm2766 = vcmp.lt.s32.totalorder %v2745, 3
    %vm2767 = vcmp.lt.s32.totalorder %v2745, 4
    %v2768 = vsel %vm2764, %v2748, %v2751
    %v2769 = vsel %vm2767, %v2757, 2102212464
    %v2770 = vsel %vm2766, %v2754, %v2769
    %v2771 = vsel %vm2765, %v2768, %v2770
    %v2772 = vsel %vm2764, %v2751, %v2754
    %v2773 = vsel %vm2767, %v2760, 920167782
    %v2774 = vsel %vm2766, %v2757, %v2773
    %v2775 = vsel %vm2765, %v2772, %v2774
    %v2776 = vsel %vm2764, %v2754, %v2757
    %v2777 = vsel %vm2767, %v2763, 1326507024
    %v2778 = vsel %vm2766, %v2760, %v2777
    %v2779 = vsel %vm2765, %v2776, %v2778
    %v2780 = vshll.u32 %v2740, 8
    %v2781 = vand.u32 %v2780, 65535
    %v2782 = vshrl.u32 %v2780, 16
    %v2783 = vand.u32 %v2779, 65535
    %v2784 = vshrl.u32 %v2779, 16
    %v2785 = vmul.u32 %v2781, %v2783
    %v2786 = vmul.u32 %v2781, %v2784
    %v2787 = vmul.u32 %v2782, %v2783
    %v2788 = vmul.u32 %v2782, %v2784
    %v2789 = vshll.u32 %v2786, 16
    %v2790 = vshrl.u32 %v2786, 16
    %v2791 = vshll.u32 %v2787, 16
    %v2792 = vshrl.u32 %v2787, 16
    %vm2793 = vc.u32 %v2785, %v2789
    %v2794 = vsel %vm2793, 1, 0
    %v2795 = vadd.s32 %v2785, %v2789
    %v2796 = vadd.s32 %v2788, %v2794
    %vm2797 = vc.u32 %v2795, %v2791
    %v2798 = vsel %vm2797, 1, 0
    %v2799 = vadd.s32 %v2795, %v2791
    %v2800 = vadd.s32 %v2796, %v2798
    %v2801 = vadd.s32 %v2800, %v2790
    %v2802 = vadd.s32 %v2801, %v2792
    %v2803 = vand.u32 %v2780, 65535
    %v2804 = vshrl.u32 %v2780, 16
    %v2805 = vand.u32 %v2775, 65535
    %v2806 = vshrl.u32 %v2775, 16
    %v2807 = vmul.u32 %v2803, %v2805
    %v2808 = vmul.u32 %v2803, %v2806
    %v2809 = vmul.u32 %v2804, %v2805
    %v2810 = vmul.u32 %v2804, %v2806
    %v2811 = vshll.u32 %v2808, 16
    %v2812 = vshrl.u32 %v2808, 16
    %v2813 = vshll.u32 %v2809, 16
    %v2814 = vshrl.u32 %v2809, 16
    %vm2815 = vc.u32 %v2807, %v2811
    %v2816 = vsel %vm2815, 1, 0
    %v2817 = vadd.s32 %v2807, %v2811
    %v2818 = vadd.s32 %v2810, %v2816
    %vm2819 = vc.u32 %v2817, %v2813
    %v2820 = vsel %vm2819, 1, 0
    %v2821 = vadd.s32 %v2817, %v2813
    %v2822 = vadd.s32 %v2818, %v2820
    %v2823 = vadd.s32 %v2822, %v2812
    %v2824 = vadd.s32 %v2823, %v2814
    %v2825 = vmul.u32 %v2780, %v2771
    %v2826 = vadd.s32 %v2802, %v2821
    %vm2827 = vc.u32 %v2802, %v2821
    %v2828 = vadd.s32 %v2824, 1
    %v2829 = vsel %vm2827, %v2828, %v2824
    %v2830 = vadd.s32 %v2825, %v2829
    %v2831 = vadd.s32 %v2830, 536870912
    %v2832 = vshrl.u32 %v2831, 30
    %v2833 = vshll.u32 %v2832, 30
    %v2834 = vsub.s32 %v2830, %v2833
    %vm2835 = vcmp.lt.s32.totalorder %v2834, 0
    %v2836 = vsub.s32 0, %v2834
    %v2837 = vsel %vm2835, %v2836, %v2834
    %v2838 = vclz %v2837
    %v2839 = vsub.s32 %v2838, 2
    %vm2840 = vcmp.gt.s32.totalorder 0, %v2839
    %v2841 = vsel %vm2840, 0, %v2839
    %v2842 = vsub.s32 32, %v2841
    %v2843 = vshll.u32 %v2834, %v2841
    %v2844 = vshrl.u32 %v2826, %v2842
    %v2845 = vor.u32 %v2843, %v2844
    %v2846 = vsub.s32 4294967266, %v2841
    %v2847 = vadd.s32 %v2846, 127
    %v2848 = vshll.u32 %v2847, 23
    %v2849 = vor.u32 4788187, %v2848
    %v2850 = vand.u32 2147483647, %v2849
    %v2852 = vcvt.s32.f32 %v2845
    %v2853 = vmul.f32 %v2852, %v2850
    %v2854 = vxor.u32 %v2853, 2147483648
    %v2855 = vsel %vm2734, %v2854, %v2853
    %v2856 = vsub.s32 4, %v2832
    %v2857 = vsel %vm2734, %v2856, %v2832
    %v2858 = vsel %vm2733, %v1083, %v2855
    %v2859 = vsel %vm2733, 0, %v2857
    %v2860 = vmul.f32 %v2858, %v2858
    %v2861 = vmul.f32 %v2860, -0.001358992
    %v2862 = vadd.f32 %v2861, 0.041655596
    %v2863 = vmul.f32 %v2860, %v2862
    %v2864 = vadd.f32 %v2863, -0.4999988
    %v2865 = vmul.f32 %v2860, %v2864
    %v2866 = vadd.f32 1.0, %v2865
    %v2867 = vmul.f32 %v2858, %v2858
    %v2868 = vmul.f32 %v2867, -0.00019511016
    %v2869 = vadd.f32 %v2868, 0.008332121
    %v2870 = vmul.f32 %v2867, %v2869
    %v2871 = vadd.f32 %v2870, -0.16666654
    %v2872 = vmul.f32 %v2867, %v2871
    %v2873 = vadd.f32 %v2872, 1.0
    %v2874 = vmul.f32 %v2873, %v2858
    %vm2875 = vweird.f32 %v1083
    %v2876 = vand.u32 %v2859, 3
    %vm2877 = vcmp.lt.s32.totalorder %v2876, 2
    %vm2878 = vcmp.eq.s32.totalorder %v2876, 0
    %v2879 = vxor.u32 %v2874, 2147483648
    %v2880 = vsel %vm2878, %v2866, %v2879
    %vm2881 = vcmp.eq.s32.totalorder %v2876, 2
    %v2882 = vxor.u32 %v2866, 2147483648
    %v2883 = vsel %vm2881, %v2882, %v2874
    %v2884 = vsel %vm2877, %v2880, %v2883
    %v2885 = vsel %vm2875, nan, %v2884
    %v2886 = vand.u32 2147483647, %v1320
    %vm2887 = vcmp.le.f32.partialorder %v2886, 0.7853982
    %vm2888 = vcmp.lt.s32.totalorder %v1320, 0
    %v2889 = vand.u32 %v1320, 2139095040
    %v2890 = vshrl.u32 %v2889, 23
    %v2891 = vsub.s32 %v2890, 127
    %v2892 = vand.u32 2147483647, %v1320
    %v2893 = vand.u32 %v2892, 8388607
    %v2894 = vor.u32 %v2893, 8388608
    %v2895 = vsub.s32 0, %v2894
    %v2896 = vadd.s32 %v2891, 1
    %vm2897 = vcmp.gt.s32.totalorder %v2896, 0
    %v2898 = vsel %vm2897, %v2896, 0
    %v2899 = vshrl.u32 %v2898, 5
    %v2900 = vand.u32 %v2898, 31
    %v2901 = vsub.s32 32, %v2900
    %v2902 = vshrl.u32 683565275, %v2901
    %v2903 = vshll.u32 683565275, %v2900
    %v2904 = vshrl.u32 2475754826, %v2901
    %v2905 = vor.u32 %v2903, %v2904
    %v2906 = vshll.u32 2475754826, %v2900
    %v2907 = vshrl.u32 2131351028, %v2901
    %v2908 = vor.u32 %v2906, %v2907
    %v2909 = vshll.u32 2131351028, %v2900
    %v2910 = vshrl.u32 2102212464, %v2901
    %v2911 = vor.u32 %v2909, %v2910
    %v2912 = vshll.u32 2102212464, %v2900
    %v2913 = vshrl.u32 920167782, %v2901
    %v2914 = vor.u32 %v2912, %v2913
    %v2915 = vshll.u32 920167782, %v2900
    %v2916 = vshrl.u32 1326507024, %v2901
    %v2917 = vor.u32 %v2915, %v2916
    %vm2918 = vcmp.lt.s32.totalorder %v2899, 1
    %vm2919 = vcmp.lt.s32.totalorder %v2899, 2
    %vm2920 = vcmp.lt.s32.totalorder %v2899, 3
    %vm2921 = vcmp.lt.s32.totalorder %v2899, 4
    %v2922 = vsel %vm2918, %v2902, %v2905
    %v2923 = vsel %vm2921, %v2911, 2102212464
    %v2924 = vsel %vm2920, %v2908, %v2923
    %v2925 = vsel %vm2919, %v2922, %v2924
    %v2926 = vsel %vm2918, %v2905, %v2908
    %v2927 = vsel %vm2921, %v2914, 920167782
    %v2928 = vsel %vm2920, %v2911, %v2927
    %v2929 = vsel %vm2919, %v2926, %v2928
    %v2930 = vsel %vm2918, %v2908, %v2911
    %v2931 = vsel %vm2921, %v2917, 1326507024
    %v2932 = vsel %vm2920, %v2914, %v2931
    %v2933 = vsel %vm2919, %v2930, %v2932
    %v2934 = vshll.u32 %v2894, 8
    %v2935 = vand.u32 %v2934, 65535
    %v2936 = vshrl.u32 %v2934, 16
    %v2937 = vand.u32 %v2933, 65535
    %v2938 = vshrl.u32 %v2933, 16
    %v2939 = vmul.u32 %v2935, %v2937
    %v2940 = vmul.u32 %v2935, %v2938
    %v2941 = vmul.u32 %v2936, %v2937
    %v2942 = vmul.u32 %v2936, %v2938
    %v2943 = vshll.u32 %v2940, 16
    %v2944 = vshrl.u32 %v2940, 16
    %v2945 = vshll.u32 %v2941, 16
    %v2946 = vshrl.u32 %v2941, 16
    %vm2947 = vc.u32 %v2939, %v2943
    %v2948 = vsel %vm2947, 1, 0
    %v2949 = vadd.s32 %v2939, %v2943
    %v2950 = vadd.s32 %v2942, %v2948
    %vm2951 = vc.u32 %v2949, %v2945
    %v2952 = vsel %vm2951, 1, 0
    %v2953 = vadd.s32 %v2949, %v2945
    %v2954 = vadd.s32 %v2950, %v2952
    %v2955 = vadd.s32 %v2954, %v2944
    %v2956 = vadd.s32 %v2955, %v2946
    %v2957 = vand.u32 %v2934, 65535
    %v2958 = vshrl.u32 %v2934, 16
    %v2959 = vand.u32 %v2929, 65535
    %v2960 = vshrl.u32 %v2929, 16
    %v2961 = vmul.u32 %v2957, %v2959
    %v2962 = vmul.u32 %v2957, %v2960
    %v2963 = vmul.u32 %v2958, %v2959
    %v2964 = vmul.u32 %v2958, %v2960
    %v2965 = vshll.u32 %v2962, 16
    %v2966 = vshrl.u32 %v2962, 16
    %v2967 = vshll.u32 %v2963, 16
    %v2968 = vshrl.u32 %v2963, 16
    %vm2969 = vc.u32 %v2961, %v2965
    %v2970 = vsel %vm2969, 1, 0
    %v2971 = vadd.s32 %v2961, %v2965
    %v2972 = vadd.s32 %v2964, %v2970
    %vm2973 = vc.u32 %v2971, %v2967
    %v2974 = vsel %vm2973, 1, 0
    %v2975 = vadd.s32 %v2971, %v2967
    %v2976 = vadd.s32 %v2972, %v2974
    %v2977 = vadd.s32 %v2976, %v2966
    %v2978 = vadd.s32 %v2977, %v2968
    %v2979 = vmul.u32 %v2934, %v2925
    %v2980 = vadd.s32 %v2956, %v2975
    %vm2981 = vc.u32 %v2956, %v2975
    %v2982 = vadd.s32 %v2978, 1
    %v2983 = vsel %vm2981, %v2982, %v2978
    %v2984 = vadd.s32 %v2979, %v2983
    %v2985 = vadd.s32 %v2984, 536870912
    %v2986 = vshrl.u32 %v2985, 30
    %v2987 = vshll.u32 %v2986, 30
    %v2988 = vsub.s32 %v2984, %v2987
    %vm2989 = vcmp.lt.s32.totalorder %v2988, 0
    %v2990 = vsub.s32 0, %v2988
    %v2991 = vsel %vm2989, %v2990, %v2988
    %v2992 = vclz %v2991
    %v2993 = vsub.s32 %v2992, 2
    %vm2994 = vcmp.gt.s32.totalorder 0, %v2993
    %v2995 = vsel %vm2994, 0, %v2993
    %v2996 = vsub.s32 32, %v2995
    %v2997 = vshll.u32 %v2988, %v2995
    %v2998 = vshrl.u32 %v2980, %v2996
    %v2999 = vor.u32 %v2997, %v2998
    %v3000 = vsub.s32 4294967266, %v2995
    %v3001 = vadd.s32 %v3000, 127
    %v3002 = vshll.u32 %v3001, 23
    %v3003 = vor.u32 4788187, %v3002
    %v3004 = vand.u32 2147483647, %v3003
    %v3006 = vcvt.s32.f32 %v2999
    %v3007 = vmul.f32 %v3006, %v3004
    %v3008 = vxor.u32 %v3007, 2147483648
    %v3009 = vsel %vm2888, %v3008, %v3007
    %v3010 = vsub.s32 4, %v2986
    %v3011 = vsel %vm2888, %v3010, %v2986
    %v3012 = vsel %vm2887, %v1320, %v3009
    %v3013 = vsel %vm2887, 0, %v3011
    %v3014 = vmul.f32 %v3012, %v3012
    %v3015 = vmul.f32 %v3014, -0.001358992
    %v3016 = vadd.f32 %v3015, 0.041655596
    %v3017 = vmul.f32 %v3014, %v3016
    %v3018 = vadd.f32 %v3017, -0.4999988
    %v3019 = vmul.f32 %v3014, %v3018
    %v3020 = vadd.f32 1.0, %v3019
    %v3021 = vmul.f32 %v3012, %v3012
    %v3022 = vmul.f32 %v3021, -0.00019511016
    %v3023 = vadd.f32 %v3022, 0.008332121
    %v3024 = vmul.f32 %v3021, %v3023
    %v3025 = vadd.f32 %v3024, -0.16666654
    %v3026 = vmul.f32 %v3021, %v3025
    %v3027 = vadd.f32 %v3026, 1.0
    %v3028 = vmul.f32 %v3027, %v3012
    %vm3029 = vweird.f32 %v1320
    %v3030 = vand.u32 %v3013, 3
    %vm3031 = vcmp.lt.s32.totalorder %v3030, 2
    %vm3032 = vcmp.eq.s32.totalorder %v3030, 0
    %v3033 = vxor.u32 %v3028, 2147483648
    %v3034 = vsel %vm3032, %v3020, %v3033
    %vm3035 = vcmp.eq.s32.totalorder %v3030, 2
    %v3036 = vxor.u32 %v3020, 2147483648
    %v3037 = vsel %vm3035, %v3036, %v3028
    %v3038 = vsel %vm3031, %v3034, %v3037
    %v3039 = vsel %vm3029, nan, %v3038
    %v3040 = vand.u32 2147483647, %v1557
    %vm3041 = vcmp.le.f32.partialorder %v3040, 0.7853982
    %vm3042 = vcmp.lt.s32.totalorder %v1557, 0
    %v3043 = vand.u32 %v1557, 2139095040
    %v3044 = vshrl.u32 %v3043, 23
    %v3045 = vsub.s32 %v3044, 127
    %v3046 = vand.u32 2147483647, %v1557
    %v3047 = vand.u32 %v3046, 8388607
    %v3048 = vor.u32 %v3047, 8388608
    %v3049 = vsub.s32 0, %v3048
    %v3050 = vadd.s32 %v3045, 1
    %vm3051 = vcmp.gt.s32.totalorder %v3050, 0
    %v3052 = vsel %vm3051, %v3050, 0
    %v3053 = vshrl.u32 %v3052, 5
    %v3054 = vand.u32 %v3052, 31
    %v3055 = vsub.s32 32, %v3054
    %v3056 = vshrl.u32 683565275, %v3055
    %v3057 = vshll.u32 683565275, %v3054
    %v3058 = vshrl.u32 2475754826, %v3055
    %v3059 = vor.u32 %v3057, %v3058
    %v3060 = vshll.u32 2475754826, %v3054
    %v3061 = vshrl.u32 2131351028, %v3055
    %v3062 = vor.u32 %v3060, %v3061
    %v3063 = vshll.u32 2131351028, %v3054
    %v3064 = vshrl.u32 2102212464, %v3055
    %v3065 = vor.u32 %v3063, %v3064
    %v3066 = vshll.u32 2102212464, %v3054
    %v3067 = vshrl.u32 920167782, %v3055
    %v3068 = vor.u32 %v3066, %v3067
    %v3069 = vshll.u32 920167782, %v3054
    %v3070 = vshrl.u32 1326507024, %v3055
    %v3071 = vor.u32 %v3069, %v3070
    %vm3072 = vcmp.lt.s32.totalorder %v3053, 1
    %vm3073 = vcmp.lt.s32.totalorder %v3053, 2
    %vm3074 = vcmp.lt.s32.totalorder %v3053, 3
    %vm3075 = vcmp.lt.s32.totalorder %v3053, 4
    %v3076 = vsel %vm3072, %v3056, %v3059
    %v3077 = vsel %vm3075, %v3065, 2102212464
    %v3078 = vsel %vm3074, %v3062, %v3077
    %v3079 = vsel %vm3073, %v3076, %v3078
    %v3080 = vsel %vm3072, %v3059, %v3062
    %v3081 = vsel %vm3075, %v3068, 920167782
    %v3082 = vsel %vm3074, %v3065, %v3081
    %v3083 = vsel %vm3073, %v3080, %v3082
    %v3084 = vsel %vm3072, %v3062, %v3065
    %v3085 = vsel %vm3075, %v3071, 1326507024
    %v3086 = vsel %vm3074, %v3068, %v3085
    %v3087 = vsel %vm3073, %v3084, %v3086
    %v3088 = vshll.u32 %v3048, 8
    %v3089 = vand.u32 %v3088, 65535
    %v3090 = vshrl.u32 %v3088, 16
    %v3091 = vand.u32 %v3087, 65535
    %v3092 = vshrl.u32 %v3087, 16
    %v3093 = vmul.u32 %v3089, %v3091
    %v3094 = vmul.u32 %v3089, %v3092
    %v3095 = vmul.u32 %v3090, %v3091
    %v3096 = vmul.u32 %v3090, %v3092
    %v3097 = vshll.u32 %v3094, 16
    %v3098 = vshrl.u32 %v3094, 16
    %v3099 = vshll.u32 %v3095, 16
    %v3100 = vshrl.u32 %v3095, 16
    %vm3101 = vc.u32 %v3093, %v3097
    %v3102 = vsel %vm3101, 1, 0
    %v3103 = vadd.s32 %v3093, %v3097
    %v3104 = vadd.s32 %v3096, %v3102
    %vm3105 = vc.u32 %v3103, %v3099
    %v3106 = vsel %vm3105, 1, 0
    %v3107 = vadd.s32 %v3103, %v3099
    %v3108 = vadd.s32 %v3104, %v3106
    %v3109 = vadd.s32 %v3108, %v3098
    %v3110 = vadd.s32 %v3109, %v3100
    %v3111 = vand.u32 %v3088, 65535
    %v3112 = vshrl.u32 %v3088, 16
    %v3113 = vand.u32 %v3083, 65535
    %v3114 = vshrl.u32 %v3083, 16
    %v3115 = vmul.u32 %v3111, %v3113
    %v3116 = vmul.u32 %v3111, %v3114
    %v3117 = vmul.u32 %v3112, %v3113
    %v3118 = vmul.u32 %v3112, %v3114
    %v3119 = vshll.u32 %v3116, 16
    %v3120 = vshrl.u32 %v3116, 16
    %v3121 = vshll.u32 %v3117, 16
    %v3122 = vshrl.u32 %v3117, 16
    %vm3123 = vc.u32 %v3115, %v3119
    %v3124 = vsel %vm3123, 1, 0
    %v3125 = vadd.s32 %v3115, %v3119
    %v3126 = vadd.s32 %v3118, %v3124
    %vm3127 = vc.u32 %v3125, %v3121
    %v3128 = vsel %vm3127, 1, 0
    %v3129 = vadd.s32 %v3125, %v3121
    %v3130 = vadd.s32 %v3126, %v3128
    %v3131 = vadd.s32 %v3130, %v3120
    %v3132 = vadd.s32 %v3131, %v3122
    %v3133 = vmul.u32 %v3088, %v3079
    %v3134 = vadd.s32 %v3110, %v3129
    %vm3135 = vc.u32 %v3110, %v3129
    %v3136 = vadd.s32 %v3132, 1
    %v3137 = vsel %vm3135, %v3136, %v3132
    %v3138 = vadd.s32 %v3133, %v3137
    %v3139 = vadd.s32 %v3138, 536870912
    %v3140 = vshrl.u32 %v3139, 30
    %v3141 = vshll.u32 %v3140, 30
    %v3142 = vsub.s32 %v3138, %v3141
    %vm3143 = vcmp.lt.s32.totalorder %v3142, 0
    %v3144 = vsub.s32 0, %v3142
    %v3145 = vsel %vm3143, %v3144, %v3142
    %v3146 = vclz %v3145
    %v3147 = vsub.s32 %v3146, 2
    %vm3148 = vcmp.gt.s32.totalorder 0, %v3147
    %v3149 = vsel %vm3148, 0, %v3147
    %v3150 = vsub.s32 32, %v3149
    %v3151 = vshll.u32 %v3142, %v3149
    %v3152 = vshrl.u32 %v3134, %v3150
    %v3153 = vor.u32 %v3151, %v3152
    %v3154 = vsub.s32 4294967266, %v3149
    %v3155 = vadd.s32 %v3154, 127
    %v3156 = vshll.u32 %v3155, 23
    %v3157 = vor.u32 4788187, %v3156
    %v3158 = vand.u32 2147483647, %v3157
    %v3160 = vcvt.s32.f32 %v3153
    %v3161 = vmul.f32 %v3160, %v3158
    %v3162 = vxor.u32 %v3161, 2147483648
    %v3163 = vsel %vm3042, %v3162, %v3161
    %v3164 = vsub.s32 4, %v3140
    %v3165 = vsel %vm3042, %v3164, %v3140
    %v3166 = vsel %vm3041, %v1557, %v3163
    %v3167 = vsel %vm3041, 0, %v3165
    %v3168 = vmul.f32 %v3166, %v3166
    %v3169 = vmul.f32 %v3168, -0.001358992
    %v3170 = vadd.f32 %v3169, 0.041655596
    %v3171 = vmul.f32 %v3168, %v3170
    %v3172 = vadd.f32 %v3171, -0.4999988
    %v3173 = vmul.f32 %v3168, %v3172
    %v3174 = vadd.f32 1.0, %v3173
    %v3175 = vmul.f32 %v3166, %v3166
    %v3176 = vmul.f32 %v3175, -0.00019511016
    %v3177 = vadd.f32 %v3176, 0.008332121
    %v3178 = vmul.f32 %v3175, %v3177
    %v3179 = vadd.f32 %v3178, -0.16666654
    %v3180 = vmul.f32 %v3175, %v3179
    %v3181 = vadd.f32 %v3180, 1.0
    %v3182 = vmul.f32 %v3181, %v3166
    %vm3183 = vweird.f32 %v1557
    %v3184 = vand.u32 %v3167, 3
    %vm3185 = vcmp.lt.s32.totalorder %v3184, 2
    %vm3186 = vcmp.eq.s32.totalorder %v3184, 0
    %v3187 = vxor.u32 %v3182, 2147483648
    %v3188 = vsel %vm3186, %v3174, %v3187
    %vm3189 = vcmp.eq.s32.totalorder %v3184, 2
    %v3190 = vxor.u32 %v3174, 2147483648
    %v3191 = vsel %vm3189, %v3190, %v3182
    %v3192 = vsel %vm3185, %v3188, %v3191
    %v3193 = vsel %vm3183, nan, %v3192
    %v3194 = vand.u32 2147483647, %v1794
    %vm3195 = vcmp.le.f32.partialorder %v3194, 0.7853982
    %vm3196 = vcmp.lt.s32.totalorder %v1794, 0
    %v3197 = vand.u32 %v1794, 2139095040
    %v3198 = vshrl.u32 %v3197, 23
    %v3199 = vsub.s32 %v3198, 127
    %v3200 = vand.u32 2147483647, %v1794
    %v3201 = vand.u32 %v3200, 8388607
    %v3202 = vor.u32 %v3201, 8388608
    %v3203 = vsub.s32 0, %v3202
    %v3204 = vadd.s32 %v3199, 1
    %vm3205 = vcmp.gt.s32.totalorder %v3204, 0
    %v3206 = vsel %vm3205, %v3204, 0
    %v3207 = vshrl.u32 %v3206, 5
    %v3208 = vand.u32 %v3206, 31
    %v3209 = vsub.s32 32, %v3208
    %v3210 = vshrl.u32 683565275, %v3209
    %v3211 = vshll.u32 683565275, %v3208
    %v3212 = vshrl.u32 2475754826, %v3209
    %v3213 = vor.u32 %v3211, %v3212
    %v3214 = vshll.u32 2475754826, %v3208
    %v3215 = vshrl.u32 2131351028, %v3209
    %v3216 = vor.u32 %v3214, %v3215
    %v3217 = vshll.u32 2131351028, %v3208
    %v3218 = vshrl.u32 2102212464, %v3209
    %v3219 = vor.u32 %v3217, %v3218
    %v3220 = vshll.u32 2102212464, %v3208
    %v3221 = vshrl.u32 920167782, %v3209
    %v3222 = vor.u32 %v3220, %v3221
    %v3223 = vshll.u32 920167782, %v3208
    %v3224 = vshrl.u32 1326507024, %v3209
    %v3225 = vor.u32 %v3223, %v3224
    %vm3226 = vcmp.lt.s32.totalorder %v3207, 1
    %vm3227 = vcmp.lt.s32.totalorder %v3207, 2
    %vm3228 = vcmp.lt.s32.totalorder %v3207, 3
    %vm3229 = vcmp.lt.s32.totalorder %v3207, 4
    %v3230 = vsel %vm3226, %v3210, %v3213
    %v3231 = vsel %vm3229, %v3219, 2102212464
    %v3232 = vsel %vm3228, %v3216, %v3231
    %v3233 = vsel %vm3227, %v3230, %v3232
    %v3234 = vsel %vm3226, %v3213, %v3216
    %v3235 = vsel %vm3229, %v3222, 920167782
    %v3236 = vsel %vm3228, %v3219, %v3235
    %v3237 = vsel %vm3227, %v3234, %v3236
    %v3238 = vsel %vm3226, %v3216, %v3219
    %v3239 = vsel %vm3229, %v3225, 1326507024
    %v3240 = vsel %vm3228, %v3222, %v3239
    %v3241 = vsel %vm3227, %v3238, %v3240
    %v3242 = vshll.u32 %v3202, 8
    %v3243 = vand.u32 %v3242, 65535
    %v3244 = vshrl.u32 %v3242, 16
    %v3245 = vand.u32 %v3241, 65535
    %v3246 = vshrl.u32 %v3241, 16
    %v3247 = vmul.u32 %v3243, %v3245
    %v3248 = vmul.u32 %v3243, %v3246
    %v3249 = vmul.u32 %v3244, %v3245
    %v3250 = vmul.u32 %v3244, %v3246
    %v3251 = vshll.u32 %v3248, 16
    %v3252 = vshrl.u32 %v3248, 16
    %v3253 = vshll.u32 %v3249, 16
    %v3254 = vshrl.u32 %v3249, 16
    %vm3255 = vc.u32 %v3247, %v3251
    %v3256 = vsel %vm3255, 1, 0
    %v3257 = vadd.s32 %v3247, %v3251
    %v3258 = vadd.s32 %v3250, %v3256
    %vm3259 = vc.u32 %v3257, %v3253
    %v3260 = vsel %vm3259, 1, 0
    %v3261 = vadd.s32 %v3257, %v3253
    %v3262 = vadd.s32 %v3258, %v3260
    %v3263 = vadd.s32 %v3262, %v3252
    %v3264 = vadd.s32 %v3263, %v3254
    %v3265 = vand.u32 %v3242, 65535
    %v3266 = vshrl.u32 %v3242, 16
    %v3267 = vand.u32 %v3237, 65535
    %v3268 = vshrl.u32 %v3237, 16
    %v3269 = vmul.u32 %v3265, %v3267
    %v3270 = vmul.u32 %v3265, %v3268
    %v3271 = vmul.u32 %v3266, %v3267
    %v3272 = vmul.u32 %v3266, %v3268
    %v3273 = vshll.u32 %v3270, 16
    %v3274 = vshrl.u32 %v3270, 16
    %v3275 = vshll.u32 %v3271, 16
    %v3276 = vshrl.u32 %v3271, 16
    %vm3277 = vc.u32 %v3269, %v3273
    %v3278 = vsel %vm3277, 1, 0
    %v3279 = vadd.s32 %v3269, %v3273
    %v3280 = vadd.s32 %v3272, %v3278
    %vm3281 = vc.u32 %v3279, %v3275
    %v3282 = vsel %vm3281, 1, 0
    %v3283 = vadd.s32 %v3279, %v3275
    %v3284 = vadd.s32 %v3280, %v3282
    %v3285 = vadd.s32 %v3284, %v3274
    %v3286 = vadd.s32 %v3285, %v3276
    %v3287 = vmul.u32 %v3242, %v3233
    %v3288 = vadd.s32 %v3264, %v3283
    %vm3289 = vc.u32 %v3264, %v3283
    %v3290 = vadd.s32 %v3286, 1
    %v3291 = vsel %vm3289, %v3290, %v3286
    %v3292 = vadd.s32 %v3287, %v3291
    %v3293 = vadd.s32 %v3292, 536870912
    %v3294 = vshrl.u32 %v3293, 30
    %v3295 = vshll.u32 %v3294, 30
    %v3296 = vsub.s32 %v3292, %v3295
    %vm3297 = vcmp.lt.s32.totalorder %v3296, 0
    %v3298 = vsub.s32 0, %v3296
    %v3299 = vsel %vm3297, %v3298, %v3296
    %v3300 = vclz %v3299
    %v3301 = vsub.s32 %v3300, 2
    %vm3302 = vcmp.gt.s32.totalorder 0, %v3301
    %v3303 = vsel %vm3302, 0, %v3301
    %v3304 = vsub.s32 32, %v3303
    %v3305 = vshll.u32 %v3296, %v3303
    %v3306 = vshrl.u32 %v3288, %v3304
    %v3307 = vor.u32 %v3305, %v3306
    %v3308 = vsub.s32 4294967266, %v3303
    %v3309 = vadd.s32 %v3308, 127
    %v3310 = vshll.u32 %v3309, 23
    %v3311 = vor.u32 4788187, %v3310
    %v3312 = vand.u32 2147483647, %v3311
    %v3314 = vcvt.s32.f32 %v3307
    %v3315 = vmul.f32 %v3314, %v3312
    %v3316 = vxor.u32 %v3315, 2147483648
    %v3317 = vsel %vm3196, %v3316, %v3315
    %v3318 = vsub.s32 4, %v3294
    %v3319 = vsel %vm3196, %v3318, %v3294
    %v3320 = vsel %vm3195, %v1794, %v3317
    %v3321 = vsel %vm3195, 0, %v3319
    %v3322 = vmul.f32 %v3320, %v3320
    %v3323 = vmul.f32 %v3322, -0.001358992
    %v3324 = vadd.f32 %v3323, 0.041655596
    %v3325 = vmul.f32 %v3322, %v3324
    %v3326 = vadd.f32 %v3325, -0.4999988
    %v3327 = vmul.f32 %v3322, %v3326
    %v3328 = vadd.f32 1.0, %v3327
    %v3329 = vmul.f32 %v3320, %v3320
    %v3330 = vmul.f32 %v3329, -0.00019511016
    %v3331 = vadd.f32 %v3330, 0.008332121
    %v3332 = vmul.f32 %v3329, %v3331
    %v3333 = vadd.f32 %v3332, -0.16666654
    %v3334 = vmul.f32 %v3329, %v3333
    %v3335 = vadd.f32 %v3334, 1.0
    %v3336 = vmul.f32 %v3335, %v3320
    %vm3337 = vweird.f32 %v1794
    %v3338 = vand.u32 %v3321, 3
    %vm3339 = vcmp.lt.s32.totalorder %v3338, 2
    %vm3340 = vcmp.eq.s32.totalorder %v3338, 0
    %v3341 = vxor.u32 %v3336, 2147483648
    %v3342 = vsel %vm3340, %v3328, %v3341
    %vm3343 = vcmp.eq.s32.totalorder %v3338, 2
    %v3344 = vxor.u32 %v3328, 2147483648
    %v3345 = vsel %vm3343, %v3344, %v3336
    %v3346 = vsel %vm3339, %v3342, %v3345
    %v3347 = vsel %vm3337, nan, %v3346
    %v3348 = vand.u32 2147483647, %v2031
    %vm3349 = vcmp.le.f32.partialorder %v3348, 0.7853982
    %vm3350 = vcmp.lt.s32.totalorder %v2031, 0
    %v3351 = vand.u32 %v2031, 2139095040
    %v3352 = vshrl.u32 %v3351, 23
    %v3353 = vsub.s32 %v3352, 127
    %v3354 = vand.u32 2147483647, %v2031
    %v3355 = vand.u32 %v3354, 8388607
    %v3356 = vor.u32 %v3355, 8388608
    %v3357 = vsub.s32 0, %v3356
    %v3358 = vadd.s32 %v3353, 1
    %vm3359 = vcmp.gt.s32.totalorder %v3358, 0
    %v3360 = vsel %vm3359, %v3358, 0
    %v3361 = vshrl.u32 %v3360, 5
    %v3362 = vand.u32 %v3360, 31
    %v3363 = vsub.s32 32, %v3362
    %v3364 = vshrl.u32 683565275, %v3363
    %v3365 = vshll.u32 683565275, %v3362
    %v3366 = vshrl.u32 2475754826, %v3363
    %v3367 = vor.u32 %v3365, %v3366
    %v3368 = vshll.u32 2475754826, %v3362
    %v3369 = vshrl.u32 2131351028, %v3363
    %v3370 = vor.u32 %v3368, %v3369
    %v3371 = vshll.u32 2131351028, %v3362
    %v3372 = vshrl.u32 2102212464, %v3363
    %v3373 = vor.u32 %v3371, %v3372
    %v3374 = vshll.u32 2102212464, %v3362
    %v3375 = vshrl.u32 920167782, %v3363
    %v3376 = vor.u32 %v3374, %v3375
    %v3377 = vshll.u32 920167782, %v3362
    %v3378 = vshrl.u32 1326507024, %v3363
    %v3379 = vor.u32 %v3377, %v3378
    %vm3380 = vcmp.lt.s32.totalorder %v3361, 1
    %vm3381 = vcmp.lt.s32.totalorder %v3361, 2
    %vm3382 = vcmp.lt.s32.totalorder %v3361, 3
    %vm3383 = vcmp.lt.s32.totalorder %v3361, 4
    %v3384 = vsel %vm3380, %v3364, %v3367
    %v3385 = vsel %vm3383, %v3373, 2102212464
    %v3386 = vsel %vm3382, %v3370, %v3385
    %v3387 = vsel %vm3381, %v3384, %v3386
    %v3388 = vsel %vm3380, %v3367, %v3370
    %v3389 = vsel %vm3383, %v3376, 920167782
    %v3390 = vsel %vm3382, %v3373, %v3389
    %v3391 = vsel %vm3381, %v3388, %v3390
    %v3392 = vsel %vm3380, %v3370, %v3373
    %v3393 = vsel %vm3383, %v3379, 1326507024
    %v3394 = vsel %vm3382, %v3376, %v3393
    %v3395 = vsel %vm3381, %v3392, %v3394
    %v3396 = vshll.u32 %v3356, 8
    %v3397 = vand.u32 %v3396, 65535
    %v3398 = vshrl.u32 %v3396, 16
    %v3399 = vand.u32 %v3395, 65535
    %v3400 = vshrl.u32 %v3395, 16
    %v3401 = vmul.u32 %v3397, %v3399
    %v3402 = vmul.u32 %v3397, %v3400
    %v3403 = vmul.u32 %v3398, %v3399
    %v3404 = vmul.u32 %v3398, %v3400
    %v3405 = vshll.u32 %v3402, 16
    %v3406 = vshrl.u32 %v3402, 16
    %v3407 = vshll.u32 %v3403, 16
    %v3408 = vshrl.u32 %v3403, 16
    %vm3409 = vc.u32 %v3401, %v3405
    %v3410 = vsel %vm3409, 1, 0
    %v3411 = vadd.s32 %v3401, %v3405
    %v3412 = vadd.s32 %v3404, %v3410
    %vm3413 = vc.u32 %v3411, %v3407
    %v3414 = vsel %vm3413, 1, 0
    %v3415 = vadd.s32 %v3411, %v3407
    %v3416 = vadd.s32 %v3412, %v3414
    %v3417 = vadd.s32 %v3416, %v3406
    %v3418 = vadd.s32 %v3417, %v3408
    %v3419 = vand.u32 %v3396, 65535
    %v3420 = vshrl.u32 %v3396, 16
    %v3421 = vand.u32 %v3391, 65535
    %v3422 = vshrl.u32 %v3391, 16
    %v3423 = vmul.u32 %v3419, %v3421
    %v3424 = vmul.u32 %v3419, %v3422
    %v3425 = vmul.u32 %v3420, %v3421
    %v3426 = vmul.u32 %v3420, %v3422
    %v3427 = vshll.u32 %v3424, 16
    %v3428 = vshrl.u32 %v3424, 16
    %v3429 = vshll.u32 %v3425, 16
    %v3430 = vshrl.u32 %v3425, 16
    %vm3431 = vc.u32 %v3423, %v3427
    %v3432 = vsel %vm3431, 1, 0
    %v3433 = vadd.s32 %v3423, %v3427
    %v3434 = vadd.s32 %v3426, %v3432
    %vm3435 = vc.u32 %v3433, %v3429
    %v3436 = vsel %vm3435, 1, 0
    %v3437 = vadd.s32 %v3433, %v3429
    %v3438 = vadd.s32 %v3434, %v3436
    %v3439 = vadd.s32 %v3438, %v3428
    %v3440 = vadd.s32 %v3439, %v3430
    %v3441 = vmul.u32 %v3396, %v3387
    %v3442 = vadd.s32 %v3418, %v3437
    %vm3443 = vc.u32 %v3418, %v3437
    %v3444 = vadd.s32 %v3440, 1
    %v3445 = vsel %vm3443, %v3444, %v3440
    %v3446 = vadd.s32 %v3441, %v3445
    %v3447 = vadd.s32 %v3446, 536870912
    %v3448 = vshrl.u32 %v3447, 30
    %v3449 = vshll.u32 %v3448, 30
    %v3450 = vsub.s32 %v3446, %v3449
    %vm3451 = vcmp.lt.s32.totalorder %v3450, 0
    %v3452 = vsub.s32 0, %v3450
    %v3453 = vsel %vm3451, %v3452, %v3450
    %v3454 = vclz %v3453
    %v3455 = vsub.s32 %v3454, 2
    %vm3456 = vcmp.gt.s32.totalorder 0, %v3455
    %v3457 = vsel %vm3456, 0, %v3455
    %v3458 = vsub.s32 32, %v3457
    %v3459 = vshll.u32 %v3450, %v3457
    %v3460 = vshrl.u32 %v3442, %v3458
    %v3461 = vor.u32 %v3459, %v3460
    %v3462 = vsub.s32 4294967266, %v3457
    %v3463 = vadd.s32 %v3462, 127
    %v3464 = vshll.u32 %v3463, 23
    %v3465 = vor.u32 4788187, %v3464
    %v3466 = vand.u32 2147483647, %v3465
    %v3468 = vcvt.s32.f32 %v3461
    %v3469 = vmul.f32 %v3468, %v3466
    %v3470 = vxor.u32 %v3469, 2147483648
    %v3471 = vsel %vm3350, %v3470, %v3469
    %v3472 = vsub.s32 4, %v3448
    %v3473 = vsel %vm3350, %v3472, %v3448
    %v3474 = vsel %vm3349, %v2031, %v3471
    %v3475 = vsel %vm3349, 0, %v3473
    %v3476 = vmul.f32 %v3474, %v3474
    %v3477 = vmul.f32 %v3476, -0.001358992
    %v3478 = vadd.f32 %v3477, 0.041655596
    %v3479 = vmul.f32 %v3476, %v3478
    %v3480 = vadd.f32 %v3479, -0.4999988
    %v3481 = vmul.f32 %v3476, %v3480
    %v3482 = vadd.f32 1.0, %v3481
    %v3483 = vmul.f32 %v3474, %v3474
    %v3484 = vmul.f32 %v3483, -0.00019511016
    %v3485 = vadd.f32 %v3484, 0.008332121
    %v3486 = vmul.f32 %v3483, %v3485
    %v3487 = vadd.f32 %v3486, -0.16666654
    %v3488 = vmul.f32 %v3483, %v3487
    %v3489 = vadd.f32 %v3488, 1.0
    %v3490 = vmul.f32 %v3489, %v3474
    %vm3491 = vweird.f32 %v2031
    %v3492 = vand.u32 %v3475, 3
    %vm3493 = vcmp.lt.s32.totalorder %v3492, 2
    %vm3494 = vcmp.eq.s32.totalorder %v3492, 0
    %v3495 = vxor.u32 %v3490, 2147483648
    %v3496 = vsel %vm3494, %v3482, %v3495
    %vm3497 = vcmp.eq.s32.totalorder %v3492, 2
    %v3498 = vxor.u32 %v3482, 2147483648
    %v3499 = vsel %vm3497, %v3498, %v3490
    %v3500 = vsel %vm3493, %v3496, %v3499
    %v3501 = vsel %vm3491, nan, %v3500
    %v3502 = vand.u32 2147483647, %v2268
    %vm3503 = vcmp.le.f32.partialorder %v3502, 0.7853982
    %vm3504 = vcmp.lt.s32.totalorder %v2268, 0
    %v3505 = vand.u32 %v2268, 2139095040
    %v3506 = vshrl.u32 %v3505, 23
    %v3507 = vsub.s32 %v3506, 127
    %v3508 = vand.u32 2147483647, %v2268
    %v3509 = vand.u32 %v3508, 8388607
    %v3510 = vor.u32 %v3509, 8388608
    %v3511 = vsub.s32 0, %v3510
    %v3512 = vadd.s32 %v3507, 1
    %vm3513 = vcmp.gt.s32.totalorder %v3512, 0
    %v3514 = vsel %vm3513, %v3512, 0
    %v3515 = vshrl.u32 %v3514, 5
    %v3516 = vand.u32 %v3514, 31
    %v3517 = vsub.s32 32, %v3516
    %v3518 = vshrl.u32 683565275, %v3517
    %v3519 = vshll.u32 683565275, %v3516
    %v3520 = vshrl.u32 2475754826, %v3517
    %v3521 = vor.u32 %v3519, %v3520
    %v3522 = vshll.u32 2475754826, %v3516
    %v3523 = vshrl.u32 2131351028, %v3517
    %v3524 = vor.u32 %v3522, %v3523
    %v3525 = vshll.u32 2131351028, %v3516
    %v3526 = vshrl.u32 2102212464, %v3517
    %v3527 = vor.u32 %v3525, %v3526
    %v3528 = vshll.u32 2102212464, %v3516
    %v3529 = vshrl.u32 920167782, %v3517
    %v3530 = vor.u32 %v3528, %v3529
    %v3531 = vshll.u32 920167782, %v3516
    %v3532 = vshrl.u32 1326507024, %v3517
    %v3533 = vor.u32 %v3531, %v3532
    %vm3534 = vcmp.lt.s32.totalorder %v3515, 1
    %vm3535 = vcmp.lt.s32.totalorder %v3515, 2
    %vm3536 = vcmp.lt.s32.totalorder %v3515, 3
    %vm3537 = vcmp.lt.s32.totalorder %v3515, 4
    %v3538 = vsel %vm3534, %v3518, %v3521
    %v3539 = vsel %vm3537, %v3527, 2102212464
    %v3540 = vsel %vm3536, %v3524, %v3539
    %v3541 = vsel %vm3535, %v3538, %v3540
    %v3542 = vsel %vm3534, %v3521, %v3524
    %v3543 = vsel %vm3537, %v3530, 920167782
    %v3544 = vsel %vm3536, %v3527, %v3543
    %v3545 = vsel %vm3535, %v3542, %v3544
    %v3546 = vsel %vm3534, %v3524, %v3527
    %v3547 = vsel %vm3537, %v3533, 1326507024
    %v3548 = vsel %vm3536, %v3530, %v3547
    %v3549 = vsel %vm3535, %v3546, %v3548
    %v3550 = vshll.u32 %v3510, 8
    %v3551 = vand.u32 %v3550, 65535
    %v3552 = vshrl.u32 %v3550, 16
    %v3553 = vand.u32 %v3549, 65535
    %v3554 = vshrl.u32 %v3549, 16
    %v3555 = vmul.u32 %v3551, %v3553
    %v3556 = vmul.u32 %v3551, %v3554
    %v3557 = vmul.u32 %v3552, %v3553
    %v3558 = vmul.u32 %v3552, %v3554
    %v3559 = vshll.u32 %v3556, 16
    %v3560 = vshrl.u32 %v3556, 16
    %v3561 = vshll.u32 %v3557, 16
    %v3562 = vshrl.u32 %v3557, 16
    %vm3563 = vc.u32 %v3555, %v3559
    %v3564 = vsel %vm3563, 1, 0
    %v3565 = vadd.s32 %v3555, %v3559
    %v3566 = vadd.s32 %v3558, %v3564
    %vm3567 = vc.u32 %v3565, %v3561
    %v3568 = vsel %vm3567, 1, 0
    %v3569 = vadd.s32 %v3565, %v3561
    %v3570 = vadd.s32 %v3566, %v3568
    %v3571 = vadd.s32 %v3570, %v3560
    %v3572 = vadd.s32 %v3571, %v3562
    %v3573 = vand.u32 %v3550, 65535
    %v3574 = vshrl.u32 %v3550, 16
    %v3575 = vand.u32 %v3545, 65535
    %v3576 = vshrl.u32 %v3545, 16
    %v3577 = vmul.u32 %v3573, %v3575
    %v3578 = vmul.u32 %v3573, %v3576
    %v3579 = vmul.u32 %v3574, %v3575
    %v3580 = vmul.u32 %v3574, %v3576
    %v3581 = vshll.u32 %v3578, 16
    %v3582 = vshrl.u32 %v3578, 16
    %v3583 = vshll.u32 %v3579, 16
    %v3584 = vshrl.u32 %v3579, 16
    %vm3585 = vc.u32 %v3577, %v3581
    %v3586 = vsel %vm3585, 1, 0
    %v3587 = vadd.s32 %v3577, %v3581
    %v3588 = vadd.s32 %v3580, %v3586
    %vm3589 = vc.u32 %v3587, %v3583
    %v3590 = vsel %vm3589, 1, 0
    %v3591 = vadd.s32 %v3587, %v3583
    %v3592 = vadd.s32 %v3588, %v3590
    %v3593 = vadd.s32 %v3592, %v3582
    %v3594 = vadd.s32 %v3593, %v3584
    %v3595 = vmul.u32 %v3550, %v3541
    %v3596 = vadd.s32 %v3572, %v3591
    %vm3597 = vc.u32 %v3572, %v3591
    %v3598 = vadd.s32 %v3594, 1
    %v3599 = vsel %vm3597, %v3598, %v3594
    %v3600 = vadd.s32 %v3595, %v3599
    %v3601 = vadd.s32 %v3600, 536870912
    %v3602 = vshrl.u32 %v3601, 30
    %v3603 = vshll.u32 %v3602, 30
    %v3604 = vsub.s32 %v3600, %v3603
    %vm3605 = vcmp.lt.s32.totalorder %v3604, 0
    %v3606 = vsub.s32 0, %v3604
    %v3607 = vsel %vm3605, %v3606, %v3604
    %v3608 = vclz %v3607
    %v3609 = vsub.s32 %v3608, 2
    %vm3610 = vcmp.gt.s32.totalorder 0, %v3609
    %v3611 = vsel %vm3610, 0, %v3609
    %v3612 = vsub.s32 32, %v3611
    %v3613 = vshll.u32 %v3604, %v3611
    %v3614 = vshrl.u32 %v3596, %v3612
    %v3615 = vor.u32 %v3613, %v3614
    %v3616 = vsub.s32 4294967266, %v3611
    %v3617 = vadd.s32 %v3616, 127
    %v3618 = vshll.u32 %v3617, 23
    %v3619 = vor.u32 4788187, %v3618
    %v3620 = vand.u32 2147483647, %v3619
    %v3622 = vcvt.s32.f32 %v3615
    %v3623 = vmul.f32 %v3622, %v3620
    %v3624 = vxor.u32 %v3623, 2147483648
    %v3625 = vsel %vm3504, %v3624, %v3623
    %v3626 = vsub.s32 4, %v3602
    %v3627 = vsel %vm3504, %v3626, %v3602
    %v3628 = vsel %vm3503, %v2268, %v3625
    %v3629 = vsel %vm3503, 0, %v3627
    %v3630 = vmul.f32 %v3628, %v3628
    %v3631 = vmul.f32 %v3630, -0.001358992
    %v3632 = vadd.f32 %v3631, 0.041655596
    %v3633 = vmul.f32 %v3630, %v3632
    %v3634 = vadd.f32 %v3633, -0.4999988
    %v3635 = vmul.f32 %v3630, %v3634
    %v3636 = vadd.f32 1.0, %v3635
    %v3637 = vmul.f32 %v3628, %v3628
    %v3638 = vmul.f32 %v3637, -0.00019511016
    %v3639 = vadd.f32 %v3638, 0.008332121
    %v3640 = vmul.f32 %v3637, %v3639
    %v3641 = vadd.f32 %v3640, -0.16666654
    %v3642 = vmul.f32 %v3637, %v3641
    %v3643 = vadd.f32 %v3642, 1.0
    %v3644 = vmul.f32 %v3643, %v3628
    %vm3645 = vweird.f32 %v2268
    %v3646 = vand.u32 %v3629, 3
    %vm3647 = vcmp.lt.s32.totalorder %v3646, 2
    %vm3648 = vcmp.eq.s32.totalorder %v3646, 0
    %v3649 = vxor.u32 %v3644, 2147483648
    %v3650 = vsel %vm3648, %v3636, %v3649
    %vm3651 = vcmp.eq.s32.totalorder %v3646, 2
    %v3652 = vxor.u32 %v3636, 2147483648
    %v3653 = vsel %vm3651, %v3652, %v3644
    %v3654 = vsel %vm3647, %v3650, %v3653
    %v3655 = vsel %vm3645, nan, %v3654
    %v3656 = vand.u32 2147483647, %v372
    %vm3657 = vcmp.le.f32.partialorder %v3656, 0.7853982
    %vm3658 = vcmp.lt.s32.totalorder %v372, 0
    %v3659 = vand.u32 %v372, 2139095040
    %v3660 = vshrl.u32 %v3659, 23
    %v3661 = vsub.s32 %v3660, 127
    %v3662 = vand.u32 2147483647, %v372
    %v3663 = vand.u32 %v3662, 8388607
    %v3664 = vor.u32 %v3663, 8388608
    %v3665 = vsub.s32 0, %v3664
    %v3666 = vadd.s32 %v3661, 1
    %vm3667 = vcmp.gt.s32.totalorder %v3666, 0
    %v3668 = vsel %vm3667, %v3666, 0
    %v3669 = vshrl.u32 %v3668, 5
    %v3670 = vand.u32 %v3668, 31
    %v3671 = vsub.s32 32, %v3670
    %v3672 = vshrl.u32 683565275, %v3671
    %v3673 = vshll.u32 683565275, %v3670
    %v3674 = vshrl.u32 2475754826, %v3671
    %v3675 = vor.u32 %v3673, %v3674
    %v3676 = vshll.u32 2475754826, %v3670
    %v3677 = vshrl.u32 2131351028, %v3671
    %v3678 = vor.u32 %v3676, %v3677
    %v3679 = vshll.u32 2131351028, %v3670
    %v3680 = vshrl.u32 2102212464, %v3671
    %v3681 = vor.u32 %v3679, %v3680
    %v3682 = vshll.u32 2102212464, %v3670
    %v3683 = vshrl.u32 920167782, %v3671
    %v3684 = vor.u32 %v3682, %v3683
    %v3685 = vshll.u32 920167782, %v3670
    %v3686 = vshrl.u32 1326507024, %v3671
    %v3687 = vor.u32 %v3685, %v3686
    %vm3688 = vcmp.lt.s32.totalorder %v3669, 1
    %vm3689 = vcmp.lt.s32.totalorder %v3669, 2
    %vm3690 = vcmp.lt.s32.totalorder %v3669, 3
    %vm3691 = vcmp.lt.s32.totalorder %v3669, 4
    %v3692 = vsel %vm3688, %v3672, %v3675
    %v3693 = vsel %vm3691, %v3681, 2102212464
    %v3694 = vsel %vm3690, %v3678, %v3693
    %v3695 = vsel %vm3689, %v3692, %v3694
    %v3696 = vsel %vm3688, %v3675, %v3678
    %v3697 = vsel %vm3691, %v3684, 920167782
    %v3698 = vsel %vm3690, %v3681, %v3697
    %v3699 = vsel %vm3689, %v3696, %v3698
    %v3700 = vsel %vm3688, %v3678, %v3681
    %v3701 = vsel %vm3691, %v3687, 1326507024
    %v3702 = vsel %vm3690, %v3684, %v3701
    %v3703 = vsel %vm3689, %v3700, %v3702
    %v3704 = vshll.u32 %v3664, 8
    %v3705 = vand.u32 %v3704, 65535
    %v3706 = vshrl.u32 %v3704, 16
    %v3707 = vand.u32 %v3703, 65535
    %v3708 = vshrl.u32 %v3703, 16
    %v3709 = vmul.u32 %v3705, %v3707
    %v3710 = vmul.u32 %v3705, %v3708
    %v3711 = vmul.u32 %v3706, %v3707
    %v3712 = vmul.u32 %v3706, %v3708
    %v3713 = vshll.u32 %v3710, 16
    %v3714 = vshrl.u32 %v3710, 16
    %v3715 = vshll.u32 %v3711, 16
    %v3716 = vshrl.u32 %v3711, 16
    %vm3717 = vc.u32 %v3709, %v3713
    %v3718 = vsel %vm3717, 1, 0
    %v3719 = vadd.s32 %v3709, %v3713
    %v3720 = vadd.s32 %v3712, %v3718
    %vm3721 = vc.u32 %v3719, %v3715
    %v3722 = vsel %vm3721, 1, 0
    %v3723 = vadd.s32 %v3719, %v3715
    %v3724 = vadd.s32 %v3720, %v3722
    %v3725 = vadd.s32 %v3724, %v3714
    %v3726 = vadd.s32 %v3725, %v3716
    %v3727 = vand.u32 %v3704, 65535
    %v3728 = vshrl.u32 %v3704, 16
    %v3729 = vand.u32 %v3699, 65535
    %v3730 = vshrl.u32 %v3699, 16
    %v3731 = vmul.u32 %v3727, %v3729
    %v3732 = vmul.u32 %v3727, %v3730
    %v3733 = vmul.u32 %v3728, %v3729
    %v3734 = vmul.u32 %v3728, %v3730
    %v3735 = vshll.u32 %v3732, 16
    %v3736 = vshrl.u32 %v3732, 16
    %v3737 = vshll.u32 %v3733, 16
    %v3738 = vshrl.u32 %v3733, 16
    %vm3739 = vc.u32 %v3731, %v3735
    %v3740 = vsel %vm3739, 1, 0
    %v3741 = vadd.s32 %v3731, %v3735
    %v3742 = vadd.s32 %v3734, %v3740
    %vm3743 = vc.u32 %v3741, %v3737
    %v3744 = vsel %vm3743, 1, 0
    %v3745 = vadd.s32 %v3741, %v3737
    %v3746 = vadd.s32 %v3742, %v3744
    %v3747 = vadd.s32 %v3746, %v3736
    %v3748 = vadd.s32 %v3747, %v3738
    %v3749 = vmul.u32 %v3704, %v3695
    %v3750 = vadd.s32 %v3726, %v3745
    %vm3751 = vc.u32 %v3726, %v3745
    %v3752 = vadd.s32 %v3748, 1
    %v3753 = vsel %vm3751, %v3752, %v3748
    %v3754 = vadd.s32 %v3749, %v3753
    %v3755 = vadd.s32 %v3754, 536870912
    %v3756 = vshrl.u32 %v3755, 30
    %v3757 = vshll.u32 %v3756, 30
    %v3758 = vsub.s32 %v3754, %v3757
    %vm3759 = vcmp.lt.s32.totalorder %v3758, 0
    %v3760 = vsub.s32 0, %v3758
    %v3761 = vsel %vm3759, %v3760, %v3758
    %v3762 = vclz %v3761
    %v3763 = vsub.s32 %v3762, 2
    %vm3764 = vcmp.gt.s32.totalorder 0, %v3763
    %v3765 = vsel %vm3764, 0, %v3763
    %v3766 = vsub.s32 32, %v3765
    %v3767 = vshll.u32 %v3758, %v3765
    %v3768 = vshrl.u32 %v3750, %v3766
    %v3769 = vor.u32 %v3767, %v3768
    %v3770 = vsub.s32 4294967266, %v3765
    %v3771 = vadd.s32 %v3770, 127
    %v3772 = vshll.u32 %v3771, 23
    %v3773 = vor.u32 4788187, %v3772
    %v3774 = vand.u32 2147483647, %v3773
    %v3776 = vcvt.s32.f32 %v3769
    %v3777 = vmul.f32 %v3776, %v3774
    %v3778 = vxor.u32 %v3777, 2147483648
    %v3779 = vsel %vm3658, %v3778, %v3777
    %v3780 = vsub.s32 4, %v3756
    %v3781 = vsel %vm3658, %v3780, %v3756
    %v3782 = vsel %vm3657, %v372, %v3779
    %v3783 = vsel %vm3657, 0, %v3781
    %v3784 = vmul.f32 %v3782, %v3782
    %v3785 = vmul.f32 %v3784, -0.001358992
    %v3786 = vadd.f32 %v3785, 0.041655596
    %v3787 = vmul.f32 %v3784, %v3786
    %v3788 = vadd.f32 %v3787, -0.4999988
    %v3789 = vmul.f32 %v3784, %v3788
    %v3790 = vadd.f32 1.0, %v3789
    %v3791 = vmul.f32 %v3782, %v3782
    %v3792 = vmul.f32 %v3791, -0.00019511016
    %v3793 = vadd.f32 %v3792, 0.008332121
    %v3794 = vmul.f32 %v3791, %v3793
    %v3795 = vadd.f32 %v3794, -0.16666654
    %v3796 = vmul.f32 %v3791, %v3795
    %v3797 = vadd.f32 %v3796, 1.0
    %v3798 = vmul.f32 %v3797, %v3782
    %vm3799 = vweird.f32 %v372
    %v3800 = vadd.s32 %v3783, 3
    %v3801 = vand.u32 %v3800, 3
    %vm3802 = vcmp.lt.s32.totalorder %v3801, 2
    %vm3803 = vcmp.eq.s32.totalorder %v3801, 0
    %v3804 = vxor.u32 %v3798, 2147483648
    %v3805 = vsel %vm3803, %v3790, %v3804
    %vm3806 = vcmp.eq.s32.totalorder %v3801, 2
    %v3807 = vxor.u32 %v3790, 2147483648
    %v3808 = vsel %vm3806, %v3807, %v3798
    %v3809 = vsel %vm3802, %v3805, %v3808
    %v3810 = vsel %vm3799, nan, %v3809
    %v3811 = vand.u32 2147483647, %v609
    %vm3812 = vcmp.le.f32.partialorder %v3811, 0.7853982
    %vm3813 = vcmp.lt.s32.totalorder %v609, 0
    %v3814 = vand.u32 %v609, 2139095040
    %v3815 = vshrl.u32 %v3814, 23
    %v3816 = vsub.s32 %v3815, 127
    %v3817 = vand.u32 2147483647, %v609
    %v3818 = vand.u32 %v3817, 8388607
    %v3819 = vor.u32 %v3818, 8388608
    %v3820 = vsub.s32 0, %v3819
    %v3821 = vadd.s32 %v3816, 1
    %vm3822 = vcmp.gt.s32.totalorder %v3821, 0
    %v3823 = vsel %vm3822, %v3821, 0
    %v3824 = vshrl.u32 %v3823, 5
    %v3825 = vand.u32 %v3823, 31
    %v3826 = vsub.s32 32, %v3825
    %v3827 = vshrl.u32 683565275, %v3826
    %v3828 = vshll.u32 683565275, %v3825
    %v3829 = vshrl.u32 2475754826, %v3826
    %v3830 = vor.u32 %v3828, %v3829
    %v3831 = vshll.u32 2475754826, %v3825
    %v3832 = vshrl.u32 2131351028, %v3826
    %v3833 = vor.u32 %v3831, %v3832
    %v3834 = vshll.u32 2131351028, %v3825
    %v3835 = vshrl.u32 2102212464, %v3826
    %v3836 = vor.u32 %v3834, %v3835
    %v3837 = vshll.u32 2102212464, %v3825
    %v3838 = vshrl.u32 920167782, %v3826
    %v3839 = vor.u32 %v3837, %v3838
    %v3840 = vshll.u32 920167782, %v3825
    %v3841 = vshrl.u32 1326507024, %v3826
    %v3842 = vor.u32 %v3840, %v3841
    %vm3843 = vcmp.lt.s32.totalorder %v3824, 1
    %vm3844 = vcmp.lt.s32.totalorder %v3824, 2
    %vm3845 = vcmp.lt.s32.totalorder %v3824, 3
    %vm3846 = vcmp.lt.s32.totalorder %v3824, 4
    %v3847 = vsel %vm3843, %v3827, %v3830
    %v3848 = vsel %vm3846, %v3836, 2102212464
    %v3849 = vsel %vm3845, %v3833, %v3848
    %v3850 = vsel %vm3844, %v3847, %v3849
    %v3851 = vsel %vm3843, %v3830, %v3833
    %v3852 = vsel %vm3846, %v3839, 920167782
    %v3853 = vsel %vm3845, %v3836, %v3852
    %v3854 = vsel %vm3844, %v3851, %v3853
    %v3855 = vsel %vm3843, %v3833, %v3836
    %v3856 = vsel %vm3846, %v3842, 1326507024
    %v3857 = vsel %vm3845, %v3839, %v3856
    %v3858 = vsel %vm3844, %v3855, %v3857
    %v3859 = vshll.u32 %v3819, 8
    %v3860 = vand.u32 %v3859, 65535
    %v3861 = vshrl.u32 %v3859, 16
    %v3862 = vand.u32 %v3858, 65535
    %v3863 = vshrl.u32 %v3858, 16
    %v3864 = vmul.u32 %v3860, %v3862
    %v3865 = vmul.u32 %v3860, %v3863
    %v3866 = vmul.u32 %v3861, %v3862
    %v3867 = vmul.u32 %v3861, %v3863
    %v3868 = vshll.u32 %v3865, 16
    %v3869 = vshrl.u32 %v3865, 16
    %v3870 = vshll.u32 %v3866, 16
    %v3871 = vshrl.u32 %v3866, 16
    %vm3872 = vc.u32 %v3864, %v3868
    %v3873 = vsel %vm3872, 1, 0
    %v3874 = vadd.s32 %v3864, %v3868
    %v3875 = vadd.s32 %v3867, %v3873
    %vm3876 = vc.u32 %v3874, %v3870
    %v3877 = vsel %vm3876, 1, 0
    %v3878 = vadd.s32 %v3874, %v3870
    %v3879 = vadd.s32 %v3875, %v3877
    %v3880 = vadd.s32 %v3879, %v3869
    %v3881 = vadd.s32 %v3880, %v3871
    %v3882 = vand.u32 %v3859, 65535
    %v3883 = vshrl.u32 %v3859, 16
    %v3884 = vand.u32 %v3854, 65535
    %v3885 = vshrl.u32 %v3854, 16
    %v3886 = vmul.u32 %v3882, %v3884
    %v3887 = vmul.u32 %v3882, %v3885
    %v3888 = vmul.u32 %v3883, %v3884
    %v3889 = vmul.u32 %v3883, %v3885
    %v3890 = vshll.u32 %v3887, 16
    %v3891 = vshrl.u32 %v3887, 16
    %v3892 = vshll.u32 %v3888, 16
    %v3893 = vshrl.u32 %v3888, 16
    %vm3894 = vc.u32 %v3886, %v3890
    %v3895 = vsel %vm3894, 1, 0
    %v3896 = vadd.s32 %v3886, %v3890
    %v3897 = vadd.s32 %v3889, %v3895
    %vm3898 = vc.u32 %v3896, %v3892
    %v3899 = vsel %vm3898, 1, 0
    %v3900 = vadd.s32 %v3896, %v3892
    %v3901 = vadd.s32 %v3897, %v3899
    %v3902 = vadd.s32 %v3901, %v3891
    %v3903 = vadd.s32 %v3902, %v3893
    %v3904 = vmul.u32 %v3859, %v3850
    %v3905 = vadd.s32 %v3881, %v3900
    %vm3906 = vc.u32 %v3881, %v3900
    %v3907 = vadd.s32 %v3903, 1
    %v3908 = vsel %vm3906, %v3907, %v3903
    %v3909 = vadd.s32 %v3904, %v3908
    %v3910 = vadd.s32 %v3909, 536870912
    %v3911 = vshrl.u32 %v3910, 30
    %v3912 = vshll.u32 %v3911, 30
    %v3913 = vsub.s32 %v3909, %v3912
    %vm3914 = vcmp.lt.s32.totalorder %v3913, 0
    %v3915 = vsub.s32 0, %v3913
    %v3916 = vsel %vm3914, %v3915, %v3913
    %v3917 = vclz %v3916
    %v3918 = vsub.s32 %v3917, 2
    %vm3919 = vcmp.gt.s32.totalorder 0, %v3918
    %v3920 = vsel %vm3919, 0, %v3918
    %v3921 = vsub.s32 32, %v3920
    %v3922 = vshll.u32 %v3913, %v3920
    %v3923 = vshrl.u32 %v3905, %v3921
    %v3924 = vor.u32 %v3922, %v3923
    %v3925 = vsub.s32 4294967266, %v3920
    %v3926 = vadd.s32 %v3925, 127
    %v3927 = vshll.u32 %v3926, 23
    %v3928 = vor.u32 4788187, %v3927
    %v3929 = vand.u32 2147483647, %v3928
    %v3931 = vcvt.s32.f32 %v3924
    %v3932 = vmul.f32 %v3931, %v3929
    %v3933 = vxor.u32 %v3932, 2147483648
    %v3934 = vsel %vm3813, %v3933, %v3932
    %v3935 = vsub.s32 4, %v3911
    %v3936 = vsel %vm3813, %v3935, %v3911
    %v3937 = vsel %vm3812, %v609, %v3934
    %v3938 = vsel %vm3812, 0, %v3936
    %v3939 = vmul.f32 %v3937, %v3937
    %v3940 = vmul.f32 %v3939, -0.001358992
    %v3941 = vadd.f32 %v3940, 0.041655596
    %v3942 = vmul.f32 %v3939, %v3941
    %v3943 = vadd.f32 %v3942, -0.4999988
    %v3944 = vmul.f32 %v3939, %v3943
    %v3945 = vadd.f32 1.0, %v3944
    %v3946 = vmul.f32 %v3937, %v3937
    %v3947 = vmul.f32 %v3946, -0.00019511016
    %v3948 = vadd.f32 %v3947, 0.008332121
    %v3949 = vmul.f32 %v3946, %v3948
    %v3950 = vadd.f32 %v3949, -0.16666654
    %v3951 = vmul.f32 %v3946, %v3950
    %v3952 = vadd.f32 %v3951, 1.0
    %v3953 = vmul.f32 %v3952, %v3937
    %vm3954 = vweird.f32 %v609
    %v3955 = vadd.s32 %v3938, 3
    %v3956 = vand.u32 %v3955, 3
    %vm3957 = vcmp.lt.s32.totalorder %v3956, 2
    %vm3958 = vcmp.eq.s32.totalorder %v3956, 0
    %v3959 = vxor.u32 %v3953, 2147483648
    %v3960 = vsel %vm3958, %v3945, %v3959
    %vm3961 = vcmp.eq.s32.totalorder %v3956, 2
    %v3962 = vxor.u32 %v3945, 2147483648
    %v3963 = vsel %vm3961, %v3962, %v3953
    %v3964 = vsel %vm3957, %v3960, %v3963
    %v3965 = vsel %vm3954, nan, %v3964
    %v3966 = vand.u32 2147483647, %v846
    %vm3967 = vcmp.le.f32.partialorder %v3966, 0.7853982
    %vm3968 = vcmp.lt.s32.totalorder %v846, 0
    %v3969 = vand.u32 %v846, 2139095040
    %v3970 = vshrl.u32 %v3969, 23
    %v3971 = vsub.s32 %v3970, 127
    %v3972 = vand.u32 2147483647, %v846
    %v3973 = vand.u32 %v3972, 8388607
    %v3974 = vor.u32 %v3973, 8388608
    %v3975 = vsub.s32 0, %v3974
    %v3976 = vadd.s32 %v3971, 1
    %vm3977 = vcmp.gt.s32.totalorder %v3976, 0
    %v3978 = vsel %vm3977, %v3976, 0
    %v3979 = vshrl.u32 %v3978, 5
    %v3980 = vand.u32 %v3978, 31
    %v3981 = vsub.s32 32, %v3980
    %v3982 = vshrl.u32 683565275, %v3981
    %v3983 = vshll.u32 683565275, %v3980
    %v3984 = vshrl.u32 2475754826, %v3981
    %v3985 = vor.u32 %v3983, %v3984
    %v3986 = vshll.u32 2475754826, %v3980
    %v3987 = vshrl.u32 2131351028, %v3981
    %v3988 = vor.u32 %v3986, %v3987
    %v3989 = vshll.u32 2131351028, %v3980
    %v3990 = vshrl.u32 2102212464, %v3981
    %v3991 = vor.u32 %v3989, %v3990
    %v3992 = vshll.u32 2102212464, %v3980
    %v3993 = vshrl.u32 920167782, %v3981
    %v3994 = vor.u32 %v3992, %v3993
    %v3995 = vshll.u32 920167782, %v3980
    %v3996 = vshrl.u32 1326507024, %v3981
    %v3997 = vor.u32 %v3995, %v3996
    %vm3998 = vcmp.lt.s32.totalorder %v3979, 1
    %vm3999 = vcmp.lt.s32.totalorder %v3979, 2
    %vm4000 = vcmp.lt.s32.totalorder %v3979, 3
    %vm4001 = vcmp.lt.s32.totalorder %v3979, 4
    %v4002 = vsel %vm3998, %v3982, %v3985
    %v4003 = vsel %vm4001, %v3991, 2102212464
    %v4004 = vsel %vm4000, %v3988, %v4003
    %v4005 = vsel %vm3999, %v4002, %v4004
    %v4006 = vsel %vm3998, %v3985, %v3988
    %v4007 = vsel %vm4001, %v3994, 920167782
    %v4008 = vsel %vm4000, %v3991, %v4007
    %v4009 = vsel %vm3999, %v4006, %v4008
    %v4010 = vsel %vm3998, %v3988, %v3991
    %v4011 = vsel %vm4001, %v3997, 1326507024
    %v4012 = vsel %vm4000, %v3994, %v4011
    %v4013 = vsel %vm3999, %v4010, %v4012
    %v4014 = vshll.u32 %v3974, 8
    %v4015 = vand.u32 %v4014, 65535
    %v4016 = vshrl.u32 %v4014, 16
    %v4017 = vand.u32 %v4013, 65535
    %v4018 = vshrl.u32 %v4013, 16
    %v4019 = vmul.u32 %v4015, %v4017
    %v4020 = vmul.u32 %v4015, %v4018
    %v4021 = vmul.u32 %v4016, %v4017
    %v4022 = vmul.u32 %v4016, %v4018
    %v4023 = vshll.u32 %v4020, 16
    %v4024 = vshrl.u32 %v4020, 16
    %v4025 = vshll.u32 %v4021, 16
    %v4026 = vshrl.u32 %v4021, 16
    %vm4027 = vc.u32 %v4019, %v4023
    %v4028 = vsel %vm4027, 1, 0
    %v4029 = vadd.s32 %v4019, %v4023
    %v4030 = vadd.s32 %v4022, %v4028
    %vm4031 = vc.u32 %v4029, %v4025
    %v4032 = vsel %vm4031, 1, 0
    %v4033 = vadd.s32 %v4029, %v4025
    %v4034 = vadd.s32 %v4030, %v4032
    %v4035 = vadd.s32 %v4034, %v4024
    %v4036 = vadd.s32 %v4035, %v4026
    %v4037 = vand.u32 %v4014, 65535
    %v4038 = vshrl.u32 %v4014, 16
    %v4039 = vand.u32 %v4009, 65535
    %v4040 = vshrl.u32 %v4009, 16
    %v4041 = vmul.u32 %v4037, %v4039
    %v4042 = vmul.u32 %v4037, %v4040
    %v4043 = vmul.u32 %v4038, %v4039
    %v4044 = vmul.u32 %v4038, %v4040
    %v4045 = vshll.u32 %v4042, 16
    %v4046 = vshrl.u32 %v4042, 16
    %v4047 = vshll.u32 %v4043, 16
    %v4048 = vshrl.u32 %v4043, 16
    %vm4049 = vc.u32 %v4041, %v4045
    %v4050 = vsel %vm4049, 1, 0
    %v4051 = vadd.s32 %v4041, %v4045
    %v4052 = vadd.s32 %v4044, %v4050
    %vm4053 = vc.u32 %v4051, %v4047
    %v4054 = vsel %vm4053, 1, 0
    %v4055 = vadd.s32 %v4051, %v4047
    %v4056 = vadd.s32 %v4052, %v4054
    %v4057 = vadd.s32 %v4056, %v4046
    %v4058 = vadd.s32 %v4057, %v4048
    %v4059 = vmul.u32 %v4014, %v4005
    %v4060 = vadd.s32 %v4036, %v4055
    %vm4061 = vc.u32 %v4036, %v4055
    %v4062 = vadd.s32 %v4058, 1
    %v4063 = vsel %vm4061, %v4062, %v4058
    %v4064 = vadd.s32 %v4059, %v4063
    %v4065 = vadd.s32 %v4064, 536870912
    %v4066 = vshrl.u32 %v4065, 30
    %v4067 = vshll.u32 %v4066, 30
    %v4068 = vsub.s32 %v4064, %v4067
    %vm4069 = vcmp.lt.s32.totalorder %v4068, 0
    %v4070 = vsub.s32 0, %v4068
    %v4071 = vsel %vm4069, %v4070, %v4068
    %v4072 = vclz %v4071
    %v4073 = vsub.s32 %v4072, 2
    %vm4074 = vcmp.gt.s32.totalorder 0, %v4073
    %v4075 = vsel %vm4074, 0, %v4073
    %v4076 = vsub.s32 32, %v4075
    %v4077 = vshll.u32 %v4068, %v4075
    %v4078 = vshrl.u32 %v4060, %v4076
    %v4079 = vor.u32 %v4077, %v4078
    %v4080 = vsub.s32 4294967266, %v4075
    %v4081 = vadd.s32 %v4080, 127
    %v4082 = vshll.u32 %v4081, 23
    %v4083 = vor.u32 4788187, %v4082
    %v4084 = vand.u32 2147483647, %v4083
    %v4086 = vcvt.s32.f32 %v4079
    %v4087 = vmul.f32 %v4086, %v4084
    %v4088 = vxor.u32 %v4087, 2147483648
    %v4089 = vsel %vm3968, %v4088, %v4087
    %v4090 = vsub.s32 4, %v4066
    %v4091 = vsel %vm3968, %v4090, %v4066
    %v4092 = vsel %vm3967, %v846, %v4089
    %v4093 = vsel %vm3967, 0, %v4091
    %v4094 = vmul.f32 %v4092, %v4092
    %v4095 = vmul.f32 %v4094, -0.001358992
    %v4096 = vadd.f32 %v4095, 0.041655596
    %v4097 = vmul.f32 %v4094, %v4096
    %v4098 = vadd.f32 %v4097, -0.4999988
    %v4099 = vmul.f32 %v4094, %v4098
    %v4100 = vadd.f32 1.0, %v4099
    %v4101 = vmul.f32 %v4092, %v4092
    %v4102 = vmul.f32 %v4101, -0.00019511016
    %v4103 = vadd.f32 %v4102, 0.008332121
    %v4104 = vmul.f32 %v4101, %v4103
    %v4105 = vadd.f32 %v4104, -0.16666654
    %v4106 = vmul.f32 %v4101, %v4105
    %v4107 = vadd.f32 %v4106, 1.0
    %v4108 = vmul.f32 %v4107, %v4092
    %vm4109 = vweird.f32 %v846
    %v4110 = vadd.s32 %v4093, 3
    %v4111 = vand.u32 %v4110, 3
    %vm4112 = vcmp.lt.s32.totalorder %v4111, 2
    %vm4113 = vcmp.eq.s32.totalorder %v4111, 0
    %v4114 = vxor.u32 %v4108, 2147483648
    %v4115 = vsel %vm4113, %v4100, %v4114
    %vm4116 = vcmp.eq.s32.totalorder %v4111, 2
    %v4117 = vxor.u32 %v4100, 2147483648
    %v4118 = vsel %vm4116, %v4117, %v4108
    %v4119 = vsel %vm4112, %v4115, %v4118
    %v4120 = vsel %vm4109, nan, %v4119
    %v4121 = vand.u32 2147483647, %v1083
    %vm4122 = vcmp.le.f32.partialorder %v4121, 0.7853982
    %vm4123 = vcmp.lt.s32.totalorder %v1083, 0
    %v4124 = vand.u32 %v1083, 2139095040
    %v4125 = vshrl.u32 %v4124, 23
    %v4126 = vsub.s32 %v4125, 127
    %v4127 = vand.u32 2147483647, %v1083
    %v4128 = vand.u32 %v4127, 8388607
    %v4129 = vor.u32 %v4128, 8388608
    %v4130 = vsub.s32 0, %v4129
    %v4131 = vadd.s32 %v4126, 1
    %vm4132 = vcmp.gt.s32.totalorder %v4131, 0
    %v4133 = vsel %vm4132, %v4131, 0
    %v4134 = vshrl.u32 %v4133, 5
    %v4135 = vand.u32 %v4133, 31
    %v4136 = vsub.s32 32, %v4135
    %v4137 = vshrl.u32 683565275, %v4136
    %v4138 = vshll.u32 683565275, %v4135
    %v4139 = vshrl.u32 2475754826, %v4136
    %v4140 = vor.u32 %v4138, %v4139
    %v4141 = vshll.u32 2475754826, %v4135
    %v4142 = vshrl.u32 2131351028, %v4136
    %v4143 = vor.u32 %v4141, %v4142
    %v4144 = vshll.u32 2131351028, %v4135
    %v4145 = vshrl.u32 2102212464, %v4136
    %v4146 = vor.u32 %v4144, %v4145
    %v4147 = vshll.u32 2102212464, %v4135
    %v4148 = vshrl.u32 920167782, %v4136
    %v4149 = vor.u32 %v4147, %v4148
    %v4150 = vshll.u32 920167782, %v4135
    %v4151 = vshrl.u32 1326507024, %v4136
    %v4152 = vor.u32 %v4150, %v4151
    %vm4153 = vcmp.lt.s32.totalorder %v4134, 1
    %vm4154 = vcmp.lt.s32.totalorder %v4134, 2
    %vm4155 = vcmp.lt.s32.totalorder %v4134, 3
    %vm4156 = vcmp.lt.s32.totalorder %v4134, 4
    %v4157 = vsel %vm4153, %v4137, %v4140
    %v4158 = vsel %vm4156, %v4146, 2102212464
    %v4159 = vsel %vm4155, %v4143, %v4158
    %v4160 = vsel %vm4154, %v4157, %v4159
    %v4161 = vsel %vm4153, %v4140, %v4143
    %v4162 = vsel %vm4156, %v4149, 920167782
    %v4163 = vsel %vm4155, %v4146, %v4162
    %v4164 = vsel %vm4154, %v4161, %v4163
    %v4165 = vsel %vm4153, %v4143, %v4146
    %v4166 = vsel %vm4156, %v4152, 1326507024
    %v4167 = vsel %vm4155, %v4149, %v4166
    %v4168 = vsel %vm4154, %v4165, %v4167
    %v4169 = vshll.u32 %v4129, 8
    %v4170 = vand.u32 %v4169, 65535
    %v4171 = vshrl.u32 %v4169, 16
    %v4172 = vand.u32 %v4168, 65535
    %v4173 = vshrl.u32 %v4168, 16
    %v4174 = vmul.u32 %v4170, %v4172
    %v4175 = vmul.u32 %v4170, %v4173
    %v4176 = vmul.u32 %v4171, %v4172
    %v4177 = vmul.u32 %v4171, %v4173
    %v4178 = vshll.u32 %v4175, 16
    %v4179 = vshrl.u32 %v4175, 16
    %v4180 = vshll.u32 %v4176, 16
    %v4181 = vshrl.u32 %v4176, 16
    %vm4182 = vc.u32 %v4174, %v4178
    %v4183 = vsel %vm4182, 1, 0
    %v4184 = vadd.s32 %v4174, %v4178
    %v4185 = vadd.s32 %v4177, %v4183
    %vm4186 = vc.u32 %v4184, %v4180
    %v4187 = vsel %vm4186, 1, 0
    %v4188 = vadd.s32 %v4184, %v4180
    %v4189 = vadd.s32 %v4185, %v4187
    %v4190 = vadd.s32 %v4189, %v4179
    %v4191 = vadd.s32 %v4190, %v4181
    %v4192 = vand.u32 %v4169, 65535
    %v4193 = vshrl.u32 %v4169, 16
    %v4194 = vand.u32 %v4164, 65535
    %v4195 = vshrl.u32 %v4164, 16
    %v4196 = vmul.u32 %v4192, %v4194
    %v4197 = vmul.u32 %v4192, %v4195
    %v4198 = vmul.u32 %v4193, %v4194
    %v4199 = vmul.u32 %v4193, %v4195
    %v4200 = vshll.u32 %v4197, 16
    %v4201 = vshrl.u32 %v4197, 16
    %v4202 = vshll.u32 %v4198, 16
    %v4203 = vshrl.u32 %v4198, 16
    %vm4204 = vc.u32 %v4196, %v4200
    %v4205 = vsel %vm4204, 1, 0
    %v4206 = vadd.s32 %v4196, %v4200
    %v4207 = vadd.s32 %v4199, %v4205
    %vm4208 = vc.u32 %v4206, %v4202
    %v4209 = vsel %vm4208, 1, 0
    %v4210 = vadd.s32 %v4206, %v4202
    %v4211 = vadd.s32 %v4207, %v4209
    %v4212 = vadd.s32 %v4211, %v4201
    %v4213 = vadd.s32 %v4212, %v4203
    %v4214 = vmul.u32 %v4169, %v4160
    %v4215 = vadd.s32 %v4191, %v4210
    %vm4216 = vc.u32 %v4191, %v4210
    %v4217 = vadd.s32 %v4213, 1
    %v4218 = vsel %vm4216, %v4217, %v4213
    %v4219 = vadd.s32 %v4214, %v4218
    %v4220 = vadd.s32 %v4219, 536870912
    %v4221 = vshrl.u32 %v4220, 30
    %v4222 = vshll.u32 %v4221, 30
    %v4223 = vsub.s32 %v4219, %v4222
    %vm4224 = vcmp.lt.s32.totalorder %v4223, 0
    %v4225 = vsub.s32 0, %v4223
    %v4226 = vsel %vm4224, %v4225, %v4223
    %v4227 = vclz %v4226
    %v4228 = vsub.s32 %v4227, 2
    %vm4229 = vcmp.gt.s32.totalorder 0, %v4228
    %v4230 = vsel %vm4229, 0, %v4228
    %v4231 = vsub.s32 32, %v4230
    %v4232 = vshll.u32 %v4223, %v4230
    %v4233 = vshrl.u32 %v4215, %v4231
    %v4234 = vor.u32 %v4232, %v4233
    %v4235 = vsub.s32 4294967266, %v4230
    %v4236 = vadd.s32 %v4235, 127
    %v4237 = vshll.u32 %v4236, 23
    %v4238 = vor.u32 4788187, %v4237
    %v4239 = vand.u32 2147483647, %v4238
    %v4241 = vcvt.s32.f32 %v4234
    %v4242 = vmul.f32 %v4241, %v4239
    %v4243 = vxor.u32 %v4242, 2147483648
    %v4244 = vsel %vm4123, %v4243, %v4242
    %v4245 = vsub.s32 4, %v4221
    %v4246 = vsel %vm4123, %v4245, %v4221
    %v4247 = vsel %vm4122, %v1083, %v4244
    %v4248 = vsel %vm4122, 0, %v4246
    %v4249 = vmul.f32 %v4247, %v4247
    %v4250 = vmul.f32 %v4249, -0.001358992
    %v4251 = vadd.f32 %v4250, 0.041655596
    %v4252 = vmul.f32 %v4249, %v4251
    %v4253 = vadd.f32 %v4252, -0.4999988
    %v4254 = vmul.f32 %v4249, %v4253
    %v4255 = vadd.f32 1.0, %v4254
    %v4256 = vmul.f32 %v4247, %v4247
    %v4257 = vmul.f32 %v4256, -0.00019511016
    %v4258 = vadd.f32 %v4257, 0.008332121
    %v4259 = vmul.f32 %v4256, %v4258
    %v4260 = vadd.f32 %v4259, -0.16666654
    %v4261 = vmul.f32 %v4256, %v4260
    %v4262 = vadd.f32 %v4261, 1.0
    %v4263 = vmul.f32 %v4262, %v4247
    %vm4264 = vweird.f32 %v1083
    %v4265 = vadd.s32 %v4248, 3
    %v4266 = vand.u32 %v4265, 3
    %vm4267 = vcmp.lt.s32.totalorder %v4266, 2
    %vm4268 = vcmp.eq.s32.totalorder %v4266, 0
    %v4269 = vxor.u32 %v4263, 2147483648
    %v4270 = vsel %vm4268, %v4255, %v4269
    %vm4271 = vcmp.eq.s32.totalorder %v4266, 2
    %v4272 = vxor.u32 %v4255, 2147483648
    %v4273 = vsel %vm4271, %v4272, %v4263
    %v4274 = vsel %vm4267, %v4270, %v4273
    %v4275 = vsel %vm4264, nan, %v4274
    %v4276 = vand.u32 2147483647, %v1320
    %vm4277 = vcmp.le.f32.partialorder %v4276, 0.7853982
    %vm4278 = vcmp.lt.s32.totalorder %v1320, 0
    %v4279 = vand.u32 %v1320, 2139095040
    %v4280 = vshrl.u32 %v4279, 23
    %v4281 = vsub.s32 %v4280, 127
    %v4282 = vand.u32 2147483647, %v1320
    %v4283 = vand.u32 %v4282, 8388607
    %v4284 = vor.u32 %v4283, 8388608
    %v4285 = vsub.s32 0, %v4284
    %v4286 = vadd.s32 %v4281, 1
    %vm4287 = vcmp.gt.s32.totalorder %v4286, 0
    %v4288 = vsel %vm4287, %v4286, 0
    %v4289 = vshrl.u32 %v4288, 5
    %v4290 = vand.u32 %v4288, 31
    %v4291 = vsub.s32 32, %v4290
    %v4292 = vshrl.u32 683565275, %v4291
    %v4293 = vshll.u32 683565275, %v4290
    %v4294 = vshrl.u32 2475754826, %v4291
    %v4295 = vor.u32 %v4293, %v4294
    %v4296 = vshll.u32 2475754826, %v4290
    %v4297 = vshrl.u32 2131351028, %v4291
    %v4298 = vor.u32 %v4296, %v4297
    %v4299 = vshll.u32 2131351028, %v4290
    %v4300 = vshrl.u32 2102212464, %v4291
    %v4301 = vor.u32 %v4299, %v4300
    %v4302 = vshll.u32 2102212464, %v4290
    %v4303 = vshrl.u32 920167782, %v4291
    %v4304 = vor.u32 %v4302, %v4303
    %v4305 = vshll.u32 920167782, %v4290
    %v4306 = vshrl.u32 1326507024, %v4291
    %v4307 = vor.u32 %v4305, %v4306
    %vm4308 = vcmp.lt.s32.totalorder %v4289, 1
    %vm4309 = vcmp.lt.s32.totalorder %v4289, 2
    %vm4310 = vcmp.lt.s32.totalorder %v4289, 3
    %vm4311 = vcmp.lt.s32.totalorder %v4289, 4
    %v4312 = vsel %vm4308, %v4292, %v4295
    %v4313 = vsel %vm4311, %v4301, 2102212464
    %v4314 = vsel %vm4310, %v4298, %v4313
    %v4315 = vsel %vm4309, %v4312, %v4314
    %v4316 = vsel %vm4308, %v4295, %v4298
    %v4317 = vsel %vm4311, %v4304, 920167782
    %v4318 = vsel %vm4310, %v4301, %v4317
    %v4319 = vsel %vm4309, %v4316, %v4318
    %v4320 = vsel %vm4308, %v4298, %v4301
    %v4321 = vsel %vm4311, %v4307, 1326507024
    %v4322 = vsel %vm4310, %v4304, %v4321
    %v4323 = vsel %vm4309, %v4320, %v4322
    %v4324 = vshll.u32 %v4284, 8
    %v4325 = vand.u32 %v4324, 65535
    %v4326 = vshrl.u32 %v4324, 16
    %v4327 = vand.u32 %v4323, 65535
    %v4328 = vshrl.u32 %v4323, 16
    %v4329 = vmul.u32 %v4325, %v4327
    %v4330 = vmul.u32 %v4325, %v4328
    %v4331 = vmul.u32 %v4326, %v4327
    %v4332 = vmul.u32 %v4326, %v4328
    %v4333 = vshll.u32 %v4330, 16
    %v4334 = vshrl.u32 %v4330, 16
    %v4335 = vshll.u32 %v4331, 16
    %v4336 = vshrl.u32 %v4331, 16
    %vm4337 = vc.u32 %v4329, %v4333
    %v4338 = vsel %vm4337, 1, 0
    %v4339 = vadd.s32 %v4329, %v4333
    %v4340 = vadd.s32 %v4332, %v4338
    %vm4341 = vc.u32 %v4339, %v4335
    %v4342 = vsel %vm4341, 1, 0
    %v4343 = vadd.s32 %v4339, %v4335
    %v4344 = vadd.s32 %v4340, %v4342
    %v4345 = vadd.s32 %v4344, %v4334
    %v4346 = vadd.s32 %v4345, %v4336
    %v4347 = vand.u32 %v4324, 65535
    %v4348 = vshrl.u32 %v4324, 16
    %v4349 = vand.u32 %v4319, 65535
    %v4350 = vshrl.u32 %v4319, 16
    %v4351 = vmul.u32 %v4347, %v4349
    %v4352 = vmul.u32 %v4347, %v4350
    %v4353 = vmul.u32 %v4348, %v4349
    %v4354 = vmul.u32 %v4348, %v4350
    %v4355 = vshll.u32 %v4352, 16
    %v4356 = vshrl.u32 %v4352, 16
    %v4357 = vshll.u32 %v4353, 16
    %v4358 = vshrl.u32 %v4353, 16
    %vm4359 = vc.u32 %v4351, %v4355
    %v4360 = vsel %vm4359, 1, 0
    %v4361 = vadd.s32 %v4351, %v4355
    %v4362 = vadd.s32 %v4354, %v4360
    %vm4363 = vc.u32 %v4361, %v4357
    %v4364 = vsel %vm4363, 1, 0
    %v4365 = vadd.s32 %v4361, %v4357
    %v4366 = vadd.s32 %v4362, %v4364
    %v4367 = vadd.s32 %v4366, %v4356
    %v4368 = vadd.s32 %v4367, %v4358
    %v4369 = vmul.u32 %v4324, %v4315
    %v4370 = vadd.s32 %v4346, %v4365
    %vm4371 = vc.u32 %v4346, %v4365
    %v4372 = vadd.s32 %v4368, 1
    %v4373 = vsel %vm4371, %v4372, %v4368
    %v4374 = vadd.s32 %v4369, %v4373
    %v4375 = vadd.s32 %v4374, 536870912
    %v4376 = vshrl.u32 %v4375, 30
    %v4377 = vshll.u32 %v4376, 30
    %v4378 = vsub.s32 %v4374, %v4377
    %vm4379 = vcmp.lt.s32.totalorder %v4378, 0
    %v4380 = vsub.s32 0, %v4378
    %v4381 = vsel %vm4379, %v4380, %v4378
    %v4382 = vclz %v4381
    %v4383 = vsub.s32 %v4382, 2
    %vm4384 = vcmp.gt.s32.totalorder 0, %v4383
    %v4385 = vsel %vm4384, 0, %v4383
    %v4386 = vsub.s32 32, %v4385
    %v4387 = vshll.u32 %v4378, %v4385
    %v4388 = vshrl.u32 %v4370, %v4386
    %v4389 = vor.u32 %v4387, %v4388
    %v4390 = vsub.s32 4294967266, %v4385
    %v4391 = vadd.s32 %v4390, 127
    %v4392 = vshll.u32 %v4391, 23
    %v4393 = vor.u32 4788187, %v4392
    %v4394 = vand.u32 2147483647, %v4393
    %v4396 = vcvt.s32.f32 %v4389
    %v4397 = vmul.f32 %v4396, %v4394
    %v4398 = vxor.u32 %v4397, 2147483648
    %v4399 = vsel %vm4278, %v4398, %v4397
    %v4400 = vsub.s32 4, %v4376
    %v4401 = vsel %vm4278, %v4400, %v4376
    %v4402 = vsel %vm4277, %v1320, %v4399
    %v4403 = vsel %vm4277, 0, %v4401
    %v4404 = vmul.f32 %v4402, %v4402
    %v4405 = vmul.f32 %v4404, -0.001358992
    %v4406 = vadd.f32 %v4405, 0.041655596
    %v4407 = vmul.f32 %v4404, %v4406
    %v4408 = vadd.f32 %v4407, -0.4999988
    %v4409 = vmul.f32 %v4404, %v4408
    %v4410 = vadd.f32 1.0, %v4409
    %v4411 = vmul.f32 %v4402, %v4402
    %v4412 = vmul.f32 %v4411, -0.00019511016
    %v4413 = vadd.f32 %v4412, 0.008332121
    %v4414 = vmul.f32 %v4411, %v4413
    %v4415 = vadd.f32 %v4414, -0.16666654
    %v4416 = vmul.f32 %v4411, %v4415
    %v4417 = vadd.f32 %v4416, 1.0
    %v4418 = vmul.f32 %v4417, %v4402
    %vm4419 = vweird.f32 %v1320
    %v4420 = vadd.s32 %v4403, 3
    %v4421 = vand.u32 %v4420, 3
    %vm4422 = vcmp.lt.s32.totalorder %v4421, 2
    %vm4423 = vcmp.eq.s32.totalorder %v4421, 0
    %v4424 = vxor.u32 %v4418, 2147483648
    %v4425 = vsel %vm4423, %v4410, %v4424
    %vm4426 = vcmp.eq.s32.totalorder %v4421, 2
    %v4427 = vxor.u32 %v4410, 2147483648
    %v4428 = vsel %vm4426, %v4427, %v4418
    %v4429 = vsel %vm4422, %v4425, %v4428
    %v4430 = vsel %vm4419, nan, %v4429
    %v4431 = vand.u32 2147483647, %v1557
    %vm4432 = vcmp.le.f32.partialorder %v4431, 0.7853982
    %vm4433 = vcmp.lt.s32.totalorder %v1557, 0
    %v4434 = vand.u32 %v1557, 2139095040
    %v4435 = vshrl.u32 %v4434, 23
    %v4436 = vsub.s32 %v4435, 127
    %v4437 = vand.u32 2147483647, %v1557
    %v4438 = vand.u32 %v4437, 8388607
    %v4439 = vor.u32 %v4438, 8388608
    %v4440 = vsub.s32 0, %v4439
    %v4441 = vadd.s32 %v4436, 1
    %vm4442 = vcmp.gt.s32.totalorder %v4441, 0
    %v4443 = vsel %vm4442, %v4441, 0
    %v4444 = vshrl.u32 %v4443, 5
    %v4445 = vand.u32 %v4443, 31
    %v4446 = vsub.s32 32, %v4445
    %v4447 = vshrl.u32 683565275, %v4446
    %v4448 = vshll.u32 683565275, %v4445
    %v4449 = vshrl.u32 2475754826, %v4446
    %v4450 = vor.u32 %v4448, %v4449
    %v4451 = vshll.u32 2475754826, %v4445
    %v4452 = vshrl.u32 2131351028, %v4446
    %v4453 = vor.u32 %v4451, %v4452
    %v4454 = vshll.u32 2131351028, %v4445
    %v4455 = vshrl.u32 2102212464, %v4446
    %v4456 = vor.u32 %v4454, %v4455
    %v4457 = vshll.u32 2102212464, %v4445
    %v4458 = vshrl.u32 920167782, %v4446
    %v4459 = vor.u32 %v4457, %v4458
    %v4460 = vshll.u32 920167782, %v4445
    %v4461 = vshrl.u32 1326507024, %v4446
    %v4462 = vor.u32 %v4460, %v4461
    %vm4463 = vcmp.lt.s32.totalorder %v4444, 1
    %vm4464 = vcmp.lt.s32.totalorder %v4444, 2
    %vm4465 = vcmp.lt.s32.totalorder %v4444, 3
    %vm4466 = vcmp.lt.s32.totalorder %v4444, 4
    %v4467 = vsel %vm4463, %v4447, %v4450
    %v4468 = vsel %vm4466, %v4456, 2102212464
    %v4469 = vsel %vm4465, %v4453, %v4468
    %v4470 = vsel %vm4464, %v4467, %v4469
    %v4471 = vsel %vm4463, %v4450, %v4453
    %v4472 = vsel %vm4466, %v4459, 920167782
    %v4473 = vsel %vm4465, %v4456, %v4472
    %v4474 = vsel %vm4464, %v4471, %v4473
    %v4475 = vsel %vm4463, %v4453, %v4456
    %v4476 = vsel %vm4466, %v4462, 1326507024
    %v4477 = vsel %vm4465, %v4459, %v4476
    %v4478 = vsel %vm4464, %v4475, %v4477
    %v4479 = vshll.u32 %v4439, 8
    %v4480 = vand.u32 %v4479, 65535
    %v4481 = vshrl.u32 %v4479, 16
    %v4482 = vand.u32 %v4478, 65535
    %v4483 = vshrl.u32 %v4478, 16
    %v4484 = vmul.u32 %v4480, %v4482
    %v4485 = vmul.u32 %v4480, %v4483
    %v4486 = vmul.u32 %v4481, %v4482
    %v4487 = vmul.u32 %v4481, %v4483
    %v4488 = vshll.u32 %v4485, 16
    %v4489 = vshrl.u32 %v4485, 16
    %v4490 = vshll.u32 %v4486, 16
    %v4491 = vshrl.u32 %v4486, 16
    %vm4492 = vc.u32 %v4484, %v4488
    %v4493 = vsel %vm4492, 1, 0
    %v4494 = vadd.s32 %v4484, %v4488
    %v4495 = vadd.s32 %v4487, %v4493
    %vm4496 = vc.u32 %v4494, %v4490
    %v4497 = vsel %vm4496, 1, 0
    %v4498 = vadd.s32 %v4494, %v4490
    %v4499 = vadd.s32 %v4495, %v4497
    %v4500 = vadd.s32 %v4499, %v4489
    %v4501 = vadd.s32 %v4500, %v4491
    %v4502 = vand.u32 %v4479, 65535
    %v4503 = vshrl.u32 %v4479, 16
    %v4504 = vand.u32 %v4474, 65535
    %v4505 = vshrl.u32 %v4474, 16
    %v4506 = vmul.u32 %v4502, %v4504
    %v4507 = vmul.u32 %v4502, %v4505
    %v4508 = vmul.u32 %v4503, %v4504
    %v4509 = vmul.u32 %v4503, %v4505
    %v4510 = vshll.u32 %v4507, 16
    %v4511 = vshrl.u32 %v4507, 16
    %v4512 = vshll.u32 %v4508, 16
    %v4513 = vshrl.u32 %v4508, 16
    %vm4514 = vc.u32 %v4506, %v4510
    %v4515 = vsel %vm4514, 1, 0
    %v4516 = vadd.s32 %v4506, %v4510
    %v4517 = vadd.s32 %v4509, %v4515
    %vm4518 = vc.u32 %v4516, %v4512
    %v4519 = vsel %vm4518, 1, 0
    %v4520 = vadd.s32 %v4516, %v4512
    %v4521 = vadd.s32 %v4517, %v4519
    %v4522 = vadd.s32 %v4521, %v4511
    %v4523 = vadd.s32 %v4522, %v4513
    %v4524 = vmul.u32 %v4479, %v4470
    %v4525 = vadd.s32 %v4501, %v4520
    %vm4526 = vc.u32 %v4501, %v4520
    %v4527 = vadd.s32 %v4523, 1
    %v4528 = vsel %vm4526, %v4527, %v4523
    %v4529 = vadd.s32 %v4524, %v4528
    %v4530 = vadd.s32 %v4529, 536870912
    %v4531 = vshrl.u32 %v4530, 30
    %v4532 = vshll.u32 %v4531, 30
    %v4533 = vsub.s32 %v4529, %v4532
    %vm4534 = vcmp.lt.s32.totalorder %v4533, 0
    %v4535 = vsub.s32 0, %v4533
    %v4536 = vsel %vm4534, %v4535, %v4533
    %v4537 = vclz %v4536
    %v4538 = vsub.s32 %v4537, 2
    %vm4539 = vcmp.gt.s32.totalorder 0, %v4538
    %v4540 = vsel %vm4539, 0, %v4538
    %v4541 = vsub.s32 32, %v4540
    %v4542 = vshll.u32 %v4533, %v4540
    %v4543 = vshrl.u32 %v4525, %v4541
    %v4544 = vor.u32 %v4542, %v4543
    %v4545 = vsub.s32 4294967266, %v4540
    %v4546 = vadd.s32 %v4545, 127
    %v4547 = vshll.u32 %v4546, 23
    %v4548 = vor.u32 4788187, %v4547
    %v4549 = vand.u32 2147483647, %v4548
    %v4551 = vcvt.s32.f32 %v4544
    %v4552 = vmul.f32 %v4551, %v4549
    %v4553 = vxor.u32 %v4552, 2147483648
    %v4554 = vsel %vm4433, %v4553, %v4552
    %v4555 = vsub.s32 4, %v4531
    %v4556 = vsel %vm4433, %v4555, %v4531
    %v4557 = vsel %vm4432, %v1557, %v4554
    %v4558 = vsel %vm4432, 0, %v4556
    %v4559 = vmul.f32 %v4557, %v4557
    %v4560 = vmul.f32 %v4559, -0.001358992
    %v4561 = vadd.f32 %v4560, 0.041655596
    %v4562 = vmul.f32 %v4559, %v4561
    %v4563 = vadd.f32 %v4562, -0.4999988
    %v4564 = vmul.f32 %v4559, %v4563
    %v4565 = vadd.f32 1.0, %v4564
    %v4566 = vmul.f32 %v4557, %v4557
    %v4567 = vmul.f32 %v4566, -0.00019511016
    %v4568 = vadd.f32 %v4567, 0.008332121
    %v4569 = vmul.f32 %v4566, %v4568
    %v4570 = vadd.f32 %v4569, -0.16666654
    %v4571 = vmul.f32 %v4566, %v4570
    %v4572 = vadd.f32 %v4571, 1.0
    %v4573 = vmul.f32 %v4572, %v4557
    %vm4574 = vweird.f32 %v1557
    %v4575 = vadd.s32 %v4558, 3
    %v4576 = vand.u32 %v4575, 3
    %vm4577 = vcmp.lt.s32.totalorder %v4576, 2
    %vm4578 = vcmp.eq.s32.totalorder %v4576, 0
    %v4579 = vxor.u32 %v4573, 2147483648
    %v4580 = vsel %vm4578, %v4565, %v4579
    %vm4581 = vcmp.eq.s32.totalorder %v4576, 2
    %v4582 = vxor.u32 %v4565, 2147483648
    %v4583 = vsel %vm4581, %v4582, %v4573
    %v4584 = vsel %vm4577, %v4580, %v4583
    %v4585 = vsel %vm4574, nan, %v4584
    %v4586 = vand.u32 2147483647, %v1794
    %vm4587 = vcmp.le.f32.partialorder %v4586, 0.7853982
    %vm4588 = vcmp.lt.s32.totalorder %v1794, 0
    %v4589 = vand.u32 %v1794, 2139095040
    %v4590 = vshrl.u32 %v4589, 23
    %v4591 = vsub.s32 %v4590, 127
    %v4592 = vand.u32 2147483647, %v1794
    %v4593 = vand.u32 %v4592, 8388607
    %v4594 = vor.u32 %v4593, 8388608
    %v4595 = vsub.s32 0, %v4594
    %v4596 = vadd.s32 %v4591, 1
    %vm4597 = vcmp.gt.s32.totalorder %v4596, 0
    %v4598 = vsel %vm4597, %v4596, 0
    %v4599 = vshrl.u32 %v4598, 5
    %v4600 = vand.u32 %v4598, 31
    %v4601 = vsub.s32 32, %v4600
    %v4602 = vshrl.u32 683565275, %v4601
    %v4603 = vshll.u32 683565275, %v4600
    %v4604 = vshrl.u32 2475754826, %v4601
    %v4605 = vor.u32 %v4603, %v4604
    %v4606 = vshll.u32 2475754826, %v4600
    %v4607 = vshrl.u32 2131351028, %v4601
    %v4608 = vor.u32 %v4606, %v4607
    %v4609 = vshll.u32 2131351028, %v4600
    %v4610 = vshrl.u32 2102212464, %v4601
    %v4611 = vor.u32 %v4609, %v4610
    %v4612 = vshll.u32 2102212464, %v4600
    %v4613 = vshrl.u32 920167782, %v4601
    %v4614 = vor.u32 %v4612, %v4613
    %v4615 = vshll.u32 920167782, %v4600
    %v4616 = vshrl.u32 1326507024, %v4601
    %v4617 = vor.u32 %v4615, %v4616
    %vm4618 = vcmp.lt.s32.totalorder %v4599, 1
    %vm4619 = vcmp.lt.s32.totalorder %v4599, 2
    %vm4620 = vcmp.lt.s32.totalorder %v4599, 3
    %vm4621 = vcmp.lt.s32.totalorder %v4599, 4
    %v4622 = vsel %vm4618, %v4602, %v4605
    %v4623 = vsel %vm4621, %v4611, 2102212464
    %v4624 = vsel %vm4620, %v4608, %v4623
    %v4625 = vsel %vm4619, %v4622, %v4624
    %v4626 = vsel %vm4618, %v4605, %v4608
    %v4627 = vsel %vm4621, %v4614, 920167782
    %v4628 = vsel %vm4620, %v4611, %v4627
    %v4629 = vsel %vm4619, %v4626, %v4628
    %v4630 = vsel %vm4618, %v4608, %v4611
    %v4631 = vsel %vm4621, %v4617, 1326507024
    %v4632 = vsel %vm4620, %v4614, %v4631
    %v4633 = vsel %vm4619, %v4630, %v4632
    %v4634 = vshll.u32 %v4594, 8
    %v4635 = vand.u32 %v4634, 65535
    %v4636 = vshrl.u32 %v4634, 16
    %v4637 = vand.u32 %v4633, 65535
    %v4638 = vshrl.u32 %v4633, 16
    %v4639 = vmul.u32 %v4635, %v4637
    %v4640 = vmul.u32 %v4635, %v4638
    %v4641 = vmul.u32 %v4636, %v4637
    %v4642 = vmul.u32 %v4636, %v4638
    %v4643 = vshll.u32 %v4640, 16
    %v4644 = vshrl.u32 %v4640, 16
    %v4645 = vshll.u32 %v4641, 16
    %v4646 = vshrl.u32 %v4641, 16
    %vm4647 = vc.u32 %v4639, %v4643
    %v4648 = vsel %vm4647, 1, 0
    %v4649 = vadd.s32 %v4639, %v4643
    %v4650 = vadd.s32 %v4642, %v4648
    %vm4651 = vc.u32 %v4649, %v4645
    %v4652 = vsel %vm4651, 1, 0
    %v4653 = vadd.s32 %v4649, %v4645
    %v4654 = vadd.s32 %v4650, %v4652
    %v4655 = vadd.s32 %v4654, %v4644
    %v4656 = vadd.s32 %v4655, %v4646
    %v4657 = vand.u32 %v4634, 65535
    %v4658 = vshrl.u32 %v4634, 16
    %v4659 = vand.u32 %v4629, 65535
    %v4660 = vshrl.u32 %v4629, 16
    %v4661 = vmul.u32 %v4657, %v4659
    %v4662 = vmul.u32 %v4657, %v4660
    %v4663 = vmul.u32 %v4658, %v4659
    %v4664 = vmul.u32 %v4658, %v4660
    %v4665 = vshll.u32 %v4662, 16
    %v4666 = vshrl.u32 %v4662, 16
    %v4667 = vshll.u32 %v4663, 16
    %v4668 = vshrl.u32 %v4663, 16
    %vm4669 = vc.u32 %v4661, %v4665
    %v4670 = vsel %vm4669, 1, 0
    %v4671 = vadd.s32 %v4661, %v4665
    %v4672 = vadd.s32 %v4664, %v4670
    %vm4673 = vc.u32 %v4671, %v4667
    %v4674 = vsel %vm4673, 1, 0
    %v4675 = vadd.s32 %v4671, %v4667
    %v4676 = vadd.s32 %v4672, %v4674
    %v4677 = vadd.s32 %v4676, %v4666
    %v4678 = vadd.s32 %v4677, %v4668
    %v4679 = vmul.u32 %v4634, %v4625
    %v4680 = vadd.s32 %v4656, %v4675
    %vm4681 = vc.u32 %v4656, %v4675
    %v4682 = vadd.s32 %v4678, 1
    %v4683 = vsel %vm4681, %v4682, %v4678
    %v4684 = vadd.s32 %v4679, %v4683
    %v4685 = vadd.s32 %v4684, 536870912
    %v4686 = vshrl.u32 %v4685, 30
    %v4687 = vshll.u32 %v4686, 30
    %v4688 = vsub.s32 %v4684, %v4687
    %vm4689 = vcmp.lt.s32.totalorder %v4688, 0
    %v4690 = vsub.s32 0, %v4688
    %v4691 = vsel %vm4689, %v4690, %v4688
    %v4692 = vclz %v4691
    %v4693 = vsub.s32 %v4692, 2
    %vm4694 = vcmp.gt.s32.totalorder 0, %v4693
    %v4695 = vsel %vm4694, 0, %v4693
    %v4696 = vsub.s32 32, %v4695
    %v4697 = vshll.u32 %v4688, %v4695
    %v4698 = vshrl.u32 %v4680, %v4696
    %v4699 = vor.u32 %v4697, %v4698
    %v4700 = vsub.s32 4294967266, %v4695
    %v4701 = vadd.s32 %v4700, 127
    %v4702 = vshll.u32 %v4701, 23
    %v4703 = vor.u32 4788187, %v4702
    %v4704 = vand.u32 2147483647, %v4703
    %v4706 = vcvt.s32.f32 %v4699
    %v4707 = vmul.f32 %v4706, %v4704
    %v4708 = vxor.u32 %v4707, 2147483648
    %v4709 = vsel %vm4588, %v4708, %v4707
    %v4710 = vsub.s32 4, %v4686
    %v4711 = vsel %vm4588, %v4710, %v4686
    %v4712 = vsel %vm4587, %v1794, %v4709
    %v4713 = vsel %vm4587, 0, %v4711
    %v4714 = vmul.f32 %v4712, %v4712
    %v4715 = vmul.f32 %v4714, -0.001358992
    %v4716 = vadd.f32 %v4715, 0.041655596
    %v4717 = vmul.f32 %v4714, %v4716
    %v4718 = vadd.f32 %v4717, -0.4999988
    %v4719 = vmul.f32 %v4714, %v4718
    %v4720 = vadd.f32 1.0, %v4719
    %v4721 = vmul.f32 %v4712, %v4712
    %v4722 = vmul.f32 %v4721, -0.00019511016
    %v4723 = vadd.f32 %v4722, 0.008332121
    %v4724 = vmul.f32 %v4721, %v4723
    %v4725 = vadd.f32 %v4724, -0.16666654
    %v4726 = vmul.f32 %v4721, %v4725
    %v4727 = vadd.f32 %v4726, 1.0
    %v4728 = vmul.f32 %v4727, %v4712
    %vm4729 = vweird.f32 %v1794
    %v4730 = vadd.s32 %v4713, 3
    %v4731 = vand.u32 %v4730, 3
    %vm4732 = vcmp.lt.s32.totalorder %v4731, 2
    %vm4733 = vcmp.eq.s32.totalorder %v4731, 0
    %v4734 = vxor.u32 %v4728, 2147483648
    %v4735 = vsel %vm4733, %v4720, %v4734
    %vm4736 = vcmp.eq.s32.totalorder %v4731, 2
    %v4737 = vxor.u32 %v4720, 2147483648
    %v4738 = vsel %vm4736, %v4737, %v4728
    %v4739 = vsel %vm4732, %v4735, %v4738
    %v4740 = vsel %vm4729, nan, %v4739
    %v4741 = vand.u32 2147483647, %v2031
    %vm4742 = vcmp.le.f32.partialorder %v4741, 0.7853982
    %vm4743 = vcmp.lt.s32.totalorder %v2031, 0
    %v4744 = vand.u32 %v2031, 2139095040
    %v4745 = vshrl.u32 %v4744, 23
    %v4746 = vsub.s32 %v4745, 127
    %v4747 = vand.u32 2147483647, %v2031
    %v4748 = vand.u32 %v4747, 8388607
    %v4749 = vor.u32 %v4748, 8388608
    %v4750 = vsub.s32 0, %v4749
    %v4751 = vadd.s32 %v4746, 1
    %vm4752 = vcmp.gt.s32.totalorder %v4751, 0
    %v4753 = vsel %vm4752, %v4751, 0
    %v4754 = vshrl.u32 %v4753, 5
    %v4755 = vand.u32 %v4753, 31
    %v4756 = vsub.s32 32, %v4755
    %v4757 = vshrl.u32 683565275, %v4756
    %v4758 = vshll.u32 683565275, %v4755
    %v4759 = vshrl.u32 2475754826, %v4756
    %v4760 = vor.u32 %v4758, %v4759
    %v4761 = vshll.u32 2475754826, %v4755
    %v4762 = vshrl.u32 2131351028, %v4756
    %v4763 = vor.u32 %v4761, %v4762
    %v4764 = vshll.u32 2131351028, %v4755
    %v4765 = vshrl.u32 2102212464, %v4756
    %v4766 = vor.u32 %v4764, %v4765
    %v4767 = vshll.u32 2102212464, %v4755
    %v4768 = vshrl.u32 920167782, %v4756
    %v4769 = vor.u32 %v4767, %v4768
    %v4770 = vshll.u32 920167782, %v4755
    %v4771 = vshrl.u32 1326507024, %v4756
    %v4772 = vor.u32 %v4770, %v4771
    %vm4773 = vcmp.lt.s32.totalorder %v4754, 1
    %vm4774 = vcmp.lt.s32.totalorder %v4754, 2
    %vm4775 = vcmp.lt.s32.totalorder %v4754, 3
    %vm4776 = vcmp.lt.s32.totalorder %v4754, 4
    %v4777 = vsel %vm4773, %v4757, %v4760
    %v4778 = vsel %vm4776, %v4766, 2102212464
    %v4779 = vsel %vm4775, %v4763, %v4778
    %v4780 = vsel %vm4774, %v4777, %v4779
    %v4781 = vsel %vm4773, %v4760, %v4763
    %v4782 = vsel %vm4776, %v4769, 920167782
    %v4783 = vsel %vm4775, %v4766, %v4782
    %v4784 = vsel %vm4774, %v4781, %v4783
    %v4785 = vsel %vm4773, %v4763, %v4766
    %v4786 = vsel %vm4776, %v4772, 1326507024
    %v4787 = vsel %vm4775, %v4769, %v4786
    %v4788 = vsel %vm4774, %v4785, %v4787
    %v4789 = vshll.u32 %v4749, 8
    %v4790 = vand.u32 %v4789, 65535
    %v4791 = vshrl.u32 %v4789, 16
    %v4792 = vand.u32 %v4788, 65535
    %v4793 = vshrl.u32 %v4788, 16
    %v4794 = vmul.u32 %v4790, %v4792
    %v4795 = vmul.u32 %v4790, %v4793
    %v4796 = vmul.u32 %v4791, %v4792
    %v4797 = vmul.u32 %v4791, %v4793
    %v4798 = vshll.u32 %v4795, 16
    %v4799 = vshrl.u32 %v4795, 16
    %v4800 = vshll.u32 %v4796, 16
    %v4801 = vshrl.u32 %v4796, 16
    %vm4802 = vc.u32 %v4794, %v4798
    %v4803 = vsel %vm4802, 1, 0
    %v4804 = vadd.s32 %v4794, %v4798
    %v4805 = vadd.s32 %v4797, %v4803
    %vm4806 = vc.u32 %v4804, %v4800
    %v4807 = vsel %vm4806, 1, 0
    %v4808 = vadd.s32 %v4804, %v4800
    %v4809 = vadd.s32 %v4805, %v4807
    %v4810 = vadd.s32 %v4809, %v4799
    %v4811 = vadd.s32 %v4810, %v4801
    %v4812 = vand.u32 %v4789, 65535
    %v4813 = vshrl.u32 %v4789, 16
    %v4814 = vand.u32 %v4784, 65535
    %v4815 = vshrl.u32 %v4784, 16
    %v4816 = vmul.u32 %v4812, %v4814
    %v4817 = vmul.u32 %v4812, %v4815
    %v4818 = vmul.u32 %v4813, %v4814
    %v4819 = vmul.u32 %v4813, %v4815
    %v4820 = vshll.u32 %v4817, 16
    %v4821 = vshrl.u32 %v4817, 16
    %v4822 = vshll.u32 %v4818, 16
    %v4823 = vshrl.u32 %v4818, 16
    %vm4824 = vc.u32 %v4816, %v4820
    %v4825 = vsel %vm4824, 1, 0
    %v4826 = vadd.s32 %v4816, %v4820
    %v4827 = vadd.s32 %v4819, %v4825
    %vm4828 = vc.u32 %v4826, %v4822
    %v4829 = vsel %vm4828, 1, 0
    %v4830 = vadd.s32 %v4826, %v4822
    %v4831 = vadd.s32 %v4827, %v4829
    %v4832 = vadd.s32 %v4831, %v4821
    %v4833 = vadd.s32 %v4832, %v4823
    %v4834 = vmul.u32 %v4789, %v4780
    %v4835 = vadd.s32 %v4811, %v4830
    %vm4836 = vc.u32 %v4811, %v4830
    %v4837 = vadd.s32 %v4833, 1
    %v4838 = vsel %vm4836, %v4837, %v4833
    %v4839 = vadd.s32 %v4834, %v4838
    %v4840 = vadd.s32 %v4839, 536870912
    %v4841 = vshrl.u32 %v4840, 30
    %v4842 = vshll.u32 %v4841, 30
    %v4843 = vsub.s32 %v4839, %v4842
    %vm4844 = vcmp.lt.s32.totalorder %v4843, 0
    %v4845 = vsub.s32 0, %v4843
    %v4846 = vsel %vm4844, %v4845, %v4843
    %v4847 = vclz %v4846
    %v4848 = vsub.s32 %v4847, 2
    %vm4849 = vcmp.gt.s32.totalorder 0, %v4848
    %v4850 = vsel %vm4849, 0, %v4848
    %v4851 = vsub.s32 32, %v4850
    %v4852 = vshll.u32 %v4843, %v4850
    %v4853 = vshrl.u32 %v4835, %v4851
    %v4854 = vor.u32 %v4852, %v4853
    %v4855 = vsub.s32 4294967266, %v4850
    %v4856 = vadd.s32 %v4855, 127
    %v4857 = vshll.u32 %v4856, 23
    %v4858 = vor.u32 4788187, %v4857
    %v4859 = vand.u32 2147483647, %v4858
    %v4861 = vcvt.s32.f32 %v4854
    %v4862 = vmul.f32 %v4861, %v4859
    %v4863 = vxor.u32 %v4862, 2147483648
    %v4864 = vsel %vm4743, %v4863, %v4862
    %v4865 = vsub.s32 4, %v4841
    %v4866 = vsel %vm4743, %v4865, %v4841
    %v4867 = vsel %vm4742, %v2031, %v4864
    %v4868 = vsel %vm4742, 0, %v4866
    %v4869 = vmul.f32 %v4867, %v4867
    %v4870 = vmul.f32 %v4869, -0.001358992
    %v4871 = vadd.f32 %v4870, 0.041655596
    %v4872 = vmul.f32 %v4869, %v4871
    %v4873 = vadd.f32 %v4872, -0.4999988
    %v4874 = vmul.f32 %v4869, %v4873
    %v4875 = vadd.f32 1.0, %v4874
    %v4876 = vmul.f32 %v4867, %v4867
    %v4877 = vmul.f32 %v4876, -0.00019511016
    %v4878 = vadd.f32 %v4877, 0.008332121
    %v4879 = vmul.f32 %v4876, %v4878
    %v4880 = vadd.f32 %v4879, -0.16666654
    %v4881 = vmul.f32 %v4876, %v4880
    %v4882 = vadd.f32 %v4881, 1.0
    %v4883 = vmul.f32 %v4882, %v4867
    %vm4884 = vweird.f32 %v2031
    %v4885 = vadd.s32 %v4868, 3
    %v4886 = vand.u32 %v4885, 3
    %vm4887 = vcmp.lt.s32.totalorder %v4886, 2
    %vm4888 = vcmp.eq.s32.totalorder %v4886, 0
    %v4889 = vxor.u32 %v4883, 2147483648
    %v4890 = vsel %vm4888, %v4875, %v4889
    %vm4891 = vcmp.eq.s32.totalorder %v4886, 2
    %v4892 = vxor.u32 %v4875, 2147483648
    %v4893 = vsel %vm4891, %v4892, %v4883
    %v4894 = vsel %vm4887, %v4890, %v4893
    %v4895 = vsel %vm4884, nan, %v4894
    %v4896 = vand.u32 2147483647, %v2268
    %vm4897 = vcmp.le.f32.partialorder %v4896, 0.7853982
    %vm4898 = vcmp.lt.s32.totalorder %v2268, 0
    %v4899 = vand.u32 %v2268, 2139095040
    %v4900 = vshrl.u32 %v4899, 23
    %v4901 = vsub.s32 %v4900, 127
    %v4902 = vand.u32 2147483647, %v2268
    %v4903 = vand.u32 %v4902, 8388607
    %v4904 = vor.u32 %v4903, 8388608
    %v4905 = vsub.s32 0, %v4904
    %v4906 = vadd.s32 %v4901, 1
    %vm4907 = vcmp.gt.s32.totalorder %v4906, 0
    %v4908 = vsel %vm4907, %v4906, 0
    %v4909 = vshrl.u32 %v4908, 5
    %v4910 = vand.u32 %v4908, 31
    %v4911 = vsub.s32 32, %v4910
    %v4912 = vshrl.u32 683565275, %v4911
    %v4913 = vshll.u32 683565275, %v4910
    %v4914 = vshrl.u32 2475754826, %v4911
    %v4915 = vor.u32 %v4913, %v4914
    %v4916 = vshll.u32 2475754826, %v4910
    %v4917 = vshrl.u32 2131351028, %v4911
    %v4918 = vor.u32 %v4916, %v4917
    %v4919 = vshll.u32 2131351028, %v4910
    %v4920 = vshrl.u32 2102212464, %v4911
    %v4921 = vor.u32 %v4919, %v4920
    %v4922 = vshll.u32 2102212464, %v4910
    %v4923 = vshrl.u32 920167782, %v4911
    %v4924 = vor.u32 %v4922, %v4923
    %v4925 = vshll.u32 920167782, %v4910
    %v4926 = vshrl.u32 1326507024, %v4911
    %v4927 = vor.u32 %v4925, %v4926
    %vm4928 = vcmp.lt.s32.totalorder %v4909, 1
    %vm4929 = vcmp.lt.s32.totalorder %v4909, 2
    %vm4930 = vcmp.lt.s32.totalorder %v4909, 3
    %vm4931 = vcmp.lt.s32.totalorder %v4909, 4
    %v4932 = vsel %vm4928, %v4912, %v4915
    %v4933 = vsel %vm4931, %v4921, 2102212464
    %v4934 = vsel %vm4930, %v4918, %v4933
    %v4935 = vsel %vm4929, %v4932, %v4934
    %v4936 = vsel %vm4928, %v4915, %v4918
    %v4937 = vsel %vm4931, %v4924, 920167782
    %v4938 = vsel %vm4930, %v4921, %v4937
    %v4939 = vsel %vm4929, %v4936, %v4938
    %v4940 = vsel %vm4928, %v4918, %v4921
    %v4941 = vsel %vm4931, %v4927, 1326507024
    %v4942 = vsel %vm4930, %v4924, %v4941
    %v4943 = vsel %vm4929, %v4940, %v4942
    %v4944 = vshll.u32 %v4904, 8
    %v4945 = vand.u32 %v4944, 65535
    %v4946 = vshrl.u32 %v4944, 16
    %v4947 = vand.u32 %v4943, 65535
    %v4948 = vshrl.u32 %v4943, 16
    %v4949 = vmul.u32 %v4945, %v4947
    %v4950 = vmul.u32 %v4945, %v4948
    %v4951 = vmul.u32 %v4946, %v4947
    %v4952 = vmul.u32 %v4946, %v4948
    %v4953 = vshll.u32 %v4950, 16
    %v4954 = vshrl.u32 %v4950, 16
    %v4955 = vshll.u32 %v4951, 16
    %v4956 = vshrl.u32 %v4951, 16
    %vm4957 = vc.u32 %v4949, %v4953
    %v4958 = vsel %vm4957, 1, 0
    %v4959 = vadd.s32 %v4949, %v4953
    %v4960 = vadd.s32 %v4952, %v4958
    %vm4961 = vc.u32 %v4959, %v4955
    %v4962 = vsel %vm4961, 1, 0
    %v4963 = vadd.s32 %v4959, %v4955
    %v4964 = vadd.s32 %v4960, %v4962
    %v4965 = vadd.s32 %v4964, %v4954
    %v4966 = vadd.s32 %v4965, %v4956
    %v4967 = vand.u32 %v4944, 65535
    %v4968 = vshrl.u32 %v4944, 16
    %v4969 = vand.u32 %v4939, 65535
    %v4970 = vshrl.u32 %v4939, 16
    %v4971 = vmul.u32 %v4967, %v4969
    %v4972 = vmul.u32 %v4967, %v4970
    %v4973 = vmul.u32 %v4968, %v4969
    %v4974 = vmul.u32 %v4968, %v4970
    %v4975 = vshll.u32 %v4972, 16
    %v4976 = vshrl.u32 %v4972, 16
    %v4977 = vshll.u32 %v4973, 16
    %v4978 = vshrl.u32 %v4973, 16
    %vm4979 = vc.u32 %v4971, %v4975
    %v4980 = vsel %vm4979, 1, 0
    %v4981 = vadd.s32 %v4971, %v4975
    %v4982 = vadd.s32 %v4974, %v4980
    %vm4983 = vc.u32 %v4981, %v4977
    %v4984 = vsel %vm4983, 1, 0
    %v4985 = vadd.s32 %v4981, %v4977
    %v4986 = vadd.s32 %v4982, %v4984
    %v4987 = vadd.s32 %v4986, %v4976
    %v4988 = vadd.s32 %v4987, %v4978
    %v4989 = vmul.u32 %v4944, %v4935
    %v4990 = vadd.s32 %v4966, %v4985
    %vm4991 = vc.u32 %v4966, %v4985
    %v4992 = vadd.s32 %v4988, 1
    %v4993 = vsel %vm4991, %v4992, %v4988
    %v4994 = vadd.s32 %v4989, %v4993
    %v4995 = vadd.s32 %v4994, 536870912
    %v4996 = vshrl.u32 %v4995, 30
    %v4997 = vshll.u32 %v4996, 30
    %v4998 = vsub.s32 %v4994, %v4997
    %vm4999 = vcmp.lt.s32.totalorder %v4998, 0
    %v5000 = vsub.s32 0, %v4998
    %v5001 = vsel %vm4999, %v5000, %v4998
    %v5002 = vclz %v5001
    %v5003 = vsub.s32 %v5002, 2
    %vm5004 = vcmp.gt.s32.totalorder 0, %v5003
    %v5005 = vsel %vm5004, 0, %v5003
    %v5006 = vsub.s32 32, %v5005
    %v5007 = vshll.u32 %v4998, %v5005
    %v5008 = vshrl.u32 %v4990, %v5006
    %v5009 = vor.u32 %v5007, %v5008
    %v5010 = vsub.s32 4294967266, %v5005
    %v5011 = vadd.s32 %v5010, 127
    %v5012 = vshll.u32 %v5011, 23
    %v5013 = vor.u32 4788187, %v5012
    %v5014 = vand.u32 2147483647, %v5013
    %v5016 = vcvt.s32.f32 %v5009
    %v5017 = vmul.f32 %v5016, %v5014
    %v5018 = vxor.u32 %v5017, 2147483648
    %v5019 = vsel %vm4898, %v5018, %v5017
    %v5020 = vsub.s32 4, %v4996
    %v5021 = vsel %vm4898, %v5020, %v4996
    %v5022 = vsel %vm4897, %v2268, %v5019
    %v5023 = vsel %vm4897, 0, %v5021
    %v5024 = vmul.f32 %v5022, %v5022
    %v5025 = vmul.f32 %v5024, -0.001358992
    %v5026 = vadd.f32 %v5025, 0.041655596
    %v5027 = vmul.f32 %v5024, %v5026
    %v5028 = vadd.f32 %v5027, -0.4999988
    %v5029 = vmul.f32 %v5024, %v5028
    %v5030 = vadd.f32 1.0, %v5029
    %v5031 = vmul.f32 %v5022, %v5022
    %v5032 = vmul.f32 %v5031, -0.00019511016
    %v5033 = vadd.f32 %v5032, 0.008332121
    %v5034 = vmul.f32 %v5031, %v5033
    %v5035 = vadd.f32 %v5034, -0.16666654
    %v5036 = vmul.f32 %v5031, %v5035
    %v5037 = vadd.f32 %v5036, 1.0
    %v5038 = vmul.f32 %v5037, %v5022
    %vm5039 = vweird.f32 %v2268
    %v5040 = vadd.s32 %v5023, 3
    %v5041 = vand.u32 %v5040, 3
    %vm5042 = vcmp.lt.s32.totalorder %v5041, 2
    %vm5043 = vcmp.eq.s32.totalorder %v5041, 0
    %v5044 = vxor.u32 %v5038, 2147483648
    %v5045 = vsel %vm5043, %v5030, %v5044
    %vm5046 = vcmp.eq.s32.totalorder %v5041, 2
    %v5047 = vxor.u32 %v5030, 2147483648
    %v5048 = vsel %vm5046, %v5047, %v5038
    %v5049 = vsel %vm5042, %v5045, %v5048
    %v5050 = vsel %vm5039, nan, %v5049
    %v5053 = vperm.slane %v58, 0
    %v5054 = vperm.slane %v58, 1
    %v5055 = vperm.slane %v58, 2
    %v5056 = vperm.slane %v58, 3
    %v5057 = vperm.slane %v58, 4
    %v5058 = vperm.slane %v58, 5
    %v5059 = vperm.slane %v58, 6
    %v5060 = vperm.slane %v58, 7
    %v5061 = vperm.slane %v59, 0
    %5062 = vrot.lane.b32.xlu0 %v5053, 127
    %v5063 = vpop.permute.xlu0 %5062
    %5064 = vrot.lane.b32.xlu0 %v5054, 127
    %v5065 = vpop.permute.xlu0 %5064
    %5066 = vrot.lane.b32.xlu0 %v5055, 127
    %v5067 = vpop.permute.xlu0 %5066
    %5068 = vrot.lane.b32.xlu0 %v5056, 127
    %v5069 = vpop.permute.xlu0 %5068
    %5070 = vrot.lane.b32.xlu0 %v5057, 127
    %v5071 = vpop.permute.xlu0 %5070
    %5072 = vrot.lane.b32.xlu0 %v5058, 127
    %v5073 = vpop.permute.xlu0 %5072
    %5074 = vrot.lane.b32.xlu0 %v5059, 127
    %v5075 = vpop.permute.xlu0 %5074
    %5076 = vrot.lane.b32.xlu0 %v5060, 127
    %v5077 = vpop.permute.xlu0 %5076
    %5078 = vrot.lane.b32.xlu0 %v5061, 127
    %v5079 = vpop.permute.xlu0 %5078
    %vm5080 = vcmask 1039360
    %v5081 = vsel %vm5080, %v5063, %v5065
    %v5082 = vsel %vm5080, %v5065, %v5067
    %v5083 = vsel %vm5080, %v5067, %v5069
    %v5084 = vsel %vm5080, %v5069, %v5071
    %v5085 = vsel %vm5080, %v5071, %v5073
    %v5086 = vsel %vm5080, %v5073, %v5075
    %v5087 = vsel %vm5080, %v5075, %v5077
    %v5088 = vsel %vm5080, %v5077, %v5079
    %v5099 = vsel %vm5080, %v5079, %v5063
    %5100 = vrot.lane.b32.xlu0 %v5061, 1
    %v5101 = vpop.permute.xlu0 %5100
    %5103 = vrot.lane.b32.xlu0 %v5053, 1
    %v5104 = vpop.permute.xlu0 %5103
    %5105 = vrot.lane.b32.xlu0 %v5054, 1
    %v5106 = vpop.permute.xlu0 %5105
    %5107 = vrot.lane.b32.xlu0 %v5055, 1
    %v5108 = vpop.permute.xlu0 %5107
    %5109 = vrot.lane.b32.xlu0 %v5056, 1
    %v5110 = vpop.permute.xlu0 %5109
    %5111 = vrot.lane.b32.xlu0 %v5057, 1
    %v5112 = vpop.permute.xlu0 %5111
    %5113 = vrot.lane.b32.xlu0 %v5058, 1
    %v5114 = vpop.permute.xlu0 %5113
    %5115 = vrot.lane.b32.xlu0 %v5059, 1
    %v5116 = vpop.permute.xlu0 %5115
    %5117 = vrot.lane.b32.xlu0 %v5060, 1
    %v5118 = vpop.permute.xlu0 %5117
    %vm5119 = vcmask 7168
    %v5120 = vsel %vm5119, %v5104, %v5106
    %v5121 = vsel %vm5119, %v5106, %v5108
    %v5122 = vsel %vm5119, %v5108, %v5110
    %v5123 = vsel %vm5119, %v5110, %v5112
    %v5124 = vsel %vm5119, %v5112, %v5114
    %v5125 = vsel %vm5119, %v5114, %v5116
    %v5126 = vsel %vm5119, %v5116, %v5118
    %v5127 = vsel %vm5119, %v5118, %v5101
    %v5137 = vsel %vm5119, %v5101, %v5104
    %v5138 = vlaneseq
    %v5139 = vand.u32 %v5138, 127
    %v5140 = vadd.s32 %v5139, 128
    %v5141 = vadd.s32 %v5139, 256
    %v5142 = vadd.s32 %v5139, 384
    %v5143 = vadd.s32 %v5139, 512
    %v5144 = vadd.s32 %v5139, 640
    %v5145 = vadd.s32 %v5139, 768
    %v5146 = vadd.s32 %v5139, 896
    %v5147 = vadd.s32 %v5139, 1024
    %v5148 = vand.u32 %v5139, 1
    %v5149 = vand.u32 %v5140, 1
    %v5150 = vand.u32 %v5141, 1
    %v5151 = vand.u32 %v5142, 1
    %v5152 = vand.u32 %v5143, 1
    %v5153 = vand.u32 %v5144, 1
    %v5154 = vand.u32 %v5145, 1
    %v5155 = vand.u32 %v5146, 1
    %v5156 = vand.u32 %v5147, 1
    %vm5157 = vcmp.eq.s32.totalorder %v5148, 0
    %vm5158 = vcmp.eq.s32.totalorder %v5149, 0
    %vm5159 = vcmp.eq.s32.totalorder %v5150, 0
    %vm5160 = vcmp.eq.s32.totalorder %v5151, 0
    %vm5161 = vcmp.eq.s32.totalorder %v5152, 0
    %vm5162 = vcmp.eq.s32.totalorder %v5153, 0
    %vm5163 = vcmp.eq.s32.totalorder %v5154, 0
    %vm5164 = vcmp.eq.s32.totalorder %v5155, 0
    %vm5165 = vcmp.eq.s32.totalorder %v5156, 0
    %v5166 = vsel %vm5157, %v5081, %v5137
    %v5167 = vsel %vm5158, %v5082, %v5120
    %v5168 = vsel %vm5159, %v5083, %v5121
    %v5169 = vsel %vm5160, %v5084, %v5122
    %v5170 = vsel %vm5161, %v5085, %v5123
    %v5171 = vsel %vm5162, %v5086, %v5124
    %v5172 = vsel %vm5163, %v5087, %v5125
    %v5173 = vsel %vm5164, %v5088, %v5126
    %v5174 = vsel %vm5165, %v5099, %v5127
    %v5183 = vrot.slane %v2577, 7
    %v5184 = vrot.slane %v2731, 6
    %v5185 = vrot.slane %v2885, 5
    %v5186 = vrot.slane %v3039, 4
    %v5187 = vrot.slane %v3193, 3
    %v5188 = vrot.slane %v3347, 2
    %v5189 = vrot.slane %v3501, 1
    %vm5190 = vcmask 1040384
    %v5191 = vsel %vm5190, %v2423, %v5183
    %vm5192 = vcmask 1042434
    %v5193 = vsel %vm5192, %v5184, %v5185
    %vm5194 = vcmask 1041408
    %v5195 = vsel %vm5194, %v5191, %v5193
    %vm5196 = vcmask 1044484
    %v5197 = vsel %vm5196, %v5186, %v5187
    %vm5198 = vcmask 1046534
    %v5199 = vsel %vm5198, %v5188, %v5189
    %vm5200 = vcmask 1045508
    %v5201 = vsel %vm5200, %v5197, %v5199
    %vm5202 = vcmask 1043456
    %v5203 = vsel %vm5202, %v5195, %v5201
    %v5205 = vmul.f32 %v58, %v5203
    %v5206 = vmul.f32 %v59, %v3655
    %v5207 = vmul.f32 %v5166, %v3810
    %v5208 = vmul.f32 %v5167, %v3965
    %v5209 = vmul.f32 %v5168, %v4120
    %v5210 = vmul.f32 %v5169, %v4275
    %v5211 = vmul.f32 %v5170, %v4430
    %v5212 = vmul.f32 %v5171, %v4585
    %v5213 = vmul.f32 %v5172, %v4740
    %v5214 = vmul.f32 %v5173, %v4895
    %v5215 = vmul.f32 %v5174, %v5050
    %v5224 = vrot.slane %v5208, 7
    %v5225 = vrot.slane %v5209, 6
    %v5226 = vrot.slane %v5210, 5
    %v5227 = vrot.slane %v5211, 4
    %v5228 = vrot.slane %v5212, 3
    %v5229 = vrot.slane %v5213, 2
    %v5230 = vrot.slane %v5214, 1
    %v5231 = vsel %vm5190, %v5207, %v5224
    %v5232 = vsel %vm5192, %v5225, %v5226
    %v5233 = vsel %vm5194, %v5231, %v5232
    %v5234 = vsel %vm5196, %v5227, %v5228
    %v5235 = vsel %vm5198, %v5229, %v5230
    %v5236 = vsel %vm5200, %v5234, %v5235
    %v5237 = vsel %vm5202, %v5233, %v5236
    %v5239 = vadd.f32 %v5205, %v5237
    %v5240 = vadd.f32 %v5206, %v5215
    %5241 = vst [vmem:[#allocation8] sm:$0xff] %v5239
    %v5242 = vlaneseq
    %vm5243 = vcmp.ge.s32.totalorder %v5242, 0
    %vm5244 = vcmp.lt.s32.totalorder %v5242, 128
    %vm5245 = vmand %vm5243, %vm5244
    %5246 = vst.msk [vmem:[#allocation8 + $0x8] sm:$0x1] %vm5245, %v5240
    // Predicated region
    $region26: #{tpu_custom_call.1} parent=1 // pred_check
      _
    $region27: #{tpu_custom_call.1} parent=1 // pred_check_branch
      %5248 = sbr.rel (0) target = $region29
    $region28: #{tpu_custom_call.1} parent=1 // pred_region
      %5250 = vsyncadd [#allocation4], 0
      %s5252 = sshll.u32 [#allocation8], 4
      %s5253 = int_to_ptr.vmem [resolvable:$true] %s5252
      %s5254 = sshll.u32 %s3, 4
      %s5255 = int_to_ptr.hbm [resolvable:$true] %s5254
      %5257 = dma.vmem_to_hbm [thread:$0]  %s5253, 144, %s5255, [#allocation4]
    $region29: #{tpu_custom_call.1} parent=1 // pred_fallthru
      _
    // Predicated region
    $region30: #{tpu_custom_call.1} parent=1 // pred_check
      _
    $region31: #{tpu_custom_call.1} parent=1 // pred_check_branch
      %5259 = sbr.rel (0) target = $region33
    $region32: #{tpu_custom_call.1} parent=1 // pred_region
      %5261 = dma.done [#allocation4], 144
    $region33: #{tpu_custom_call.1} parent=1 // pred_fallthru
      _
    %5262 = vsyncpa [#allocation3], 1
    %5263 = vsyncpa [#allocation6], 1
    %5264 = vsyncpa [#allocation4], 1

</llo_original>
